<compile_context>
chip_gen: v5e
topology: v5e:2x2
jax: 0.10.0
libtpu: 0.0.40
codegen_flags: <defaults>
</compile_context>

<pallas_src>
import jax
import jax.numpy as jnp
import numpy as np
from jax import lax
from jax.experimental import pallas as pl
from jax.experimental.pallas import tpu as pltpu

# Full-precision f32 matmuls on the MXU so the fused kernel and the pure-JAX
# reference (different matmul groupings) agree to ~1e-5 on real hardware.
jax.config.update("jax_default_matmul_precision", "highest")

# ---- model hyper-params (small, consistent with the module) -----------------
D_MODEL = 32
N_HEADS = 4
D_HEAD = D_MODEL // N_HEADS
D_FF = 64
EPS = 1e-6


# -----------------------------------------------------------------------------
# in-kernel helpers
# -----------------------------------------------------------------------------
def _layernorm(x, gamma, beta):
    # x: (S, D); gamma/beta: (1, D)
    mu = jnp.mean(x, axis=-1, keepdims=True)
    var = jnp.mean((x - mu) ** 2, axis=-1, keepdims=True)
    return gamma * (x - mu) * lax.rsqrt(var + EPS) + beta


def _mha_heads(q, k, v, bias):
    """Multi-head attention core.

    q: (S_q, D), k/v: (S_kv, D), bias: (S_q, S_kv) additive (0 keep / -1e9 mask).
    Static unrolled head loop; bias precomputed so there is no per-head
    compare/select.
    """
    scale = 1.0 / jnp.sqrt(jnp.float32(D_HEAD))
    outs = []
    for h in range(N_HEADS):
        sl = slice(h * D_HEAD, (h + 1) * D_HEAD)
        qh, kh, vh = q[:, sl], k[:, sl], v[:, sl]
        # scores = qh @ kh^T (contract last dims, no explicit transpose)
        s = lax.dot_general(qh, kh, (((1,), (1,)), ((), ())),
                            preferred_element_type=jnp.float32) * scale + bias
        s = s - jnp.max(s, axis=-1, keepdims=True)
        p = jnp.exp(s)
        p = p / jnp.sum(p, axis=-1, keepdims=True)
        outs.append(jnp.dot(p, vh, preferred_element_type=jnp.float32))
    return jnp.concatenate(outs, axis=-1)  # (S_q, D)


# -----------------------------------------------------------------------------
# fused decoder-block kernel (one batch element per grid step)
# -----------------------------------------------------------------------------
def _decoder_block_kernel(
        x_ref, enc_ref, tbias_ref, sbias_ref,
        # self-attention params
        sa_wqkv_ref, sa_bqkv_ref, sa_wo_ref, sa_bo_ref, sa_g_ref, sa_b_ref,
        # cross-attention params
        ca_wq_ref, ca_bq_ref, ca_wkv_ref, ca_bkv_ref, ca_wo_ref, ca_bo_ref,
        ca_g_ref, ca_b_ref,
        # feed-forward params
        ff_w1_ref, ff_b1_ref, ff_w2_ref, ff_b2_ref, ff_g_ref, ff_b_ref,
        o_ref):
    x = x_ref[0].astype(jnp.float32)      # (S_tgt, D)
    enc = enc_ref[0].astype(jnp.float32)  # (S_src, D)
    tbias = tbias_ref[0]                  # (S_tgt, S_tgt) additive bias
    sbias = sbias_ref[0]                  # (S_tgt, S_src) additive bias

    # ---- residual 0: x = x + SelfAttn(LN(x)) --------------------------------
    xn = _layernorm(x, sa_g_ref[...], sa_b_ref[...])
    qkv = jnp.dot(xn, sa_wqkv_ref[...],
                  preferred_element_type=jnp.float32) + sa_bqkv_ref[...]
    attn = _mha_heads(qkv[:, 0:D_MODEL],
                      qkv[:, D_MODEL:2 * D_MODEL],
                      qkv[:, 2 * D_MODEL:3 * D_MODEL], tbias)
    x = x + jnp.dot(attn, sa_wo_ref[...],
                    preferred_element_type=jnp.float32) + sa_bo_ref[...]

    # ---- residual 1: x = x + CrossAttn(LN(x), enc) ---------------------------
    xn = _layernorm(x, ca_g_ref[...], ca_b_ref[...])
    q = jnp.dot(xn, ca_wq_ref[...],
                preferred_element_type=jnp.float32) + ca_bq_ref[...]
    kv = jnp.dot(enc, ca_wkv_ref[...],
                 preferred_element_type=jnp.float32) + ca_bkv_ref[...]
    attn = _mha_heads(q, kv[:, 0:D_MODEL], kv[:, D_MODEL:2 * D_MODEL], sbias)
    x = x + jnp.dot(attn, ca_wo_ref[...],
                    preferred_element_type=jnp.float32) + ca_bo_ref[...]

    # ---- residual 2: x = x + FFN(LN(x)) --------------------------------------
    xn = _layernorm(x, ff_g_ref[...], ff_b_ref[...])
    h = jnp.dot(xn, ff_w1_ref[...],
                preferred_element_type=jnp.float32) + ff_b1_ref[...]
    h = jnp.maximum(h, 0.0)
    x = x + jnp.dot(h, ff_w2_ref[...],
                    preferred_element_type=jnp.float32) + ff_b2_ref[...]

    o_ref[0] = x.astype(o_ref.dtype)


# -----------------------------------------------------------------------------
# pallas_call wrapper
# -----------------------------------------------------------------------------
def decoder_block_forward(params, x, encoder_output, src_mask, target_mask):
    """Mirrors DecoderBlock.forward (pre-norm residuals, dropout = identity).

    x:              [B, S_tgt, D]
    encoder_output: [B, S_src, D]
    src_mask:       [B, 1, S_tgt, S_src]   (1 = keep, 0 = masked)
    target_mask:    [B, 1, S_tgt, S_tgt]
    """
    B, S_tgt, D = x.shape
    S_src = encoder_output.shape[1]

    # Additive attention bias computed once in the wrapper (0 keep / -1e9 mask)
    # -> no compare/select inside the kernel, and it is shared across heads.
    tgt_bias = (target_mask[:, 0].astype(jnp.float32) - 1.0) * 1e9
    src_bias = (src_mask[:, 0].astype(jnp.float32) - 1.0) * 1e9

    sa, ca, ff = params["self"], params["cross"], params["ffn"]
    weights = (sa["wqkv"], sa["bqkv"], sa["wo"], sa["bo"], sa["gamma"], sa["beta"],
               ca["wq"], ca["bq"], ca["wkv"], ca["bkv"], ca["wo"], ca["bo"],
               ca["gamma"], ca["beta"],
               ff["w1"], ff["b1"], ff["w2"], ff["b2"], ff["gamma"], ff["beta"])

    x_spec = pl.BlockSpec((1, S_tgt, D), lambda b: (b, 0, 0))
    enc_spec = pl.BlockSpec((1, S_src, D), lambda b: (b, 0, 0))
    tbias_spec = pl.BlockSpec((1, S_tgt, S_tgt), lambda b: (b, 0, 0))
    sbias_spec = pl.BlockSpec((1, S_tgt, S_src), lambda b: (b, 0, 0))
    w_specs = [pl.BlockSpec(w.shape, lambda b: (0, 0)) for w in weights]

    return pl.pallas_call(
        _decoder_block_kernel,
        out_shape=jax.ShapeDtypeStruct((B, S_tgt, D), x.dtype),
        grid=(B,),
        in_specs=[x_spec, enc_spec, tbias_spec, sbias_spec] + w_specs,
        out_specs=x_spec,
        compiler_params=pltpu.CompilerParams(dimension_semantics=("parallel",)),
    )(x, encoder_output, tgt_bias, src_bias, *weights)


# -----------------------------------------------------------------------------
# deterministic parameter init (QKV / KV packed)
# -----------------------------------------------------------------------------
def init_params(key):
    keys = iter(jax.random.split(key, 64))

    def linear(d_in, d_out):
        w = jax.random.normal(next(keys), (d_in, d_out), jnp.float32) / np.sqrt(d_in)
        b = 0.1 * jax.random.normal(next(keys), (1, d_out), jnp.float32)
        return w, b

    def ln():
        gamma = 1.0 + 0.1 * jax.random.normal(next(keys), (1, D_MODEL), jnp.float32)
        beta = 0.1 * jax.random.normal(next(keys), (1, D_MODEL), jnp.float32)
        return gamma, beta

    def self_attn_params():
        wq, bq = linear(D_MODEL, D_MODEL)
        wk, bk = linear(D_MODEL, D_MODEL)
        wv, bv = linear(D_MODEL, D_MODEL)
        wo, bo = linear(D_MODEL, D_MODEL)
        gamma, beta = ln()
        return dict(wqkv=jnp.concatenate([wq, wk, wv], axis=1),   # (D, 3D)
                    bqkv=jnp.concatenate([bq, bk, bv], axis=1),   # (1, 3D)
                    wo=wo, bo=bo, gamma=gamma, beta=beta)

    def cross_attn_params():
        wq, bq = linear(D_MODEL, D_MODEL)
        wk, bk = linear(D_MODEL, D_MODEL)
        wv, bv = linear(D_MODEL, D_MODEL)
        wo, bo = linear(D_MODEL, D_MODEL)
        gamma, beta = ln()
        return dict(wq=wq, bq=bq,
                    wkv=jnp.concatenate([wk, wv], axis=1),        # (D, 2D)
                    bkv=jnp.concatenate([bk, bv], axis=1),        # (1, 2D)
                    wo=wo, bo=bo, gamma=gamma, beta=beta)

    def ffn_params():
        w1, b1 = linear(D_MODEL, D_FF)
        w2, b2 = linear(D_FF, D_MODEL)
        gamma, beta = ln()
        return dict(w1=w1, b1=b1, w2=w2, b2=b2, gamma=gamma, beta=beta)

    return dict(self=self_attn_params(), cross=cross_attn_params(),
                ffn=ffn_params())


# -----------------------------------------------------------------------------
# pure-JAX reference (for correctness check)
# -----------------------------------------------------------------------------
def _ref_ln(x, g, b):
    mu = jnp.mean(x, axis=-1, keepdims=True)
    var = jnp.mean((x - mu) ** 2, axis=-1, keepdims=True)
    return g * (x - mu) / jnp.sqrt(var + EPS) + b


def _ref_attn(x, kv_in, mask, p, is_self):
    """Pre-norm residual attention, matching the PyTorch module:
    x + MHA(norm(x), k_in, v_in).  For self-attention k_in = v_in = norm(x)
    (the residual lambda passes norm(x) as q, k AND v); for cross-attention
    k_in = v_in = encoder_output (un-normalized)."""
    B, S_q, D = x.shape
    xn = _ref_ln(x, p["gamma"], p["beta"])
    if is_self:
        wq, wk, wv = jnp.split(p["wqkv"], 3, axis=1)
        bq, bk, bv = jnp.split(p["bqkv"], 3, axis=1)
        k_in = v_in = xn
    else:
        wq, bq = p["wq"], p["bq"]
        wk, wv = jnp.split(p["wkv"], 2, axis=1)
        bk, bv = jnp.split(p["bkv"], 2, axis=1)
        k_in = v_in = kv_in
    S_kv = k_in.shape[1]
    q = xn @ wq + bq
    k = k_in @ wk + bk
    v = v_in @ wv + bv
    q = q.reshape(B, S_q, N_HEADS, D_HEAD).transpose(0, 2, 1, 3)
    k = k.reshape(B, S_kv, N_HEADS, D_HEAD).transpose(0, 2, 1, 3)
    v = v.reshape(B, S_kv, N_HEADS, D_HEAD).transpose(0, 2, 1, 3)
    s = jnp.einsum("bhqd,bhkd->bhqk", q, k) / np.sqrt(D_HEAD)
    s = jnp.where(mask[:, None] == 0.0, -1e9, s)          # PyTorch masked_fill
    a = jax.nn.softmax(s, axis=-1)
    o = jnp.einsum("bhqk,bhkd->bhqd", a, v).transpose(0, 2, 1, 3).reshape(B, S_q, D)
    return x + (o @ p["wo"] + p["bo"])


def _ref_ffn(x, p):
    xn = _ref_ln(x, p["gamma"], p["beta"])
    h = jnp.maximum(xn @ p["w1"] + p["b1"], 0.0)
    return x + (h @ p["w2"] + p["b2"])


def reference_forward(params, x, enc, src_mask, tgt_mask):
    x = _ref_attn(x, x, tgt_mask[:, 0].astype(jnp.float32), params["self"], True)
    x = _ref_attn(x, enc, src_mask[:, 0].astype(jnp.float32), params["cross"], False)
    x = _ref_ffn(x, params["ffn"])
    return x


# -----------------------------------------------------------------------------
if __name__ == "__main__":
    B, S_TGT, S_SRC = 2, 8, 8

    key = jax.random.PRNGKey(0)
    k_params, k_x, k_enc = jax.random.split(key, 3)
    params = init_params(k_params)

    x = jax.random.normal(k_x, (B, S_TGT, D_MODEL), jnp.float32)
    encoder_output = jax.random.normal(k_enc, (B, S_SRC, D_MODEL), jnp.float32)

    # causal target mask, all-ones source mask (PyTorch-style [B, 1, Sq, Skv])
    target_mask = jnp.broadcast_to(
        jnp.tril(jnp.ones((S_TGT, S_TGT), jnp.float32)), (B, 1, S_TGT, S_TGT))
    src_mask = jnp.ones((B, 1, S_TGT, S_SRC), jnp.float32)

    out = decoder_block_forward(params, x, encoder_output, src_mask, target_mask)
    out = jax.block_until_ready(out)

    ref = jax.block_until_ready(
        reference_forward(params, x, encoder_output, src_mask, target_mask))
    np.testing.assert_allclose(np.asarray(out), np.asarray(ref),
                               rtol=1e-3, atol=1e-3)
    print("KERNEL_OK")
</pallas_src>

<mosaic_0001>
module attributes {stable_mosaic.version = 11 : i64} {
  func.func @_decoder_block_kernel(%arg0: i32, %arg1: memref<1x8x32xf32, #tpu.memory_space<vmem>>, %arg2: memref<1x8x32xf32, #tpu.memory_space<vmem>>, %arg3: memref<1x8x8xf32, #tpu.memory_space<vmem>>, %arg4: memref<1x8x8xf32, #tpu.memory_space<vmem>>, %arg5: memref<32x96xf32, #tpu.memory_space<vmem>>, %arg6: memref<1x96xf32, #tpu.memory_space<vmem>>, %arg7: memref<32x32xf32, #tpu.memory_space<vmem>>, %arg8: memref<1x32xf32, #tpu.memory_space<vmem>>, %arg9: memref<1x32xf32, #tpu.memory_space<vmem>>, %arg10: memref<1x32xf32, #tpu.memory_space<vmem>>, %arg11: memref<32x32xf32, #tpu.memory_space<vmem>>, %arg12: memref<1x32xf32, #tpu.memory_space<vmem>>, %arg13: memref<32x64xf32, #tpu.memory_space<vmem>>, %arg14: memref<1x64xf32, #tpu.memory_space<vmem>>, %arg15: memref<32x32xf32, #tpu.memory_space<vmem>>, %arg16: memref<1x32xf32, #tpu.memory_space<vmem>>, %arg17: memref<1x32xf32, #tpu.memory_space<vmem>>, %arg18: memref<1x32xf32, #tpu.memory_space<vmem>>, %arg19: memref<32x64xf32, #tpu.memory_space<vmem>>, %arg20: memref<1x64xf32, #tpu.memory_space<vmem>>, %arg21: memref<64x32xf32, #tpu.memory_space<vmem>>, %arg22: memref<1x32xf32, #tpu.memory_space<vmem>>, %arg23: memref<1x32xf32, #tpu.memory_space<vmem>>, %arg24: memref<1x32xf32, #tpu.memory_space<vmem>>, %arg25: memref<1x8x32xf32, #tpu.memory_space<vmem>>) attributes {dimension_semantics = [#tpu.dimension_semantics<parallel>], iteration_bounds = array<i64: 2>, scalar_prefetch = 0 : i64, scratch_operands = 0 : i64, tpu.core_type = #tpu.core_type<tc>, window_params = [{transform_indices = @transform_0, window_bounds = array<i64: 1, 8, 32>}, {transform_indices = @transform_1, window_bounds = array<i64: 1, 8, 32>}, {transform_indices = @transform_2, window_bounds = array<i64: 1, 8, 8>}, {transform_indices = @transform_3, window_bounds = array<i64: 1, 8, 8>}, {pipeline_mode = #tpu.pipeline_mode<synchronous>, transform_indices = @transform_4, window_bounds = array<i64: 32, 96>}, {pipeline_mode = #tpu.pipeline_mode<synchronous>, transform_indices = @transform_5, window_bounds = array<i64: 1, 96>}, {pipeline_mode = #tpu.pipeline_mode<synchronous>, transform_indices = @transform_6, window_bounds = array<i64: 32, 32>}, {pipeline_mode = #tpu.pipeline_mode<synchronous>, transform_indices = @transform_7, window_bounds = array<i64: 1, 32>}, {pipeline_mode = #tpu.pipeline_mode<synchronous>, transform_indices = @transform_8, window_bounds = array<i64: 1, 32>}, {pipeline_mode = #tpu.pipeline_mode<synchronous>, transform_indices = @transform_9, window_bounds = array<i64: 1, 32>}, {pipeline_mode = #tpu.pipeline_mode<synchronous>, transform_indices = @transform_10, window_bounds = array<i64: 32, 32>}, {pipeline_mode = #tpu.pipeline_mode<synchronous>, transform_indices = @transform_11, window_bounds = array<i64: 1, 32>}, {pipeline_mode = #tpu.pipeline_mode<synchronous>, transform_indices = @transform_12, window_bounds = array<i64: 32, 64>}, {pipeline_mode = #tpu.pipeline_mode<synchronous>, transform_indices = @transform_13, window_bounds = array<i64: 1, 64>}, {pipeline_mode = #tpu.pipeline_mode<synchronous>, transform_indices = @transform_14, window_bounds = array<i64: 32, 32>}, {pipeline_mode = #tpu.pipeline_mode<synchronous>, transform_indices = @transform_15, window_bounds = array<i64: 1, 32>}, {pipeline_mode = #tpu.pipeline_mode<synchronous>, transform_indices = @transform_16, window_bounds = array<i64: 1, 32>}, {pipeline_mode = #tpu.pipeline_mode<synchronous>, transform_indices = @transform_17, window_bounds = array<i64: 1, 32>}, {pipeline_mode = #tpu.pipeline_mode<synchronous>, transform_indices = @transform_18, window_bounds = array<i64: 32, 64>}, {pipeline_mode = #tpu.pipeline_mode<synchronous>, transform_indices = @transform_19, window_bounds = array<i64: 1, 64>}, {pipeline_mode = #tpu.pipeline_mode<synchronous>, transform_indices = @transform_20, window_bounds = array<i64: 64, 32>}, {pipeline_mode = #tpu.pipeline_mode<synchronous>, transform_indices = @transform_21, window_bounds = array<i64: 1, 32>}, {pipeline_mode = #tpu.pipeline_mode<synchronous>, transform_indices = @transform_22, window_bounds = array<i64: 1, 32>}, {pipeline_mode = #tpu.pipeline_mode<synchronous>, transform_indices = @transform_23, window_bounds = array<i64: 1, 32>}, {transform_indices = @transform_24, window_bounds = array<i64: 1, 8, 32>}]} {
    %c0 = arith.constant 0 : index
    %c0_0 = arith.constant 0 : index
    %c0_1 = arith.constant 0 : index
    %0 = vector.load %arg1[%c0, %c0_0, %c0_1] : memref<1x8x32xf32, #tpu.memory_space<vmem>>, vector<1x8x32xf32>
    %1 = vector.shape_cast %0 : vector<1x8x32xf32> to vector<8x32xf32>
    %c0_2 = arith.constant 0 : index
    %c0_3 = arith.constant 0 : index
    %c0_4 = arith.constant 0 : index
    %2 = vector.load %arg2[%c0_2, %c0_3, %c0_4] : memref<1x8x32xf32, #tpu.memory_space<vmem>>, vector<1x8x32xf32>
    %3 = vector.shape_cast %2 : vector<1x8x32xf32> to vector<8x32xf32>
    %c0_5 = arith.constant 0 : index
    %c0_6 = arith.constant 0 : index
    %c0_7 = arith.constant 0 : index
    %4 = vector.load %arg3[%c0_5, %c0_6, %c0_7] : memref<1x8x8xf32, #tpu.memory_space<vmem>>, vector<1x8x8xf32>
    %5 = vector.shape_cast %4 : vector<1x8x8xf32> to vector<8x8xf32>
    %c0_8 = arith.constant 0 : index
    %c0_9 = arith.constant 0 : index
    %c0_10 = arith.constant 0 : index
    %6 = vector.load %arg4[%c0_8, %c0_9, %c0_10] : memref<1x8x8xf32, #tpu.memory_space<vmem>>, vector<1x8x8xf32>
    %7 = vector.shape_cast %6 : vector<1x8x8xf32> to vector<8x8xf32>
    %c0_11 = arith.constant 0 : index
    %c0_12 = arith.constant 0 : index
    %8 = vector.load %arg9[%c0_11, %c0_12] : memref<1x32xf32, #tpu.memory_space<vmem>>, vector<1x32xf32>
    %c0_13 = arith.constant 0 : index
    %c0_14 = arith.constant 0 : index
    %9 = vector.load %arg10[%c0_13, %c0_14] : memref<1x32xf32, #tpu.memory_space<vmem>>, vector<1x32xf32>
    %cst = arith.constant dense<0.000000e+00> : vector<8xf32>
    %10 = vector.multi_reduction <add>, %1, %cst [1] : vector<8x32xf32> to vector<8xf32>
    %11 = vector.shape_cast %10 : vector<8xf32> to vector<8x1xf32>
    %cst_15 = arith.constant 3.200000e+01 : f32
    %12 = vector.broadcast %cst_15 : f32 to vector<8x1xf32>
    %13 = arith.divf %11, %12 : vector<8x1xf32>
    %14 = vector.broadcast %13 : vector<8x1xf32> to vector<8x32xf32>
    %15 = arith.subf %1, %14 : vector<8x32xf32>
    %16 = arith.mulf %15, %15 : vector<8x32xf32>
    %cst_16 = arith.constant dense<0.000000e+00> : vector<8xf32>
    %17 = vector.multi_reduction <add>, %16, %cst_16 [1] : vector<8x32xf32> to vector<8xf32>
    %18 = vector.shape_cast %17 : vector<8xf32> to vector<8x1xf32>
    %cst_17 = arith.constant 3.200000e+01 : f32
    %19 = vector.broadcast %cst_17 : f32 to vector<8x1xf32>
    %20 = arith.divf %18, %19 : vector<8x1xf32>
    %21 = vector.broadcast %13 : vector<8x1xf32> to vector<8x32xf32>
    %22 = arith.subf %1, %21 : vector<8x32xf32>
    %23 = vector.broadcast %8 : vector<1x32xf32> to vector<8x32xf32>
    %24 = arith.mulf %23, %22 : vector<8x32xf32>
    %cst_18 = arith.constant 9.99999997E-7 : f32
    %25 = vector.broadcast %cst_18 : f32 to vector<8x1xf32>
    %26 = arith.addf %20, %25 : vector<8x1xf32>
    %27 = math.rsqrt %26 : vector<8x1xf32>
    %28 = vector.broadcast %27 : vector<8x1xf32> to vector<8x32xf32>
    %29 = arith.mulf %24, %28 : vector<8x32xf32>
    %30 = vector.broadcast %9 : vector<1x32xf32> to vector<8x32xf32>
    %31 = arith.addf %29, %30 : vector<8x32xf32>
    %c0_19 = arith.constant 0 : index
    %c0_20 = arith.constant 0 : index
    %32 = vector.load %arg5[%c0_19, %c0_20] : memref<32x96xf32, #tpu.memory_space<vmem>>, vector<32x96xf32>
    %cst_21 = arith.constant dense<0.000000e+00> : vector<8x96xf32>
    %33 = tpu.matmul %31, %32, %cst_21 {dimension_numbers = #tpu.dot_dimension_numbers<[1], [0], [0], [1], [0, 0, 1, 1], [], []>, precision = #tpu.contract_precision<fp32>} : vector<8x32xf32>, vector<32x96xf32>, vector<8x96xf32> -> vector<8x96xf32>
    %c0_22 = arith.constant 0 : index
    %c0_23 = arith.constant 0 : index
    %34 = vector.load %arg6[%c0_22, %c0_23] : memref<1x96xf32, #tpu.memory_space<vmem>>, vector<1x96xf32>
    %35 = vector.broadcast %34 : vector<1x96xf32> to vector<8x96xf32>
    %36 = arith.addf %33, %35 : vector<8x96xf32>
    %37 = vector.extract_strided_slice %36 {offsets = [0, 0], sizes = [8, 32], strides = [1, 1]} : vector<8x96xf32> to vector<8x32xf32>
    %38 = vector.extract_strided_slice %36 {offsets = [0, 32], sizes = [8, 32], strides = [1, 1]} : vector<8x96xf32> to vector<8x32xf32>
    %39 = vector.extract_strided_slice %36 {offsets = [0, 64], sizes = [8, 32], strides = [1, 1]} : vector<8x96xf32> to vector<8x32xf32>
    %cst_24 = arith.constant 8.000000e+00 : f32
    %40 = math.sqrt %cst_24 : f32
    %cst_25 = arith.constant 1.000000e+00 : f32
    %41 = arith.divf %cst_25, %40 : f32
    %42 = vector.extract_strided_slice %37 {offsets = [0, 0], sizes = [8, 8], strides = [1, 1]} : vector<8x32xf32> to vector<8x8xf32>
    %43 = vector.extract_strided_slice %38 {offsets = [0, 0], sizes = [8, 8], strides = [1, 1]} : vector<8x32xf32> to vector<8x8xf32>
    %44 = vector.extract_strided_slice %39 {offsets = [0, 0], sizes = [8, 8], strides = [1, 1]} : vector<8x32xf32> to vector<8x8xf32>
    %cst_26 = arith.constant dense<0.000000e+00> : vector<8x8xf32>
    %45 = tpu.matmul %42, %43, %cst_26 {dimension_numbers = #tpu.dot_dimension_numbers<[1], [1], [0], [0], [0, 0, 1, 0], [], []>, precision = #tpu.contract_precision<fp32>} : vector<8x8xf32>, vector<8x8xf32>, vector<8x8xf32> -> vector<8x8xf32>
    %46 = vector.broadcast %41 : f32 to vector<8x8xf32>
    %47 = arith.mulf %45, %46 : vector<8x8xf32>
    %48 = arith.addf %47, %5 : vector<8x8xf32>
    %cst_27 = arith.constant dense<0xFF800000> : vector<8xf32>
    %49 = vector.multi_reduction <maximumf>, %48, %cst_27 [1] : vector<8x8xf32> to vector<8xf32>
    %50 = vector.shape_cast %49 : vector<8xf32> to vector<8x1xf32>
    %51 = vector.broadcast %50 : vector<8x1xf32> to vector<8x8xf32>
    %52 = arith.subf %48, %51 : vector<8x8xf32>
    %53 = math.exp %52 : vector<8x8xf32>
    %cst_28 = arith.constant dense<0.000000e+00> : vector<8xf32>
    %54 = vector.multi_reduction <add>, %53, %cst_28 [1] : vector<8x8xf32> to vector<8xf32>
    %55 = vector.shape_cast %54 : vector<8xf32> to vector<8x1xf32>
    %56 = vector.broadcast %55 : vector<8x1xf32> to vector<8x8xf32>
    %57 = arith.divf %53, %56 : vector<8x8xf32>
    %cst_29 = arith.constant dense<0.000000e+00> : vector<8x8xf32>
    %58 = tpu.matmul %57, %44, %cst_29 {dimension_numbers = #tpu.dot_dimension_numbers<[1], [0], [0], [1], [0, 0, 1, 1], [], []>, precision = #tpu.contract_precision<fp32>} : vector<8x8xf32>, vector<8x8xf32>, vector<8x8xf32> -> vector<8x8xf32>
    %59 = vector.extract_strided_slice %37 {offsets = [0, 8], sizes = [8, 8], strides = [1, 1]} : vector<8x32xf32> to vector<8x8xf32>
    %60 = vector.extract_strided_slice %38 {offsets = [0, 8], sizes = [8, 8], strides = [1, 1]} : vector<8x32xf32> to vector<8x8xf32>
    %61 = vector.extract_strided_slice %39 {offsets = [0, 8], sizes = [8, 8], strides = [1, 1]} : vector<8x32xf32> to vector<8x8xf32>
    %cst_30 = arith.constant dense<0.000000e+00> : vector<8x8xf32>
    %62 = tpu.matmul %59, %60, %cst_30 {dimension_numbers = #tpu.dot_dimension_numbers<[1], [1], [0], [0], [0, 0, 1, 0], [], []>, precision = #tpu.contract_precision<fp32>} : vector<8x8xf32>, vector<8x8xf32>, vector<8x8xf32> -> vector<8x8xf32>
    %63 = vector.broadcast %41 : f32 to vector<8x8xf32>
    %64 = arith.mulf %62, %63 : vector<8x8xf32>
    %65 = arith.addf %64, %5 : vector<8x8xf32>
    %cst_31 = arith.constant dense<0xFF800000> : vector<8xf32>
    %66 = vector.multi_reduction <maximumf>, %65, %cst_31 [1] : vector<8x8xf32> to vector<8xf32>
    %67 = vector.shape_cast %66 : vector<8xf32> to vector<8x1xf32>
    %68 = vector.broadcast %67 : vector<8x1xf32> to vector<8x8xf32>
    %69 = arith.subf %65, %68 : vector<8x8xf32>
    %70 = math.exp %69 : vector<8x8xf32>
    %cst_32 = arith.constant dense<0.000000e+00> : vector<8xf32>
    %71 = vector.multi_reduction <add>, %70, %cst_32 [1] : vector<8x8xf32> to vector<8xf32>
    %72 = vector.shape_cast %71 : vector<8xf32> to vector<8x1xf32>
    %73 = vector.broadcast %72 : vector<8x1xf32> to vector<8x8xf32>
    %74 = arith.divf %70, %73 : vector<8x8xf32>
    %cst_33 = arith.constant dense<0.000000e+00> : vector<8x8xf32>
    %75 = tpu.matmul %74, %61, %cst_33 {dimension_numbers = #tpu.dot_dimension_numbers<[1], [0], [0], [1], [0, 0, 1, 1], [], []>, precision = #tpu.contract_precision<fp32>} : vector<8x8xf32>, vector<8x8xf32>, vector<8x8xf32> -> vector<8x8xf32>
    %76 = vector.extract_strided_slice %37 {offsets = [0, 16], sizes = [8, 8], strides = [1, 1]} : vector<8x32xf32> to vector<8x8xf32>
    %77 = vector.extract_strided_slice %38 {offsets = [0, 16], sizes = [8, 8], strides = [1, 1]} : vector<8x32xf32> to vector<8x8xf32>
    %78 = vector.extract_strided_slice %39 {offsets = [0, 16], sizes = [8, 8], strides = [1, 1]} : vector<8x32xf32> to vector<8x8xf32>
    %cst_34 = arith.constant dense<0.000000e+00> : vector<8x8xf32>
    %79 = tpu.matmul %76, %77, %cst_34 {dimension_numbers = #tpu.dot_dimension_numbers<[1], [1], [0], [0], [0, 0, 1, 0], [], []>, precision = #tpu.contract_precision<fp32>} : vector<8x8xf32>, vector<8x8xf32>, vector<8x8xf32> -> vector<8x8xf32>
    %80 = vector.broadcast %41 : f32 to vector<8x8xf32>
    %81 = arith.mulf %79, %80 : vector<8x8xf32>
    %82 = arith.addf %81, %5 : vector<8x8xf32>
    %cst_35 = arith.constant dense<0xFF800000> : vector<8xf32>
    %83 = vector.multi_reduction <maximumf>, %82, %cst_35 [1] : vector<8x8xf32> to vector<8xf32>
    %84 = vector.shape_cast %83 : vector<8xf32> to vector<8x1xf32>
    %85 = vector.broadcast %84 : vector<8x1xf32> to vector<8x8xf32>
    %86 = arith.subf %82, %85 : vector<8x8xf32>
    %87 = math.exp %86 : vector<8x8xf32>
    %cst_36 = arith.constant dense<0.000000e+00> : vector<8xf32>
    %88 = vector.multi_reduction <add>, %87, %cst_36 [1] : vector<8x8xf32> to vector<8xf32>
    %89 = vector.shape_cast %88 : vector<8xf32> to vector<8x1xf32>
    %90 = vector.broadcast %89 : vector<8x1xf32> to vector<8x8xf32>
    %91 = arith.divf %87, %90 : vector<8x8xf32>
    %cst_37 = arith.constant dense<0.000000e+00> : vector<8x8xf32>
    %92 = tpu.matmul %91, %78, %cst_37 {dimension_numbers = #tpu.dot_dimension_numbers<[1], [0], [0], [1], [0, 0, 1, 1], [], []>, precision = #tpu.contract_precision<fp32>} : vector<8x8xf32>, vector<8x8xf32>, vector<8x8xf32> -> vector<8x8xf32>
    %93 = vector.extract_strided_slice %37 {offsets = [0, 24], sizes = [8, 8], strides = [1, 1]} : vector<8x32xf32> to vector<8x8xf32>
    %94 = vector.extract_strided_slice %38 {offsets = [0, 24], sizes = [8, 8], strides = [1, 1]} : vector<8x32xf32> to vector<8x8xf32>
    %95 = vector.extract_strided_slice %39 {offsets = [0, 24], sizes = [8, 8], strides = [1, 1]} : vector<8x32xf32> to vector<8x8xf32>
    %cst_38 = arith.constant dense<0.000000e+00> : vector<8x8xf32>
    %96 = tpu.matmul %93, %94, %cst_38 {dimension_numbers = #tpu.dot_dimension_numbers<[1], [1], [0], [0], [0, 0, 1, 0], [], []>, precision = #tpu.contract_precision<fp32>} : vector<8x8xf32>, vector<8x8xf32>, vector<8x8xf32> -> vector<8x8xf32>
    %97 = vector.broadcast %41 : f32 to vector<8x8xf32>
    %98 = arith.mulf %96, %97 : vector<8x8xf32>
    %99 = arith.addf %98, %5 : vector<8x8xf32>
    %cst_39 = arith.constant dense<0xFF800000> : vector<8xf32>
    %100 = vector.multi_reduction <maximumf>, %99, %cst_39 [1] : vector<8x8xf32> to vector<8xf32>
    %101 = vector.shape_cast %100 : vector<8xf32> to vector<8x1xf32>
    %102 = vector.broadcast %101 : vector<8x1xf32> to vector<8x8xf32>
    %103 = arith.subf %99, %102 : vector<8x8xf32>
    %104 = math.exp %103 : vector<8x8xf32>
    %cst_40 = arith.constant dense<0.000000e+00> : vector<8xf32>
    %105 = vector.multi_reduction <add>, %104, %cst_40 [1] : vector<8x8xf32> to vector<8xf32>
    %106 = vector.shape_cast %105 : vector<8xf32> to vector<8x1xf32>
    %107 = vector.broadcast %106 : vector<8x1xf32> to vector<8x8xf32>
    %108 = arith.divf %104, %107 : vector<8x8xf32>
    %cst_41 = arith.constant dense<0.000000e+00> : vector<8x8xf32>
    %109 = tpu.matmul %108, %95, %cst_41 {dimension_numbers = #tpu.dot_dimension_numbers<[1], [0], [0], [1], [0, 0, 1, 1], [], []>, precision = #tpu.contract_precision<fp32>} : vector<8x8xf32>, vector<8x8xf32>, vector<8x8xf32> -> vector<8x8xf32>
    %110 = tpu.concatenate %58, %75, %92, %109 in 1 : vector<8x8xf32>, vector<8x8xf32>, vector<8x8xf32>, vector<8x8xf32> -> vector<8x32xf32>
    %c0_42 = arith.constant 0 : index
    %c0_43 = arith.constant 0 : index
    %111 = vector.load %arg7[%c0_42, %c0_43] : memref<32x32xf32, #tpu.memory_space<vmem>>, vector<32x32xf32>
    %cst_44 = arith.constant dense<0.000000e+00> : vector<8x32xf32>
    %112 = tpu.matmul %110, %111, %cst_44 {dimension_numbers = #tpu.dot_dimension_numbers<[1], [0], [0], [1], [0, 0, 1, 1], [], []>, precision = #tpu.contract_precision<fp32>} : vector<8x32xf32>, vector<32x32xf32>, vector<8x32xf32> -> vector<8x32xf32>
    %113 = arith.addf %1, %112 : vector<8x32xf32>
    %c0_45 = arith.constant 0 : index
    %c0_46 = arith.constant 0 : index
    %114 = vector.load %arg8[%c0_45, %c0_46] : memref<1x32xf32, #tpu.memory_space<vmem>>, vector<1x32xf32>
    %115 = vector.broadcast %114 : vector<1x32xf32> to vector<8x32xf32>
    %116 = arith.addf %113, %115 : vector<8x32xf32>
    %c0_47 = arith.constant 0 : index
    %c0_48 = arith.constant 0 : index
    %117 = vector.load %arg17[%c0_47, %c0_48] : memref<1x32xf32, #tpu.memory_space<vmem>>, vector<1x32xf32>
    %c0_49 = arith.constant 0 : index
    %c0_50 = arith.constant 0 : index
    %118 = vector.load %arg18[%c0_49, %c0_50] : memref<1x32xf32, #tpu.memory_space<vmem>>, vector<1x32xf32>
    %cst_51 = arith.constant dense<0.000000e+00> : vector<8xf32>
    %119 = vector.multi_reduction <add>, %116, %cst_51 [1] : vector<8x32xf32> to vector<8xf32>
    %120 = vector.shape_cast %119 : vector<8xf32> to vector<8x1xf32>
    %cst_52 = arith.constant 3.200000e+01 : f32
    %121 = vector.broadcast %cst_52 : f32 to vector<8x1xf32>
    %122 = arith.divf %120, %121 : vector<8x1xf32>
    %123 = vector.broadcast %122 : vector<8x1xf32> to vector<8x32xf32>
    %124 = arith.subf %116, %123 : vector<8x32xf32>
    %125 = arith.mulf %124, %124 : vector<8x32xf32>
    %cst_53 = arith.constant dense<0.000000e+00> : vector<8xf32>
    %126 = vector.multi_reduction <add>, %125, %cst_53 [1] : vector<8x32xf32> to vector<8xf32>
    %127 = vector.shape_cast %126 : vector<8xf32> to vector<8x1xf32>
    %cst_54 = arith.constant 3.200000e+01 : f32
    %128 = vector.broadcast %cst_54 : f32 to vector<8x1xf32>
    %129 = arith.divf %127, %128 : vector<8x1xf32>
    %130 = vector.broadcast %122 : vector<8x1xf32> to vector<8x32xf32>
    %131 = arith.subf %116, %130 : vector<8x32xf32>
    %132 = vector.broadcast %117 : vector<1x32xf32> to vector<8x32xf32>
    %133 = arith.mulf %132, %131 : vector<8x32xf32>
    %cst_55 = arith.constant 9.99999997E-7 : f32
    %134 = vector.broadcast %cst_55 : f32 to vector<8x1xf32>
    %135 = arith.addf %129, %134 : vector<8x1xf32>
    %136 = math.rsqrt %135 : vector<8x1xf32>
    %137 = vector.broadcast %136 : vector<8x1xf32> to vector<8x32xf32>
    %138 = arith.mulf %133, %137 : vector<8x32xf32>
    %139 = vector.broadcast %118 : vector<1x32xf32> to vector<8x32xf32>
    %140 = arith.addf %138, %139 : vector<8x32xf32>
    %c0_56 = arith.constant 0 : index
    %c0_57 = arith.constant 0 : index
    %141 = vector.load %arg11[%c0_56, %c0_57] : memref<32x32xf32, #tpu.memory_space<vmem>>, vector<32x32xf32>
    %cst_58 = arith.constant dense<0.000000e+00> : vector<8x32xf32>
    %142 = tpu.matmul %140, %141, %cst_58 {dimension_numbers = #tpu.dot_dimension_numbers<[1], [0], [0], [1], [0, 0, 1, 1], [], []>, precision = #tpu.contract_precision<fp32>} : vector<8x32xf32>, vector<32x32xf32>, vector<8x32xf32> -> vector<8x32xf32>
    %c0_59 = arith.constant 0 : index
    %c0_60 = arith.constant 0 : index
    %143 = vector.load %arg12[%c0_59, %c0_60] : memref<1x32xf32, #tpu.memory_space<vmem>>, vector<1x32xf32>
    %144 = vector.broadcast %143 : vector<1x32xf32> to vector<8x32xf32>
    %145 = arith.addf %142, %144 : vector<8x32xf32>
    %c0_61 = arith.constant 0 : index
    %c0_62 = arith.constant 0 : index
    %146 = vector.load %arg13[%c0_61, %c0_62] : memref<32x64xf32, #tpu.memory_space<vmem>>, vector<32x64xf32>
    %cst_63 = arith.constant dense<0.000000e+00> : vector<8x64xf32>
    %147 = tpu.matmul %3, %146, %cst_63 {dimension_numbers = #tpu.dot_dimension_numbers<[1], [0], [0], [1], [0, 0, 1, 1], [], []>, precision = #tpu.contract_precision<fp32>} : vector<8x32xf32>, vector<32x64xf32>, vector<8x64xf32> -> vector<8x64xf32>
    %c0_64 = arith.constant 0 : index
    %c0_65 = arith.constant 0 : index
    %148 = vector.load %arg14[%c0_64, %c0_65] : memref<1x64xf32, #tpu.memory_space<vmem>>, vector<1x64xf32>
    %149 = vector.broadcast %148 : vector<1x64xf32> to vector<8x64xf32>
    %150 = arith.addf %147, %149 : vector<8x64xf32>
    %151 = vector.extract_strided_slice %150 {offsets = [0, 0], sizes = [8, 32], strides = [1, 1]} : vector<8x64xf32> to vector<8x32xf32>
    %152 = vector.extract_strided_slice %150 {offsets = [0, 32], sizes = [8, 32], strides = [1, 1]} : vector<8x64xf32> to vector<8x32xf32>
    %cst_66 = arith.constant 8.000000e+00 : f32
    %153 = math.sqrt %cst_66 : f32
    %cst_67 = arith.constant 1.000000e+00 : f32
    %154 = arith.divf %cst_67, %153 : f32
    %155 = vector.extract_strided_slice %145 {offsets = [0, 0], sizes = [8, 8], strides = [1, 1]} : vector<8x32xf32> to vector<8x8xf32>
    %156 = vector.extract_strided_slice %151 {offsets = [0, 0], sizes = [8, 8], strides = [1, 1]} : vector<8x32xf32> to vector<8x8xf32>
    %157 = vector.extract_strided_slice %152 {offsets = [0, 0], sizes = [8, 8], strides = [1, 1]} : vector<8x32xf32> to vector<8x8xf32>
    %cst_68 = arith.constant dense<0.000000e+00> : vector<8x8xf32>
    %158 = tpu.matmul %155, %156, %cst_68 {dimension_numbers = #tpu.dot_dimension_numbers<[1], [1], [0], [0], [0, 0, 1, 0], [], []>, precision = #tpu.contract_precision<fp32>} : vector<8x8xf32>, vector<8x8xf32>, vector<8x8xf32> -> vector<8x8xf32>
    %159 = vector.broadcast %154 : f32 to vector<8x8xf32>
    %160 = arith.mulf %158, %159 : vector<8x8xf32>
    %161 = arith.addf %160, %7 : vector<8x8xf32>
    %cst_69 = arith.constant dense<0xFF800000> : vector<8xf32>
    %162 = vector.multi_reduction <maximumf>, %161, %cst_69 [1] : vector<8x8xf32> to vector<8xf32>
    %163 = vector.shape_cast %162 : vector<8xf32> to vector<8x1xf32>
    %164 = vector.broadcast %163 : vector<8x1xf32> to vector<8x8xf32>
    %165 = arith.subf %161, %164 : vector<8x8xf32>
    %166 = math.exp %165 : vector<8x8xf32>
    %cst_70 = arith.constant dense<0.000000e+00> : vector<8xf32>
    %167 = vector.multi_reduction <add>, %166, %cst_70 [1] : vector<8x8xf32> to vector<8xf32>
    %168 = vector.shape_cast %167 : vector<8xf32> to vector<8x1xf32>
    %169 = vector.broadcast %168 : vector<8x1xf32> to vector<8x8xf32>
    %170 = arith.divf %166, %169 : vector<8x8xf32>
    %cst_71 = arith.constant dense<0.000000e+00> : vector<8x8xf32>
    %171 = tpu.matmul %170, %157, %cst_71 {dimension_numbers = #tpu.dot_dimension_numbers<[1], [0], [0], [1], [0, 0, 1, 1], [], []>, precision = #tpu.contract_precision<fp32>} : vector<8x8xf32>, vector<8x8xf32>, vector<8x8xf32> -> vector<8x8xf32>
    %172 = vector.extract_strided_slice %145 {offsets = [0, 8], sizes = [8, 8], strides = [1, 1]} : vector<8x32xf32> to vector<8x8xf32>
    %173 = vector.extract_strided_slice %151 {offsets = [0, 8], sizes = [8, 8], strides = [1, 1]} : vector<8x32xf32> to vector<8x8xf32>
    %174 = vector.extract_strided_slice %152 {offsets = [0, 8], sizes = [8, 8], strides = [1, 1]} : vector<8x32xf32> to vector<8x8xf32>
    %cst_72 = arith.constant dense<0.000000e+00> : vector<8x8xf32>
    %175 = tpu.matmul %172, %173, %cst_72 {dimension_numbers = #tpu.dot_dimension_numbers<[1], [1], [0], [0], [0, 0, 1, 0], [], []>, precision = #tpu.contract_precision<fp32>} : vector<8x8xf32>, vector<8x8xf32>, vector<8x8xf32> -> vector<8x8xf32>
    %176 = vector.broadcast %154 : f32 to vector<8x8xf32>
    %177 = arith.mulf %175, %176 : vector<8x8xf32>
    %178 = arith.addf %177, %7 : vector<8x8xf32>
    %cst_73 = arith.constant dense<0xFF800000> : vector<8xf32>
    %179 = vector.multi_reduction <maximumf>, %178, %cst_73 [1] : vector<8x8xf32> to vector<8xf32>
    %180 = vector.shape_cast %179 : vector<8xf32> to vector<8x1xf32>
    %181 = vector.broadcast %180 : vector<8x1xf32> to vector<8x8xf32>
    %182 = arith.subf %178, %181 : vector<8x8xf32>
    %183 = math.exp %182 : vector<8x8xf32>
    %cst_74 = arith.constant dense<0.000000e+00> : vector<8xf32>
    %184 = vector.multi_reduction <add>, %183, %cst_74 [1] : vector<8x8xf32> to vector<8xf32>
    %185 = vector.shape_cast %184 : vector<8xf32> to vector<8x1xf32>
    %186 = vector.broadcast %185 : vector<8x1xf32> to vector<8x8xf32>
    %187 = arith.divf %183, %186 : vector<8x8xf32>
    %cst_75 = arith.constant dense<0.000000e+00> : vector<8x8xf32>
    %188 = tpu.matmul %187, %174, %cst_75 {dimension_numbers = #tpu.dot_dimension_numbers<[1], [0], [0], [1], [0, 0, 1, 1], [], []>, precision = #tpu.contract_precision<fp32>} : vector<8x8xf32>, vector<8x8xf32>, vector<8x8xf32> -> vector<8x8xf32>
    %189 = vector.extract_strided_slice %145 {offsets = [0, 16], sizes = [8, 8], strides = [1, 1]} : vector<8x32xf32> to vector<8x8xf32>
    %190 = vector.extract_strided_slice %151 {offsets = [0, 16], sizes = [8, 8], strides = [1, 1]} : vector<8x32xf32> to vector<8x8xf32>
    %191 = vector.extract_strided_slice %152 {offsets = [0, 16], sizes = [8, 8], strides = [1, 1]} : vector<8x32xf32> to vector<8x8xf32>
    %cst_76 = arith.constant dense<0.000000e+00> : vector<8x8xf32>
    %192 = tpu.matmul %189, %190, %cst_76 {dimension_numbers = #tpu.dot_dimension_numbers<[1], [1], [0], [0], [0, 0, 1, 0], [], []>, precision = #tpu.contract_precision<fp32>} : vector<8x8xf32>, vector<8x8xf32>, vector<8x8xf32> -> vector<8x8xf32>
    %193 = vector.broadcast %154 : f32 to vector<8x8xf32>
    %194 = arith.mulf %192, %193 : vector<8x8xf32>
    %195 = arith.addf %194, %7 : vector<8x8xf32>
    %cst_77 = arith.constant dense<0xFF800000> : vector<8xf32>
    %196 = vector.multi_reduction <maximumf>, %195, %cst_77 [1] : vector<8x8xf32> to vector<8xf32>
    %197 = vector.shape_cast %196 : vector<8xf32> to vector<8x1xf32>
    %198 = vector.broadcast %197 : vector<8x1xf32> to vector<8x8xf32>
    %199 = arith.subf %195, %198 : vector<8x8xf32>
    %200 = math.exp %199 : vector<8x8xf32>
    %cst_78 = arith.constant dense<0.000000e+00> : vector<8xf32>
    %201 = vector.multi_reduction <add>, %200, %cst_78 [1] : vector<8x8xf32> to vector<8xf32>
    %202 = vector.shape_cast %201 : vector<8xf32> to vector<8x1xf32>
    %203 = vector.broadcast %202 : vector<8x1xf32> to vector<8x8xf32>
    %204 = arith.divf %200, %203 : vector<8x8xf32>
    %cst_79 = arith.constant dense<0.000000e+00> : vector<8x8xf32>
    %205 = tpu.matmul %204, %191, %cst_79 {dimension_numbers = #tpu.dot_dimension_numbers<[1], [0], [0], [1], [0, 0, 1, 1], [], []>, precision = #tpu.contract_precision<fp32>} : vector<8x8xf32>, vector<8x8xf32>, vector<8x8xf32> -> vector<8x8xf32>
    %206 = vector.extract_strided_slice %145 {offsets = [0, 24], sizes = [8, 8], strides = [1, 1]} : vector<8x32xf32> to vector<8x8xf32>
    %207 = vector.extract_strided_slice %151 {offsets = [0, 24], sizes = [8, 8], strides = [1, 1]} : vector<8x32xf32> to vector<8x8xf32>
    %208 = vector.extract_strided_slice %152 {offsets = [0, 24], sizes = [8, 8], strides = [1, 1]} : vector<8x32xf32> to vector<8x8xf32>
    %cst_80 = arith.constant dense<0.000000e+00> : vector<8x8xf32>
    %209 = tpu.matmul %206, %207, %cst_80 {dimension_numbers = #tpu.dot_dimension_numbers<[1], [1], [0], [0], [0, 0, 1, 0], [], []>, precision = #tpu.contract_precision<fp32>} : vector<8x8xf32>, vector<8x8xf32>, vector<8x8xf32> -> vector<8x8xf32>
    %210 = vector.broadcast %154 : f32 to vector<8x8xf32>
    %211 = arith.mulf %209, %210 : vector<8x8xf32>
    %212 = arith.addf %211, %7 : vector<8x8xf32>
    %cst_81 = arith.constant dense<0xFF800000> : vector<8xf32>
    %213 = vector.multi_reduction <maximumf>, %212, %cst_81 [1] : vector<8x8xf32> to vector<8xf32>
    %214 = vector.shape_cast %213 : vector<8xf32> to vector<8x1xf32>
    %215 = vector.broadcast %214 : vector<8x1xf32> to vector<8x8xf32>
    %216 = arith.subf %212, %215 : vector<8x8xf32>
    %217 = math.exp %216 : vector<8x8xf32>
    %cst_82 = arith.constant dense<0.000000e+00> : vector<8xf32>
    %218 = vector.multi_reduction <add>, %217, %cst_82 [1] : vector<8x8xf32> to vector<8xf32>
    %219 = vector.shape_cast %218 : vector<8xf32> to vector<8x1xf32>
    %220 = vector.broadcast %219 : vector<8x1xf32> to vector<8x8xf32>
    %221 = arith.divf %217, %220 : vector<8x8xf32>
    %cst_83 = arith.constant dense<0.000000e+00> : vector<8x8xf32>
    %222 = tpu.matmul %221, %208, %cst_83 {dimension_numbers = #tpu.dot_dimension_numbers<[1], [0], [0], [1], [0, 0, 1, 1], [], []>, precision = #tpu.contract_precision<fp32>} : vector<8x8xf32>, vector<8x8xf32>, vector<8x8xf32> -> vector<8x8xf32>
    %223 = tpu.concatenate %171, %188, %205, %222 in 1 : vector<8x8xf32>, vector<8x8xf32>, vector<8x8xf32>, vector<8x8xf32> -> vector<8x32xf32>
    %c0_84 = arith.constant 0 : index
    %c0_85 = arith.constant 0 : index
    %224 = vector.load %arg15[%c0_84, %c0_85] : memref<32x32xf32, #tpu.memory_space<vmem>>, vector<32x32xf32>
    %cst_86 = arith.constant dense<0.000000e+00> : vector<8x32xf32>
    %225 = tpu.matmul %223, %224, %cst_86 {dimension_numbers = #tpu.dot_dimension_numbers<[1], [0], [0], [1], [0, 0, 1, 1], [], []>, precision = #tpu.contract_precision<fp32>} : vector<8x32xf32>, vector<32x32xf32>, vector<8x32xf32> -> vector<8x32xf32>
    %226 = arith.addf %116, %225 : vector<8x32xf32>
    %c0_87 = arith.constant 0 : index
    %c0_88 = arith.constant 0 : index
    %227 = vector.load %arg16[%c0_87, %c0_88] : memref<1x32xf32, #tpu.memory_space<vmem>>, vector<1x32xf32>
    %228 = vector.broadcast %227 : vector<1x32xf32> to vector<8x32xf32>
    %229 = arith.addf %226, %228 : vector<8x32xf32>
    %c0_89 = arith.constant 0 : index
    %c0_90 = arith.constant 0 : index
    %230 = vector.load %arg23[%c0_89, %c0_90] : memref<1x32xf32, #tpu.memory_space<vmem>>, vector<1x32xf32>
    %c0_91 = arith.constant 0 : index
    %c0_92 = arith.constant 0 : index
    %231 = vector.load %arg24[%c0_91, %c0_92] : memref<1x32xf32, #tpu.memory_space<vmem>>, vector<1x32xf32>
    %cst_93 = arith.constant dense<0.000000e+00> : vector<8xf32>
    %232 = vector.multi_reduction <add>, %229, %cst_93 [1] : vector<8x32xf32> to vector<8xf32>
    %233 = vector.shape_cast %232 : vector<8xf32> to vector<8x1xf32>
    %cst_94 = arith.constant 3.200000e+01 : f32
    %234 = vector.broadcast %cst_94 : f32 to vector<8x1xf32>
    %235 = arith.divf %233, %234 : vector<8x1xf32>
    %236 = vector.broadcast %235 : vector<8x1xf32> to vector<8x32xf32>
    %237 = arith.subf %229, %236 : vector<8x32xf32>
    %238 = arith.mulf %237, %237 : vector<8x32xf32>
    %cst_95 = arith.constant dense<0.000000e+00> : vector<8xf32>
    %239 = vector.multi_reduction <add>, %238, %cst_95 [1] : vector<8x32xf32> to vector<8xf32>
    %240 = vector.shape_cast %239 : vector<8xf32> to vector<8x1xf32>
    %cst_96 = arith.constant 3.200000e+01 : f32
    %241 = vector.broadcast %cst_96 : f32 to vector<8x1xf32>
    %242 = arith.divf %240, %241 : vector<8x1xf32>
    %243 = vector.broadcast %235 : vector<8x1xf32> to vector<8x32xf32>
    %244 = arith.subf %229, %243 : vector<8x32xf32>
    %245 = vector.broadcast %230 : vector<1x32xf32> to vector<8x32xf32>
    %246 = arith.mulf %245, %244 : vector<8x32xf32>
    %cst_97 = arith.constant 9.99999997E-7 : f32
    %247 = vector.broadcast %cst_97 : f32 to vector<8x1xf32>
    %248 = arith.addf %242, %247 : vector<8x1xf32>
    %249 = math.rsqrt %248 : vector<8x1xf32>
    %250 = vector.broadcast %249 : vector<8x1xf32> to vector<8x32xf32>
    %251 = arith.mulf %246, %250 : vector<8x32xf32>
    %252 = vector.broadcast %231 : vector<1x32xf32> to vector<8x32xf32>
    %253 = arith.addf %251, %252 : vector<8x32xf32>
    %c0_98 = arith.constant 0 : index
    %c0_99 = arith.constant 0 : index
    %254 = vector.load %arg19[%c0_98, %c0_99] : memref<32x64xf32, #tpu.memory_space<vmem>>, vector<32x64xf32>
    %cst_100 = arith.constant dense<0.000000e+00> : vector<8x64xf32>
    %255 = tpu.matmul %253, %254, %cst_100 {dimension_numbers = #tpu.dot_dimension_numbers<[1], [0], [0], [1], [0, 0, 1, 1], [], []>, precision = #tpu.contract_precision<fp32>} : vector<8x32xf32>, vector<32x64xf32>, vector<8x64xf32> -> vector<8x64xf32>
    %c0_101 = arith.constant 0 : index
    %c0_102 = arith.constant 0 : index
    %256 = vector.load %arg20[%c0_101, %c0_102] : memref<1x64xf32, #tpu.memory_space<vmem>>, vector<1x64xf32>
    %257 = vector.broadcast %256 : vector<1x64xf32> to vector<8x64xf32>
    %258 = arith.addf %255, %257 : vector<8x64xf32>
    %cst_103 = arith.constant 0.000000e+00 : f32
    %259 = vector.broadcast %cst_103 : f32 to vector<8x64xf32>
    %260 = arith.maximumf %258, %259 : vector<8x64xf32>
    %c0_104 = arith.constant 0 : index
    %c0_105 = arith.constant 0 : index
    %261 = vector.load %arg21[%c0_104, %c0_105] : memref<64x32xf32, #tpu.memory_space<vmem>>, vector<64x32xf32>
    %cst_106 = arith.constant dense<0.000000e+00> : vector<8x32xf32>
    %262 = tpu.matmul %260, %261, %cst_106 {dimension_numbers = #tpu.dot_dimension_numbers<[1], [0], [0], [1], [0, 0, 1, 1], [], []>, precision = #tpu.contract_precision<fp32>} : vector<8x64xf32>, vector<64x32xf32>, vector<8x32xf32> -> vector<8x32xf32>
    %263 = arith.addf %229, %262 : vector<8x32xf32>
    %c0_107 = arith.constant 0 : index
    %c0_108 = arith.constant 0 : index
    %264 = vector.load %arg22[%c0_107, %c0_108] : memref<1x32xf32, #tpu.memory_space<vmem>>, vector<1x32xf32>
    %265 = vector.broadcast %264 : vector<1x32xf32> to vector<8x32xf32>
    %266 = arith.addf %263, %265 : vector<8x32xf32>
    %c0_109 = arith.constant 0 : index
    %c0_110 = arith.constant 0 : index
    %c0_111 = arith.constant 0 : index
    %267 = vector.load %arg25[%c0_109, %c0_110, %c0_111] : memref<1x8x32xf32, #tpu.memory_space<vmem>>, vector<1x8x32xf32>
    %268 = vector.shape_cast %267 : vector<1x8x32xf32> to vector<8x32xf32>
    %269 = vector.shape_cast %266 : vector<8x32xf32> to vector<1x8x32xf32>
    tpu.vector_store %arg25[%c0_109, %c0_110, %c0_111], %269 {strides = array<i32>} : memref<1x8x32xf32, #tpu.memory_space<vmem>>, vector<1x8x32xf32>,
    return
  }
  func.func @transform_0(%arg0: i32) -> (i32, i32, i32) {
    %c0_i32 = arith.constant 0 : i32
    %c0_i32_0 = arith.constant 0 : i32
    %c0_i32_1 = arith.constant 0 : i32
    return %arg0, %c0_i32, %c0_i32_0 : i32, i32, i32
  }
  func.func @transform_1(%arg0: i32) -> (i32, i32, i32) {
    %c0_i32 = arith.constant 0 : i32
    %c0_i32_0 = arith.constant 0 : i32
    %c0_i32_1 = arith.constant 0 : i32
    return %arg0, %c0_i32, %c0_i32_0 : i32, i32, i32
  }
  func.func @transform_2(%arg0: i32) -> (i32, i32, i32) {
    %c0_i32 = arith.constant 0 : i32
    %c0_i32_0 = arith.constant 0 : i32
    %c0_i32_1 = arith.constant 0 : i32
    return %arg0, %c0_i32, %c0_i32_0 : i32, i32, i32
  }
  func.func @transform_3(%arg0: i32) -> (i32, i32, i32) {
    %c0_i32 = arith.constant 0 : i32
    %c0_i32_0 = arith.constant 0 : i32
    %c0_i32_1 = arith.constant 0 : i32
    return %arg0, %c0_i32, %c0_i32_0 : i32, i32, i32
  }
  func.func @transform_4(%arg0: i32) -> (i32, i32) {
    %c0_i32 = arith.constant 0 : i32
    %c0_i32_0 = arith.constant 0 : i32
    %c0_i32_1 = arith.constant 0 : i32
    return %c0_i32, %c0_i32_0 : i32, i32
  }
  func.func @transform_5(%arg0: i32) -> (i32, i32) {
    %c0_i32 = arith.constant 0 : i32
    %c0_i32_0 = arith.constant 0 : i32
    %c0_i32_1 = arith.constant 0 : i32
    return %c0_i32, %c0_i32_0 : i32, i32
  }
  func.func @transform_6(%arg0: i32) -> (i32, i32) {
    %c0_i32 = arith.constant 0 : i32
    %c0_i32_0 = arith.constant 0 : i32
    %c0_i32_1 = arith.constant 0 : i32
    return %c0_i32, %c0_i32_0 : i32, i32
  }
  func.func @transform_7(%arg0: i32) -> (i32, i32) {
    %c0_i32 = arith.constant 0 : i32
    %c0_i32_0 = arith.constant 0 : i32
    %c0_i32_1 = arith.constant 0 : i32
    return %c0_i32, %c0_i32_0 : i32, i32
  }
  func.func @transform_8(%arg0: i32) -> (i32, i32) {
    %c0_i32 = arith.constant 0 : i32
    %c0_i32_0 = arith.constant 0 : i32
    %c0_i32_1 = arith.constant 0 : i32
    return %c0_i32, %c0_i32_0 : i32, i32
  }
  func.func @transform_9(%arg0: i32) -> (i32, i32) {
    %c0_i32 = arith.constant 0 : i32
    %c0_i32_0 = arith.constant 0 : i32
    %c0_i32_1 = arith.constant 0 : i32
    return %c0_i32, %c0_i32_0 : i32, i32
  }
  func.func @transform_10(%arg0: i32) -> (i32, i32) {
    %c0_i32 = arith.constant 0 : i32
    %c0_i32_0 = arith.constant 0 : i32
    %c0_i32_1 = arith.constant 0 : i32
    return %c0_i32, %c0_i32_0 : i32, i32
  }
  func.func @transform_11(%arg0: i32) -> (i32, i32) {
    %c0_i32 = arith.constant 0 : i32
    %c0_i32_0 = arith.constant 0 : i32
    %c0_i32_1 = arith.constant 0 : i32
    return %c0_i32, %c0_i32_0 : i32, i32
  }
  func.func @transform_12(%arg0: i32) -> (i32, i32) {
    %c0_i32 = arith.constant 0 : i32
    %c0_i32_0 = arith.constant 0 : i32
    %c0_i32_1 = arith.constant 0 : i32
    return %c0_i32, %c0_i32_0 : i32, i32
  }
  func.func @transform_13(%arg0: i32) -> (i32, i32) {
    %c0_i32 = arith.constant 0 : i32
    %c0_i32_0 = arith.constant 0 : i32
    %c0_i32_1 = arith.constant 0 : i32
    return %c0_i32, %c0_i32_0 : i32, i32
  }
  func.func @transform_14(%arg0: i32) -> (i32, i32) {
    %c0_i32 = arith.constant 0 : i32
    %c0_i32_0 = arith.constant 0 : i32
    %c0_i32_1 = arith.constant 0 : i32
    return %c0_i32, %c0_i32_0 : i32, i32
  }
  func.func @transform_15(%arg0: i32) -> (i32, i32) {
    %c0_i32 = arith.constant 0 : i32
    %c0_i32_0 = arith.constant 0 : i32
    %c0_i32_1 = arith.constant 0 : i32
    return %c0_i32, %c0_i32_0 : i32, i32
  }
  func.func @transform_16(%arg0: i32) -> (i32, i32) {
    %c0_i32 = arith.constant 0 : i32
    %c0_i32_0 = arith.constant 0 : i32
    %c0_i32_1 = arith.constant 0 : i32
    return %c0_i32, %c0_i32_0 : i32, i32
  }
  func.func @transform_17(%arg0: i32) -> (i32, i32) {
    %c0_i32 = arith.constant 0 : i32
    %c0_i32_0 = arith.constant 0 : i32
    %c0_i32_1 = arith.constant 0 : i32
    return %c0_i32, %c0_i32_0 : i32, i32
  }
  func.func @transform_18(%arg0: i32) -> (i32, i32) {
    %c0_i32 = arith.constant 0 : i32
    %c0_i32_0 = arith.constant 0 : i32
    %c0_i32_1 = arith.constant 0 : i32
    return %c0_i32, %c0_i32_0 : i32, i32
  }
  func.func @transform_19(%arg0: i32) -> (i32, i32) {
    %c0_i32 = arith.constant 0 : i32
    %c0_i32_0 = arith.constant 0 : i32
    %c0_i32_1 = arith.constant 0 : i32
    return %c0_i32, %c0_i32_0 : i32, i32
  }
  func.func @transform_20(%arg0: i32) -> (i32, i32) {
    %c0_i32 = arith.constant 0 : i32
    %c0_i32_0 = arith.constant 0 : i32
    %c0_i32_1 = arith.constant 0 : i32
    return %c0_i32, %c0_i32_0 : i32, i32
  }
  func.func @transform_21(%arg0: i32) -> (i32, i32) {
    %c0_i32 = arith.constant 0 : i32
    %c0_i32_0 = arith.constant 0 : i32
    %c0_i32_1 = arith.constant 0 : i32
    return %c0_i32, %c0_i32_0 : i32, i32
  }
  func.func @transform_22(%arg0: i32) -> (i32, i32) {
    %c0_i32 = arith.constant 0 : i32
    %c0_i32_0 = arith.constant 0 : i32
    %c0_i32_1 = arith.constant 0 : i32
    return %c0_i32, %c0_i32_0 : i32, i32
  }
  func.func @transform_23(%arg0: i32) -> (i32, i32) {
    %c0_i32 = arith.constant 0 : i32
    %c0_i32_0 = arith.constant 0 : i32
    %c0_i32_1 = arith.constant 0 : i32
    return %c0_i32, %c0_i32_0 : i32, i32
  }
  func.func @transform_24(%arg0: i32) -> (i32, i32, i32) {
    %c0_i32 = arith.constant 0 : i32
    %c0_i32_0 = arith.constant 0 : i32
    %c0_i32_1 = arith.constant 0 : i32
    return %arg0, %c0_i32, %c0_i32_0 : i32, i32, i32
  }
}

</mosaic_0001>

<llo_original>
// kernel: tpu_custom_call.1
$region0: #{tpu_custom_call.1}
  #allocation0 [shape = 'u32[]', space=smem, size = 0x4, offset = 0x4, fixed_abs, tag = 'smem constant byte address 0x4 - core index']
  #allocation1 [shape = 'u32[72,128]{1,0:T(1,128)}', space=vmem, size = 0x9000, scoped, tag = 'internal scratch']
  %s0 = inlined_call_operand.hbm [shape: f32[2,8,32], index: 0, kind: input, shape index: {}]
  %s1 = inlined_call_operand.hbm [shape: f32[2,8,32], index: 1, kind: input, shape index: {}]
  %s2 = inlined_call_operand.hbm [shape: f32[2,8,8], index: 2, kind: input, shape index: {}]
  %s3 = inlined_call_operand.hbm [shape: f32[2,8,8], index: 3, kind: input, shape index: {}]
  %s4 = inlined_call_operand.vmem [shape: f32[32,96], index: 4, kind: input, shape index: {}]
  %s5 = inlined_call_operand.vmem [shape: f32[1,96], index: 5, kind: input, shape index: {}]
  %s6 = inlined_call_operand.vmem [shape: f32[32,32], index: 6, kind: input, shape index: {}]
  %s7 = inlined_call_operand.vmem [shape: f32[1,32], index: 7, kind: input, shape index: {}]
  %s8 = inlined_call_operand.vmem [shape: f32[1,32], index: 8, kind: input, shape index: {}]
  %s9 = inlined_call_operand.vmem [shape: f32[1,32], index: 9, kind: input, shape index: {}]
  %s10 = inlined_call_operand.vmem [shape: f32[32,32], index: 10, kind: input, shape index: {}]
  %s11 = inlined_call_operand.vmem [shape: f32[1,32], index: 11, kind: input, shape index: {}]
  %s12 = inlined_call_operand.hbm [shape: f32[32,64], index: 12, kind: input, shape index: {}]
  %s13 = inlined_call_operand.vmem [shape: f32[1,64], index: 13, kind: input, shape index: {}]
  %s14 = inlined_call_operand.hbm [shape: f32[32,32], index: 14, kind: input, shape index: {}]
  %s15 = inlined_call_operand.vmem [shape: f32[1,32], index: 15, kind: input, shape index: {}]
  %s16 = inlined_call_operand.vmem [shape: f32[1,32], index: 16, kind: input, shape index: {}]
  %s17 = inlined_call_operand.vmem [shape: f32[1,32], index: 17, kind: input, shape index: {}]
  %s18 = inlined_call_operand.hbm [shape: f32[32,64], index: 18, kind: input, shape index: {}]
  %s19 = inlined_call_operand.vmem [shape: f32[1,64], index: 19, kind: input, shape index: {}]
  %s20 = inlined_call_operand.vmem [shape: f32[64,32], index: 20, kind: input, shape index: {}]
  %s21 = inlined_call_operand.vmem [shape: f32[1,32], index: 21, kind: input, shape index: {}]
  %s22 = inlined_call_operand.vmem [shape: f32[1,32], index: 22, kind: input, shape index: {}]
  %s23 = inlined_call_operand.vmem [shape: f32[1,32], index: 23, kind: input, shape index: {}]
  %s24 = inlined_call_operand.hbm [shape: f32[2,8,32], index: 24, kind: output, shape index: {}]
  %s25 = sld [smem:[#allocation0]]
  $region157: #{tpu_custom_call.1} parent=0
    _
  %s27 = ssub.s32 1, %s25
  %s28 = scalar_select 0, %s27, %s25
  $region1: #{tpu_custom_call.1} parent=0
    #allocation2 [shape = 'u8[8192]{0}', space=vmem, size = 0x2000, scoped, tag = 'input window, operand 0']
    #allocation3 [shape = 's32[2]{0}', space=sflag, size = 0x8, scoped, tag = 'scoped memory for tpu_custom_call.1']
    #allocation4 [shape = 's32[2]{0}', space=sflag, size = 0x8, scoped, tag = 'scoped memory for tpu_custom_call.1']
    #allocation5 [shape = 'u8[8192]{0}', space=vmem, size = 0x2000, scoped, tag = 'input window, operand 1']
    #allocation6 [shape = 's32[2]{0}', space=sflag, size = 0x8, scoped, tag = 'scoped memory for tpu_custom_call.1']
    #allocation7 [shape = 'u8[8192]{0}', space=vmem, size = 0x2000, scoped, tag = 'input window, operand 2']
    #allocation8 [shape = 'u8[8192]{0}', space=vmem, size = 0x2000, scoped, tag = 'input window, operand 3']
    #allocation9 [shape = 's32[2]{0}', space=sflag, size = 0x8, scoped, tag = 'scoped memory for tpu_custom_call.1']
    #allocation10 [shape = 'u8[16384]{0}', space=vmem, size = 0x4000, scoped, tag = 'input window, operand 12, single buffered']
    #allocation11 [shape = 'u8[16384]{0}', space=vmem, size = 0x4000, scoped, tag = 'input window, operand 14, single buffered']
    #allocation12 [shape = 's32[1]{0}', space=sflag, size = 0x4, scoped, tag = 'scoped memory for tpu_custom_call.1']
    #allocation13 [shape = 'u8[16384]{0}', space=vmem, size = 0x4000, scoped, tag = 'input window, operand 18, single buffered']
    #allocation14 [shape = 'u8[8192]{0}', space=vmem, size = 0x2000, scoped, tag = 'output window, operand 0']
    %29 = vsyncpa [#allocation3], 0
    %s30 = scalar_lea.sflag [#allocation3], 1
    %31 = vsyncpa %s30, 0
    %32 = vsyncpa [#allocation6], 0
    %s33 = scalar_lea.sflag [#allocation6], 1
    %34 = vsyncpa %s33, 0
    %35 = vsyncpa [#allocation9], 0
    %s36 = scalar_lea.sflag [#allocation9], 1
    %37 = vsyncpa %s36, 0
    %38 = vsyncpa [#allocation12], 0
    %39 = vsyncpa [#allocation4], 0
    %s40 = scalar_lea.sflag [#allocation4], 1
    %41 = vsyncpa %s40, 0
    loop: start=0, step=1, limit=4
    $region2: #{tpu_custom_call.1} parent=1 // loop_pre_header
      _
    $region3: #{tpu_custom_call.1} parent=1 // loop_header
      %s43 = sphi 0, %s47
      %p44 = scmp.ge.s32.totalorder %s43, 4
      %s53 = sphi 0, %s55
      %s56 = sphi 0, %s53
      %s57 = sphi 0, %s56
      %s73 = sphi 0, %s57
      %s79 = sphi 0, %s81
      %s82 = sphi 0, %s79
      %s83 = sphi 0, %s82
      %s99 = sphi 0, %s83
      %s105 = sphi 0, %s107
      %s108 = sphi 0, %s105
      %s109 = sphi 0, %s108
      %s125 = sphi 0, %s109
      %s131 = sphi 0, %s133
      %s134 = sphi 0, %s131
      %s135 = sphi 0, %s134
      %s151 = sphi 0, %s135
      %s155 = sphi 0, %s155
      %s157 = sphi 0, %s155
      %s158 = sphi 0, %s157
      %s172 = sphi 0, %s158
      %s176 = sphi 0, %s176
      %s178 = sphi 0, %s176
      %s179 = sphi 0, %s178
      %s193 = sphi 0, %s179
      %s197 = sphi 0, %s197
      %s199 = sphi 0, %s197
      %s200 = sphi 0, %s199
      %s214 = sphi 0, %s200
      %s218 = sphi 0, %s218
      %s220 = sphi 0, %s218
      %s221 = sphi 0, %s220
      %s235 = sphi 0, %s221
      %s239 = sphi 0, %s239
      %s241 = sphi 0, %s239
      %s242 = sphi 0, %s241
      %s256 = sphi 0, %s242
      %s260 = sphi 0, %s260
      %s262 = sphi 0, %s260
      %s263 = sphi 0, %s262
      %s277 = sphi 0, %s263
      %s281 = sphi 0, %s281
      %s283 = sphi 0, %s281
      %s284 = sphi 0, %s283
      %s298 = sphi 0, %s284
      %s302 = sphi 0, %s302
      %s304 = sphi 0, %s302
      %s305 = sphi 0, %s304
      %s319 = sphi 0, %s305
      %s323 = sphi 0, %s323
      %s325 = sphi 0, %s323
      %s326 = sphi 0, %s325
      %s340 = sphi 0, %s326
      %s344 = sphi 0, %s344
      %s346 = sphi 0, %s344
      %s347 = sphi 0, %s346
      %s361 = sphi 0, %s347
      %s365 = sphi 0, %s365
      %s367 = sphi 0, %s365
      %s368 = sphi 0, %s367
      %s382 = sphi 0, %s368
      %s386 = sphi 0, %s386
      %s388 = sphi 0, %s386
      %s389 = sphi 0, %s388
      %s403 = sphi 0, %s389
      %s407 = sphi 0, %s407
      %s409 = sphi 0, %s407
      %s410 = sphi 0, %s409
      %s424 = sphi 0, %s410
      %s428 = sphi 0, %s428
      %s430 = sphi 0, %s428
      %s431 = sphi 0, %s430
      %s445 = sphi 0, %s431
      %s449 = sphi 0, %s449
      %s451 = sphi 0, %s449
      %s452 = sphi 0, %s451
      %s466 = sphi 0, %s452
      %s470 = sphi 0, %s470
      %s472 = sphi 0, %s470
      %s473 = sphi 0, %s472
      %s487 = sphi 0, %s473
      %s491 = sphi 0, %s491
      %s493 = sphi 0, %s491
      %s494 = sphi 0, %s493
      %s508 = sphi 0, %s494
      %s512 = sphi 0, %s512
      %s514 = sphi 0, %s512
      %s515 = sphi 0, %s514
      %s529 = sphi 0, %s515
      %s533 = sphi 0, %s533
      %s535 = sphi 0, %s533
      %s536 = sphi 0, %s535
      %s550 = sphi 0, %s536
      %s554 = sphi 0, %s554
      %s556 = sphi 0, %s554
      %s557 = sphi 0, %s556
      %s571 = sphi 0, %s557
      %s577 = sphi 0, %s579
      %s580 = sphi 0, %s577
      %s581 = sphi 0, %s580
      %s597 = sphi 0, %s581
    $region4: #{tpu_custom_call.1} parent=1 // loop_header_branch
      %46 = sbr.rel (%p44) target = $region8
    $region5: #{tpu_custom_call.1} parent=1 // loop_body
      %s48 = ssub.s32 %s43, 1
      %s49 = ssub.s32 %s43, 2
      %s50 = sadd.s32 %s43, 1
      %s51 = ssub.s32 %s43, %s50
      %p52 = scmp.eq.s32.totalorder %s51, 0
      %s54 = sadd.s32 %s53, 1
      %s55 = scalar_select %p52, %s53, %s54
      %p58 = pneg %p52
      %p59 = scmp.eq.s32.totalorder %s43, 1
      %p60 = por %p58, %p59
      %p61 = scmp.ne.s32.totalorder %s53, %s56
      %p62 = scmp.eq.s32.totalorder %s43, 0
      %p63 = por %p61, %p62
      %p64 = scmp.ne.s32.totalorder %s53, %s56
      %p65 = scmp.eq.s32.totalorder %s48, 1
      %p66 = por %p64, %p65
      %p67 = scmp.ne.s32.totalorder %s56, %s57
      %p68 = scmp.eq.s32.totalorder %s48, 0
      %p69 = por %p67, %p68
      %p70 = scmp.ne.s32.totalorder %s56, %s57
      %p71 = scmp.eq.s32.totalorder %s49, 1
      %p72 = por %p70, %p71
      %p74 = scmp.ne.s32.totalorder %s57, %s73
      %p75 = scmp.eq.s32.totalorder %s49, 0
      %p76 = por %p74, %p75
      %s77 = ssub.s32 %s43, %s50
      %p78 = scmp.eq.s32.totalorder %s77, 0
      %s80 = sadd.s32 %s79, 1
      %s81 = scalar_select %p78, %s79, %s80
      %p84 = pneg %p78
      %p85 = scmp.eq.s32.totalorder %s43, 1
      %p86 = por %p84, %p85
      %p87 = scmp.ne.s32.totalorder %s79, %s82
      %p88 = scmp.eq.s32.totalorder %s43, 0
      %p89 = por %p87, %p88
      %p90 = scmp.ne.s32.totalorder %s79, %s82
      %p91 = scmp.eq.s32.totalorder %s48, 1
      %p92 = por %p90, %p91
      %p93 = scmp.ne.s32.totalorder %s82, %s83
      %p94 = scmp.eq.s32.totalorder %s48, 0
      %p95 = por %p93, %p94
      %p96 = scmp.ne.s32.totalorder %s82, %s83
      %p97 = scmp.eq.s32.totalorder %s49, 1
      %p98 = por %p96, %p97
      %p100 = scmp.ne.s32.totalorder %s83, %s99
      %p101 = scmp.eq.s32.totalorder %s49, 0
      %p102 = por %p100, %p101
      %s103 = ssub.s32 %s43, %s50
      %p104 = scmp.eq.s32.totalorder %s103, 0
      %s106 = sadd.s32 %s105, 1
      %s107 = scalar_select %p104, %s105, %s106
      %p110 = pneg %p104
      %p111 = scmp.eq.s32.totalorder %s43, 1
      %p112 = por %p110, %p111
      %p113 = scmp.ne.s32.totalorder %s105, %s108
      %p114 = scmp.eq.s32.totalorder %s43, 0
      %p115 = por %p113, %p114
      %p116 = scmp.ne.s32.totalorder %s105, %s108
      %p117 = scmp.eq.s32.totalorder %s48, 1
      %p118 = por %p116, %p117
      %p119 = scmp.ne.s32.totalorder %s108, %s109
      %p120 = scmp.eq.s32.totalorder %s48, 0
      %p121 = por %p119, %p120
      %p122 = scmp.ne.s32.totalorder %s108, %s109
      %p123 = scmp.eq.s32.totalorder %s49, 1
      %p124 = por %p122, %p123
      %p126 = scmp.ne.s32.totalorder %s109, %s125
      %p127 = scmp.eq.s32.totalorder %s49, 0
      %p128 = por %p126, %p127
      %s129 = ssub.s32 %s43, %s50
      %p130 = scmp.eq.s32.totalorder %s129, 0
      %s132 = sadd.s32 %s131, 1
      %s133 = scalar_select %p130, %s131, %s132
      %p136 = pneg %p130
      %p137 = scmp.eq.s32.totalorder %s43, 1
      %p138 = por %p136, %p137
      %p139 = scmp.ne.s32.totalorder %s131, %s134
      %p140 = scmp.eq.s32.totalorder %s43, 0
      %p141 = por %p139, %p140
      %p142 = scmp.ne.s32.totalorder %s131, %s134
      %p143 = scmp.eq.s32.totalorder %s48, 1
      %p144 = por %p142, %p143
      %p145 = scmp.ne.s32.totalorder %s134, %s135
      %p146 = scmp.eq.s32.totalorder %s48, 0
      %p147 = por %p145, %p146
      %p148 = scmp.ne.s32.totalorder %s134, %s135
      %p149 = scmp.eq.s32.totalorder %s49, 1
      %p150 = por %p148, %p149
      %p152 = scmp.ne.s32.totalorder %s135, %s151
      %p153 = scmp.eq.s32.totalorder %s49, 0
      %p154 = por %p152, %p153
      %s156 = sadd.s32 %s155, 1
      %p159 = scmp.eq.s32.totalorder %s43, 1
      %p160 = scmp.ne.s32.totalorder %s155, %s157
      %p161 = scmp.eq.s32.totalorder %s43, 0
      %p162 = por %p160, %p161
      %p163 = scmp.ne.s32.totalorder %s155, %s157
      %p164 = scmp.eq.s32.totalorder %s48, 1
      %p165 = por %p163, %p164
      %p166 = scmp.ne.s32.totalorder %s157, %s158
      %p167 = scmp.eq.s32.totalorder %s48, 0
      %p168 = por %p166, %p167
      %p169 = scmp.ne.s32.totalorder %s157, %s158
      %p170 = scmp.eq.s32.totalorder %s49, 1
      %p171 = por %p169, %p170
      %p173 = scmp.ne.s32.totalorder %s158, %s172
      %p174 = scmp.eq.s32.totalorder %s49, 0
      %p175 = por %p173, %p174
      %s177 = sadd.s32 %s176, 1
      %p180 = scmp.eq.s32.totalorder %s43, 1
      %p181 = scmp.ne.s32.totalorder %s176, %s178
      %p182 = scmp.eq.s32.totalorder %s43, 0
      %p183 = por %p181, %p182
      %p184 = scmp.ne.s32.totalorder %s176, %s178
      %p185 = scmp.eq.s32.totalorder %s48, 1
      %p186 = por %p184, %p185
      %p187 = scmp.ne.s32.totalorder %s178, %s179
      %p188 = scmp.eq.s32.totalorder %s48, 0
      %p189 = por %p187, %p188
      %p190 = scmp.ne.s32.totalorder %s178, %s179
      %p191 = scmp.eq.s32.totalorder %s49, 1
      %p192 = por %p190, %p191
      %p194 = scmp.ne.s32.totalorder %s179, %s193
      %p195 = scmp.eq.s32.totalorder %s49, 0
      %p196 = por %p194, %p195
      %s198 = sadd.s32 %s197, 1
      %p201 = scmp.eq.s32.totalorder %s43, 1
      %p202 = scmp.ne.s32.totalorder %s197, %s199
      %p203 = scmp.eq.s32.totalorder %s43, 0
      %p204 = por %p202, %p203
      %p205 = scmp.ne.s32.totalorder %s197, %s199
      %p206 = scmp.eq.s32.totalorder %s48, 1
      %p207 = por %p205, %p206
      %p208 = scmp.ne.s32.totalorder %s199, %s200
      %p209 = scmp.eq.s32.totalorder %s48, 0
      %p210 = por %p208, %p209
      %p211 = scmp.ne.s32.totalorder %s199, %s200
      %p212 = scmp.eq.s32.totalorder %s49, 1
      %p213 = por %p211, %p212
      %p215 = scmp.ne.s32.totalorder %s200, %s214
      %p216 = scmp.eq.s32.totalorder %s49, 0
      %p217 = por %p215, %p216
      %s219 = sadd.s32 %s218, 1
      %p222 = scmp.eq.s32.totalorder %s43, 1
      %p223 = scmp.ne.s32.totalorder %s218, %s220
      %p224 = scmp.eq.s32.totalorder %s43, 0
      %p225 = por %p223, %p224
      %p226 = scmp.ne.s32.totalorder %s218, %s220
      %p227 = scmp.eq.s32.totalorder %s48, 1
      %p228 = por %p226, %p227
      %p229 = scmp.ne.s32.totalorder %s220, %s221
      %p230 = scmp.eq.s32.totalorder %s48, 0
      %p231 = por %p229, %p230
      %p232 = scmp.ne.s32.totalorder %s220, %s221
      %p233 = scmp.eq.s32.totalorder %s49, 1
      %p234 = por %p232, %p233
      %p236 = scmp.ne.s32.totalorder %s221, %s235
      %p237 = scmp.eq.s32.totalorder %s49, 0
      %p238 = por %p236, %p237
      %s240 = sadd.s32 %s239, 1
      %p243 = scmp.eq.s32.totalorder %s43, 1
      %p244 = scmp.ne.s32.totalorder %s239, %s241
      %p245 = scmp.eq.s32.totalorder %s43, 0
      %p246 = por %p244, %p245
      %p247 = scmp.ne.s32.totalorder %s239, %s241
      %p248 = scmp.eq.s32.totalorder %s48, 1
      %p249 = por %p247, %p248
      %p250 = scmp.ne.s32.totalorder %s241, %s242
      %p251 = scmp.eq.s32.totalorder %s48, 0
      %p252 = por %p250, %p251
      %p253 = scmp.ne.s32.totalorder %s241, %s242
      %p254 = scmp.eq.s32.totalorder %s49, 1
      %p255 = por %p253, %p254
      %p257 = scmp.ne.s32.totalorder %s242, %s256
      %p258 = scmp.eq.s32.totalorder %s49, 0
      %p259 = por %p257, %p258
      %s261 = sadd.s32 %s260, 1
      %p264 = scmp.eq.s32.totalorder %s43, 1
      %p265 = scmp.ne.s32.totalorder %s260, %s262
      %p266 = scmp.eq.s32.totalorder %s43, 0
      %p267 = por %p265, %p266
      %p268 = scmp.ne.s32.totalorder %s260, %s262
      %p269 = scmp.eq.s32.totalorder %s48, 1
      %p270 = por %p268, %p269
      %p271 = scmp.ne.s32.totalorder %s262, %s263
      %p272 = scmp.eq.s32.totalorder %s48, 0
      %p273 = por %p271, %p272
      %p274 = scmp.ne.s32.totalorder %s262, %s263
      %p275 = scmp.eq.s32.totalorder %s49, 1
      %p276 = por %p274, %p275
      %p278 = scmp.ne.s32.totalorder %s263, %s277
      %p279 = scmp.eq.s32.totalorder %s49, 0
      %p280 = por %p278, %p279
      %s282 = sadd.s32 %s281, 1
      %p285 = scmp.eq.s32.totalorder %s43, 1
      %p286 = scmp.ne.s32.totalorder %s281, %s283
      %p287 = scmp.eq.s32.totalorder %s43, 0
      %p288 = por %p286, %p287
      %p289 = scmp.ne.s32.totalorder %s281, %s283
      %p290 = scmp.eq.s32.totalorder %s48, 1
      %p291 = por %p289, %p290
      %p292 = scmp.ne.s32.totalorder %s283, %s284
      %p293 = scmp.eq.s32.totalorder %s48, 0
      %p294 = por %p292, %p293
      %p295 = scmp.ne.s32.totalorder %s283, %s284
      %p296 = scmp.eq.s32.totalorder %s49, 1
      %p297 = por %p295, %p296
      %p299 = scmp.ne.s32.totalorder %s284, %s298
      %p300 = scmp.eq.s32.totalorder %s49, 0
      %p301 = por %p299, %p300
      %s303 = sadd.s32 %s302, 1
      %p306 = scmp.eq.s32.totalorder %s43, 1
      %p307 = scmp.ne.s32.totalorder %s302, %s304
      %p308 = scmp.eq.s32.totalorder %s43, 0
      %p309 = por %p307, %p308
      %p310 = scmp.ne.s32.totalorder %s302, %s304
      %p311 = scmp.eq.s32.totalorder %s48, 1
      %p312 = por %p310, %p311
      %p313 = scmp.ne.s32.totalorder %s304, %s305
      %p314 = scmp.eq.s32.totalorder %s48, 0
      %p315 = por %p313, %p314
      %p316 = scmp.ne.s32.totalorder %s304, %s305
      %p317 = scmp.eq.s32.totalorder %s49, 1
      %p318 = por %p316, %p317
      %p320 = scmp.ne.s32.totalorder %s305, %s319
      %p321 = scmp.eq.s32.totalorder %s49, 0
      %p322 = por %p320, %p321
      %s324 = sadd.s32 %s323, 1
      %p327 = scmp.eq.s32.totalorder %s43, 1
      %p328 = scmp.ne.s32.totalorder %s323, %s325
      %p329 = scmp.eq.s32.totalorder %s43, 0
      %p330 = por %p328, %p329
      %p331 = scmp.ne.s32.totalorder %s323, %s325
      %p332 = scmp.eq.s32.totalorder %s48, 1
      %p333 = por %p331, %p332
      %p334 = scmp.ne.s32.totalorder %s325, %s326
      %p335 = scmp.eq.s32.totalorder %s48, 0
      %p336 = por %p334, %p335
      %p337 = scmp.ne.s32.totalorder %s325, %s326
      %p338 = scmp.eq.s32.totalorder %s49, 1
      %p339 = por %p337, %p338
      %p341 = scmp.ne.s32.totalorder %s326, %s340
      %p342 = scmp.eq.s32.totalorder %s49, 0
      %p343 = por %p341, %p342
      %s345 = sadd.s32 %s344, 1
      %p348 = scmp.eq.s32.totalorder %s43, 1
      %p349 = scmp.ne.s32.totalorder %s344, %s346
      %p350 = scmp.eq.s32.totalorder %s43, 0
      %p351 = por %p349, %p350
      %p352 = scmp.ne.s32.totalorder %s344, %s346
      %p353 = scmp.eq.s32.totalorder %s48, 1
      %p354 = por %p352, %p353
      %p355 = scmp.ne.s32.totalorder %s346, %s347
      %p356 = scmp.eq.s32.totalorder %s48, 0
      %p357 = por %p355, %p356
      %p358 = scmp.ne.s32.totalorder %s346, %s347
      %p359 = scmp.eq.s32.totalorder %s49, 1
      %p360 = por %p358, %p359
      %p362 = scmp.ne.s32.totalorder %s347, %s361
      %p363 = scmp.eq.s32.totalorder %s49, 0
      %p364 = por %p362, %p363
      %s366 = sadd.s32 %s365, 1
      %p369 = scmp.eq.s32.totalorder %s43, 1
      %p370 = scmp.ne.s32.totalorder %s365, %s367
      %p371 = scmp.eq.s32.totalorder %s43, 0
      %p372 = por %p370, %p371
      %p373 = scmp.ne.s32.totalorder %s365, %s367
      %p374 = scmp.eq.s32.totalorder %s48, 1
      %p375 = por %p373, %p374
      %p376 = scmp.ne.s32.totalorder %s367, %s368
      %p377 = scmp.eq.s32.totalorder %s48, 0
      %p378 = por %p376, %p377
      %p379 = scmp.ne.s32.totalorder %s367, %s368
      %p380 = scmp.eq.s32.totalorder %s49, 1
      %p381 = por %p379, %p380
      %p383 = scmp.ne.s32.totalorder %s368, %s382
      %p384 = scmp.eq.s32.totalorder %s49, 0
      %p385 = por %p383, %p384
      %s387 = sadd.s32 %s386, 1
      %p390 = scmp.eq.s32.totalorder %s43, 1
      %p391 = scmp.ne.s32.totalorder %s386, %s388
      %p392 = scmp.eq.s32.totalorder %s43, 0
      %p393 = por %p391, %p392
      %p394 = scmp.ne.s32.totalorder %s386, %s388
      %p395 = scmp.eq.s32.totalorder %s48, 1
      %p396 = por %p394, %p395
      %p397 = scmp.ne.s32.totalorder %s388, %s389
      %p398 = scmp.eq.s32.totalorder %s48, 0
      %p399 = por %p397, %p398
      %p400 = scmp.ne.s32.totalorder %s388, %s389
      %p401 = scmp.eq.s32.totalorder %s49, 1
      %p402 = por %p400, %p401
      %p404 = scmp.ne.s32.totalorder %s389, %s403
      %p405 = scmp.eq.s32.totalorder %s49, 0
      %p406 = por %p404, %p405
      %s408 = sadd.s32 %s407, 1
      %p411 = scmp.eq.s32.totalorder %s43, 1
      %p412 = scmp.ne.s32.totalorder %s407, %s409
      %p413 = scmp.eq.s32.totalorder %s43, 0
      %p414 = por %p412, %p413
      %p415 = scmp.ne.s32.totalorder %s407, %s409
      %p416 = scmp.eq.s32.totalorder %s48, 1
      %p417 = por %p415, %p416
      %p418 = scmp.ne.s32.totalorder %s409, %s410
      %p419 = scmp.eq.s32.totalorder %s48, 0
      %p420 = por %p418, %p419
      %p421 = scmp.ne.s32.totalorder %s409, %s410
      %p422 = scmp.eq.s32.totalorder %s49, 1
      %p423 = por %p421, %p422
      %p425 = scmp.ne.s32.totalorder %s410, %s424
      %p426 = scmp.eq.s32.totalorder %s49, 0
      %p427 = por %p425, %p426
      %s429 = sadd.s32 %s428, 1
      %p432 = scmp.eq.s32.totalorder %s43, 1
      %p433 = scmp.ne.s32.totalorder %s428, %s430
      %p434 = scmp.eq.s32.totalorder %s43, 0
      %p435 = por %p433, %p434
      %p436 = scmp.ne.s32.totalorder %s428, %s430
      %p437 = scmp.eq.s32.totalorder %s48, 1
      %p438 = por %p436, %p437
      %p439 = scmp.ne.s32.totalorder %s430, %s431
      %p440 = scmp.eq.s32.totalorder %s48, 0
      %p441 = por %p439, %p440
      %p442 = scmp.ne.s32.totalorder %s430, %s431
      %p443 = scmp.eq.s32.totalorder %s49, 1
      %p444 = por %p442, %p443
      %p446 = scmp.ne.s32.totalorder %s431, %s445
      %p447 = scmp.eq.s32.totalorder %s49, 0
      %p448 = por %p446, %p447
      %s450 = sadd.s32 %s449, 1
      %p453 = scmp.eq.s32.totalorder %s43, 1
      %p454 = scmp.ne.s32.totalorder %s449, %s451
      %p455 = scmp.eq.s32.totalorder %s43, 0
      %p456 = por %p454, %p455
      %p457 = scmp.ne.s32.totalorder %s449, %s451
      %p458 = scmp.eq.s32.totalorder %s48, 1
      %p459 = por %p457, %p458
      %p460 = scmp.ne.s32.totalorder %s451, %s452
      %p461 = scmp.eq.s32.totalorder %s48, 0
      %p462 = por %p460, %p461
      %p463 = scmp.ne.s32.totalorder %s451, %s452
      %p464 = scmp.eq.s32.totalorder %s49, 1
      %p465 = por %p463, %p464
      %p467 = scmp.ne.s32.totalorder %s452, %s466
      %p468 = scmp.eq.s32.totalorder %s49, 0
      %p469 = por %p467, %p468
      %s471 = sadd.s32 %s470, 1
      %p474 = scmp.eq.s32.totalorder %s43, 1
      %p475 = scmp.ne.s32.totalorder %s470, %s472
      %p476 = scmp.eq.s32.totalorder %s43, 0
      %p477 = por %p475, %p476
      %p478 = scmp.ne.s32.totalorder %s470, %s472
      %p479 = scmp.eq.s32.totalorder %s48, 1
      %p480 = por %p478, %p479
      %p481 = scmp.ne.s32.totalorder %s472, %s473
      %p482 = scmp.eq.s32.totalorder %s48, 0
      %p483 = por %p481, %p482
      %p484 = scmp.ne.s32.totalorder %s472, %s473
      %p485 = scmp.eq.s32.totalorder %s49, 1
      %p486 = por %p484, %p485
      %p488 = scmp.ne.s32.totalorder %s473, %s487
      %p489 = scmp.eq.s32.totalorder %s49, 0
      %p490 = por %p488, %p489
      %s492 = sadd.s32 %s491, 1
      %p495 = scmp.eq.s32.totalorder %s43, 1
      %p496 = scmp.ne.s32.totalorder %s491, %s493
      %p497 = scmp.eq.s32.totalorder %s43, 0
      %p498 = por %p496, %p497
      %p499 = scmp.ne.s32.totalorder %s491, %s493
      %p500 = scmp.eq.s32.totalorder %s48, 1
      %p501 = por %p499, %p500
      %p502 = scmp.ne.s32.totalorder %s493, %s494
      %p503 = scmp.eq.s32.totalorder %s48, 0
      %p504 = por %p502, %p503
      %p505 = scmp.ne.s32.totalorder %s493, %s494
      %p506 = scmp.eq.s32.totalorder %s49, 1
      %p507 = por %p505, %p506
      %p509 = scmp.ne.s32.totalorder %s494, %s508
      %p510 = scmp.eq.s32.totalorder %s49, 0
      %p511 = por %p509, %p510
      %s513 = sadd.s32 %s512, 1
      %p516 = scmp.eq.s32.totalorder %s43, 1
      %p517 = scmp.ne.s32.totalorder %s512, %s514
      %p518 = scmp.eq.s32.totalorder %s43, 0
      %p519 = por %p517, %p518
      %p520 = scmp.ne.s32.totalorder %s512, %s514
      %p521 = scmp.eq.s32.totalorder %s48, 1
      %p522 = por %p520, %p521
      %p523 = scmp.ne.s32.totalorder %s514, %s515
      %p524 = scmp.eq.s32.totalorder %s48, 0
      %p525 = por %p523, %p524
      %p526 = scmp.ne.s32.totalorder %s514, %s515
      %p527 = scmp.eq.s32.totalorder %s49, 1
      %p528 = por %p526, %p527
      %p530 = scmp.ne.s32.totalorder %s515, %s529
      %p531 = scmp.eq.s32.totalorder %s49, 0
      %p532 = por %p530, %p531
      %s534 = sadd.s32 %s533, 1
      %p537 = scmp.eq.s32.totalorder %s43, 1
      %p538 = scmp.ne.s32.totalorder %s533, %s535
      %p539 = scmp.eq.s32.totalorder %s43, 0
      %p540 = por %p538, %p539
      %p541 = scmp.ne.s32.totalorder %s533, %s535
      %p542 = scmp.eq.s32.totalorder %s48, 1
      %p543 = por %p541, %p542
      %p544 = scmp.ne.s32.totalorder %s535, %s536
      %p545 = scmp.eq.s32.totalorder %s48, 0
      %p546 = por %p544, %p545
      %p547 = scmp.ne.s32.totalorder %s535, %s536
      %p548 = scmp.eq.s32.totalorder %s49, 1
      %p549 = por %p547, %p548
      %p551 = scmp.ne.s32.totalorder %s536, %s550
      %p552 = scmp.eq.s32.totalorder %s49, 0
      %p553 = por %p551, %p552
      %s555 = sadd.s32 %s554, 1
      %p558 = scmp.eq.s32.totalorder %s43, 1
      %p559 = scmp.ne.s32.totalorder %s554, %s556
      %p560 = scmp.eq.s32.totalorder %s43, 0
      %p561 = por %p559, %p560
      %p562 = scmp.ne.s32.totalorder %s554, %s556
      %p563 = scmp.eq.s32.totalorder %s48, 1
      %p564 = por %p562, %p563
      %p565 = scmp.ne.s32.totalorder %s556, %s557
      %p566 = scmp.eq.s32.totalorder %s48, 0
      %p567 = por %p565, %p566
      %p568 = scmp.ne.s32.totalorder %s556, %s557
      %p569 = scmp.eq.s32.totalorder %s49, 1
      %p570 = por %p568, %p569
      %p572 = scmp.ne.s32.totalorder %s557, %s571
      %p573 = scmp.eq.s32.totalorder %s49, 0
      %p574 = por %p572, %p573
      %s575 = ssub.s32 %s43, %s50
      %p576 = scmp.eq.s32.totalorder %s575, 0
      %s578 = sadd.s32 %s577, 1
      %s579 = scalar_select %p576, %s577, %s578
      %p582 = pneg %p576
      %p583 = scmp.eq.s32.totalorder %s43, 1
      %p584 = por %p582, %p583
      %p585 = scmp.ne.s32.totalorder %s577, %s580
      %p586 = scmp.eq.s32.totalorder %s43, 0
      %p587 = por %p585, %p586
      %p588 = scmp.ne.s32.totalorder %s577, %s580
      %p589 = scmp.eq.s32.totalorder %s48, 1
      %p590 = por %p588, %p589
      %p591 = scmp.ne.s32.totalorder %s580, %s581
      %p592 = scmp.eq.s32.totalorder %s48, 0
      %p593 = por %p591, %p592
      %p594 = scmp.ne.s32.totalorder %s580, %s581
      %p595 = scmp.eq.s32.totalorder %s49, 1
      %p596 = por %p594, %p595
      %p598 = scmp.ne.s32.totalorder %s581, %s597
      %p599 = scmp.eq.s32.totalorder %s49, 0
      %p600 = por %p598, %p599
      %p601 = scmp.le.s32.totalorder 1, %s43
      %p602 = scmp.lt.s32.totalorder %s43, 3
      %p603 = pnand %p601, %p602
      %p604 = pneg %p603
      // Predicated region
      $region9: #{tpu_custom_call.1} parent=5 // pred_check
        _
      $region10: #{tpu_custom_call.1} parent=5 // pred_check_branch
        %606 = sbr.rel (%p603) target = $region12
      $region11: #{tpu_custom_call.1} parent=5 // pred_region
        %s607 = ssub.s32 %s43, 1
        // Predicated region
        $region13: #{tpu_custom_call.1} parent=11 // pred_check
          %p608 = pneg %p168
        $region14: #{tpu_custom_call.1} parent=11 // pred_check_branch
          %610 = sbr.rel (%p608) target = $region16
        $region15: #{tpu_custom_call.1} parent=11 // pred_region
          _
        $region16: #{tpu_custom_call.1} parent=11 // pred_fallthru
          _
        // Predicated region
        $region17: #{tpu_custom_call.1} parent=11 // pred_check
          %p611 = pneg %p189
        $region18: #{tpu_custom_call.1} parent=11 // pred_check_branch
          %613 = sbr.rel (%p611) target = $region20
        $region19: #{tpu_custom_call.1} parent=11 // pred_region
          _
        $region20: #{tpu_custom_call.1} parent=11 // pred_fallthru
          _
        // Predicated region
        $region21: #{tpu_custom_call.1} parent=11 // pred_check
          %p614 = pneg %p210
        $region22: #{tpu_custom_call.1} parent=11 // pred_check_branch
          %616 = sbr.rel (%p614) target = $region24
        $region23: #{tpu_custom_call.1} parent=11 // pred_region
          _
        $region24: #{tpu_custom_call.1} parent=11 // pred_fallthru
          _
        // Predicated region
        $region25: #{tpu_custom_call.1} parent=11 // pred_check
          %p617 = pneg %p231
        $region26: #{tpu_custom_call.1} parent=11 // pred_check_branch
          %619 = sbr.rel (%p617) target = $region28
        $region27: #{tpu_custom_call.1} parent=11 // pred_region
          _
        $region28: #{tpu_custom_call.1} parent=11 // pred_fallthru
          _
        // Predicated region
        $region29: #{tpu_custom_call.1} parent=11 // pred_check
          %p620 = pneg %p252
        $region30: #{tpu_custom_call.1} parent=11 // pred_check_branch
          %622 = sbr.rel (%p620) target = $region32
        $region31: #{tpu_custom_call.1} parent=11 // pred_region
          _
        $region32: #{tpu_custom_call.1} parent=11 // pred_fallthru
          _
        // Predicated region
        $region33: #{tpu_custom_call.1} parent=11 // pred_check
          %p623 = pneg %p273
        $region34: #{tpu_custom_call.1} parent=11 // pred_check_branch
          %625 = sbr.rel (%p623) target = $region36
        $region35: #{tpu_custom_call.1} parent=11 // pred_region
          _
        $region36: #{tpu_custom_call.1} parent=11 // pred_fallthru
          _
        // Predicated region
        $region37: #{tpu_custom_call.1} parent=11 // pred_check
          %p626 = pneg %p294
        $region38: #{tpu_custom_call.1} parent=11 // pred_check_branch
          %628 = sbr.rel (%p626) target = $region40
        $region39: #{tpu_custom_call.1} parent=11 // pred_region
          _
        $region40: #{tpu_custom_call.1} parent=11 // pred_fallthru
          _
        // Predicated region
        $region41: #{tpu_custom_call.1} parent=11 // pred_check
          %p629 = pneg %p315
        $region42: #{tpu_custom_call.1} parent=11 // pred_check_branch
          %631 = sbr.rel (%p629) target = $region44
        $region43: #{tpu_custom_call.1} parent=11 // pred_region
          _
        $region44: #{tpu_custom_call.1} parent=11 // pred_fallthru
          _
        // Predicated region
        $region45: #{tpu_custom_call.1} parent=11 // pred_check
          %p632 = pneg %p336
        $region46: #{tpu_custom_call.1} parent=11 // pred_check_branch
          %634 = sbr.rel (%p632) target = $region48
        $region47: #{tpu_custom_call.1} parent=11 // pred_region
          %636 = vsyncadd [#allocation9], 0
          %s637 = sshll.u32 %s12, 4
          %s638 = int_to_ptr.hbm [resolvable:$true] %s637
          %s639 = sshll.u32 [#allocation10], 4
          %s640 = int_to_ptr.vmem [resolvable:$true] %s639
          %645 = dma.hbm_to_vmem [thread:$0]  %s638, 512, %s640, [#allocation9], 128, 128, 8
        $region48: #{tpu_custom_call.1} parent=11 // pred_fallthru
          _
        // Predicated region
        $region49: #{tpu_custom_call.1} parent=11 // pred_check
          %p646 = pneg %p357
        $region50: #{tpu_custom_call.1} parent=11 // pred_check_branch
          %648 = sbr.rel (%p646) target = $region52
        $region51: #{tpu_custom_call.1} parent=11 // pred_region
          _
        $region52: #{tpu_custom_call.1} parent=11 // pred_fallthru
          _
        // Predicated region
        $region53: #{tpu_custom_call.1} parent=11 // pred_check
          %p649 = pneg %p378
        $region54: #{tpu_custom_call.1} parent=11 // pred_check_branch
          %651 = sbr.rel (%p649) target = $region56
        $region55: #{tpu_custom_call.1} parent=11 // pred_region
          %653 = vsyncadd [#allocation12], 0
          %s654 = sshll.u32 %s14, 4
          %s655 = int_to_ptr.hbm [resolvable:$true] %s654
          %s656 = sshll.u32 [#allocation11], 4
          %s657 = int_to_ptr.vmem [resolvable:$true] %s656
          %662 = dma.hbm_to_vmem [thread:$0]  %s655, 512, %s657, [#allocation12], 128, 128, 8
        $region56: #{tpu_custom_call.1} parent=11 // pred_fallthru
          _
        // Predicated region
        $region57: #{tpu_custom_call.1} parent=11 // pred_check
          %p663 = pneg %p399
        $region58: #{tpu_custom_call.1} parent=11 // pred_check_branch
          %665 = sbr.rel (%p663) target = $region60
        $region59: #{tpu_custom_call.1} parent=11 // pred_region
          _
        $region60: #{tpu_custom_call.1} parent=11 // pred_fallthru
          _
        // Predicated region
        $region61: #{tpu_custom_call.1} parent=11 // pred_check
          %p666 = pneg %p420
        $region62: #{tpu_custom_call.1} parent=11 // pred_check_branch
          %668 = sbr.rel (%p666) target = $region64
        $region63: #{tpu_custom_call.1} parent=11 // pred_region
          _
        $region64: #{tpu_custom_call.1} parent=11 // pred_fallthru
          _
        // Predicated region
        $region65: #{tpu_custom_call.1} parent=11 // pred_check
          %p669 = pneg %p441
        $region66: #{tpu_custom_call.1} parent=11 // pred_check_branch
          %671 = sbr.rel (%p669) target = $region68
        $region67: #{tpu_custom_call.1} parent=11 // pred_region
          _
        $region68: #{tpu_custom_call.1} parent=11 // pred_fallthru
          _
        // Predicated region
        $region69: #{tpu_custom_call.1} parent=11 // pred_check
          %p672 = pneg %p462
        $region70: #{tpu_custom_call.1} parent=11 // pred_check_branch
          %674 = sbr.rel (%p672) target = $region72
        $region71: #{tpu_custom_call.1} parent=11 // pred_region
          %676 = vsyncadd [#allocation12], 0
          %s677 = sshll.u32 %s18, 4
          %s678 = int_to_ptr.hbm [resolvable:$true] %s677
          %s679 = sshll.u32 [#allocation13], 4
          %s680 = int_to_ptr.vmem [resolvable:$true] %s679
          %685 = dma.hbm_to_vmem [thread:$0]  %s678, 512, %s680, [#allocation12], 128, 128, 8
        $region72: #{tpu_custom_call.1} parent=11 // pred_fallthru
          _
        // Predicated region
        $region73: #{tpu_custom_call.1} parent=11 // pred_check
          %p686 = pneg %p483
        $region74: #{tpu_custom_call.1} parent=11 // pred_check_branch
          %688 = sbr.rel (%p686) target = $region76
        $region75: #{tpu_custom_call.1} parent=11 // pred_region
          _
        $region76: #{tpu_custom_call.1} parent=11 // pred_fallthru
          _
        // Predicated region
        $region77: #{tpu_custom_call.1} parent=11 // pred_check
          %p689 = pneg %p504
        $region78: #{tpu_custom_call.1} parent=11 // pred_check_branch
          %691 = sbr.rel (%p689) target = $region80
        $region79: #{tpu_custom_call.1} parent=11 // pred_region
          _
        $region80: #{tpu_custom_call.1} parent=11 // pred_fallthru
          _
        // Predicated region
        $region81: #{tpu_custom_call.1} parent=11 // pred_check
          %p692 = pneg %p525
        $region82: #{tpu_custom_call.1} parent=11 // pred_check_branch
          %694 = sbr.rel (%p692) target = $region84
        $region83: #{tpu_custom_call.1} parent=11 // pred_region
          _
        $region84: #{tpu_custom_call.1} parent=11 // pred_fallthru
          _
        // Predicated region
        $region85: #{tpu_custom_call.1} parent=11 // pred_check
          %p695 = pneg %p546
        $region86: #{tpu_custom_call.1} parent=11 // pred_check_branch
          %697 = sbr.rel (%p695) target = $region88
        $region87: #{tpu_custom_call.1} parent=11 // pred_region
          _
        $region88: #{tpu_custom_call.1} parent=11 // pred_fallthru
          _
        // Predicated region
        $region89: #{tpu_custom_call.1} parent=11 // pred_check
          %p698 = pneg %p567
        $region90: #{tpu_custom_call.1} parent=11 // pred_check_branch
          %700 = sbr.rel (%p698) target = $region92
        $region91: #{tpu_custom_call.1} parent=11 // pred_region
          _
        $region92: #{tpu_custom_call.1} parent=11 // pred_fallthru
          _
      $region12: #{tpu_custom_call.1} parent=5 // pred_fallthru
        _
      %p701 = scmp.lt.s32.totalorder %s43, 2
      // Predicated region
      $region93: #{tpu_custom_call.1} parent=5 // pred_check
        %p702 = pneg %p701
      $region94: #{tpu_custom_call.1} parent=5 // pred_check_branch
        %704 = sbr.rel (%p702) target = $region96
      $region95: #{tpu_custom_call.1} parent=5 // pred_region
        // Predicated region
        $region97: #{tpu_custom_call.1} parent=95 // pred_check
          %p705 = pneg %p63
        $region98: #{tpu_custom_call.1} parent=95 // pred_check_branch
          %707 = sbr.rel (%p705) target = $region100
        $region99: #{tpu_custom_call.1} parent=95 // pred_region
          %s708 = sand.u32 %s53, 1
          %s709 = scalar_lea.sflag [#allocation3], %s708
          %s710 = sand.u32 %s53, 1
          %s711 = smul.addr %s710, 8
          %s712 = scalar_lea.vmem [#allocation2], %s711
          %714 = vsyncadd %s709, 0
          %s715 = smul.addr %s43, 8
          %s716 = scalar_lea.hbm %s0, %s715
          %s718 = sshll.u32 %s716, 4
          %s719 = int_to_ptr.hbm [resolvable:$true] %s718
          %s720 = sshll.u32 %s712, 4
          %s721 = int_to_ptr.vmem [resolvable:$true] %s720
          %723 = dma.hbm_to_vmem [thread:$0]  %s719, 128, %s721, %s709
        $region100: #{tpu_custom_call.1} parent=95 // pred_fallthru
          _
        // Predicated region
        $region101: #{tpu_custom_call.1} parent=95 // pred_check
          %p724 = pneg %p89
        $region102: #{tpu_custom_call.1} parent=95 // pred_check_branch
          %726 = sbr.rel (%p724) target = $region104
        $region103: #{tpu_custom_call.1} parent=95 // pred_region
          %s727 = sand.u32 %s43, 1
          %s728 = scalar_lea.sflag [#allocation6], %s727
          %s729 = sand.u32 %s79, 1
          %s730 = smul.addr %s729, 8
          %s731 = scalar_lea.vmem [#allocation5], %s730
          %733 = vsyncadd %s728, 0
          %s734 = smul.addr %s43, 8
          %s735 = scalar_lea.hbm %s1, %s734
          %s737 = sshll.u32 %s735, 4
          %s738 = int_to_ptr.hbm [resolvable:$true] %s737
          %s739 = sshll.u32 %s731, 4
          %s740 = int_to_ptr.vmem [resolvable:$true] %s739
          %742 = dma.hbm_to_vmem [thread:$0]  %s738, 128, %s740, %s728
        $region104: #{tpu_custom_call.1} parent=95 // pred_fallthru
          _
        // Predicated region
        $region105: #{tpu_custom_call.1} parent=95 // pred_check
          %p743 = pneg %p115
        $region106: #{tpu_custom_call.1} parent=95 // pred_check_branch
          %745 = sbr.rel (%p743) target = $region108
        $region107: #{tpu_custom_call.1} parent=95 // pred_region
          %s746 = sand.u32 %s43, 1
          %s747 = scalar_lea.sflag [#allocation6], %s746
          %s748 = sand.u32 %s105, 1
          %s749 = smul.addr %s748, 8
          %s750 = scalar_lea.vmem [#allocation7], %s749
          %752 = vsyncadd %s747, 0
          %s753 = smul.addr %s43, 8
          %s754 = scalar_lea.hbm %s2, %s753
          %s756 = sshll.u32 %s754, 4
          %s757 = int_to_ptr.hbm [resolvable:$true] %s756
          %s758 = sshll.u32 %s750, 4
          %s759 = int_to_ptr.vmem [resolvable:$true] %s758
          %761 = dma.hbm_to_vmem [thread:$0]  %s757, 128, %s759, %s747
        $region108: #{tpu_custom_call.1} parent=95 // pred_fallthru
          _
        // Predicated region
        $region109: #{tpu_custom_call.1} parent=95 // pred_check
          %p762 = pneg %p141
        $region110: #{tpu_custom_call.1} parent=95 // pred_check_branch
          %764 = sbr.rel (%p762) target = $region112
        $region111: #{tpu_custom_call.1} parent=95 // pred_region
          %s765 = sand.u32 %s43, 1
          %s766 = scalar_lea.sflag [#allocation9], %s765
          %s767 = sand.u32 %s131, 1
          %s768 = smul.addr %s767, 8
          %s769 = scalar_lea.vmem [#allocation8], %s768
          %771 = vsyncadd %s766, 0
          %s772 = smul.addr %s43, 8
          %s773 = scalar_lea.hbm %s3, %s772
          %s775 = sshll.u32 %s773, 4
          %s776 = int_to_ptr.hbm [resolvable:$true] %s775
          %s777 = sshll.u32 %s769, 4
          %s778 = int_to_ptr.vmem [resolvable:$true] %s777
          %780 = dma.hbm_to_vmem [thread:$0]  %s776, 128, %s778, %s766
        $region112: #{tpu_custom_call.1} parent=95 // pred_fallthru
          _
      $region96: #{tpu_custom_call.1} parent=5 // pred_fallthru
        _
      %p781 = scmp.le.s32.totalorder 1, %s43
      %p782 = scmp.lt.s32.totalorder %s43, 3
      %p783 = pnand %p781, %p782
      %p784 = pneg %p783
      // Predicated region
      $region113: #{tpu_custom_call.1} parent=5 // pred_check
        _
      $region114: #{tpu_custom_call.1} parent=5 // pred_check_branch
        %786 = sbr.rel (%p783) target = $region116
      $region115: #{tpu_custom_call.1} parent=5 // pred_region
        %s787 = ssub.s32 %s43, 1
        %s788 = sand.u32 %s56, 1
        %s789 = scalar_lea.sflag [#allocation3], %s788
        %s790 = sand.u32 %s56, 1
        %s791 = smul.addr %s790, 8
        %s792 = scalar_lea.vmem [#allocation2], %s791
        // Predicated region
        $region117: #{tpu_custom_call.1} parent=115 // pred_check
          %p793 = pneg %p69
        $region118: #{tpu_custom_call.1} parent=115 // pred_check_branch
          %795 = sbr.rel (%p793) target = $region120
        $region119: #{tpu_custom_call.1} parent=115 // pred_region
          %797 = dma.done %s789, 128
        $region120: #{tpu_custom_call.1} parent=115 // pred_fallthru
          _
        %s798 = sand.u32 %s48, 1
        %s799 = scalar_lea.sflag [#allocation6], %s798
        %s800 = sand.u32 %s82, 1
        %s801 = smul.addr %s800, 8
        %s802 = scalar_lea.vmem [#allocation5], %s801
        // Predicated region
        $region121: #{tpu_custom_call.1} parent=115 // pred_check
          %p803 = pneg %p95
        $region122: #{tpu_custom_call.1} parent=115 // pred_check_branch
          %805 = sbr.rel (%p803) target = $region124
        $region123: #{tpu_custom_call.1} parent=115 // pred_region
          %807 = dma.done %s799, 128
        $region124: #{tpu_custom_call.1} parent=115 // pred_fallthru
          _
        %s808 = sand.u32 %s48, 1
        %s809 = scalar_lea.sflag [#allocation6], %s808
        %s810 = sand.u32 %s108, 1
        %s811 = smul.addr %s810, 8
        %s812 = scalar_lea.vmem [#allocation7], %s811
        // Predicated region
        $region125: #{tpu_custom_call.1} parent=115 // pred_check
          %p813 = pneg %p121
        $region126: #{tpu_custom_call.1} parent=115 // pred_check_branch
          %815 = sbr.rel (%p813) target = $region128
        $region127: #{tpu_custom_call.1} parent=115 // pred_region
          %817 = dma.done %s809, 128
        $region128: #{tpu_custom_call.1} parent=115 // pred_fallthru
          _
        %s818 = sand.u32 %s48, 1
        %s819 = scalar_lea.sflag [#allocation9], %s818
        %s820 = sand.u32 %s134, 1
        %s821 = smul.addr %s820, 8
        %s822 = scalar_lea.vmem [#allocation8], %s821
        // Predicated region
        $region129: #{tpu_custom_call.1} parent=115 // pred_check
          %p823 = pneg %p147
        $region130: #{tpu_custom_call.1} parent=115 // pred_check_branch
          %825 = sbr.rel (%p823) target = $region132
        $region131: #{tpu_custom_call.1} parent=115 // pred_region
          %827 = dma.done %s819, 128
        $region132: #{tpu_custom_call.1} parent=115 // pred_fallthru
          _
        // Predicated region
        $region133: #{tpu_custom_call.1} parent=115 // pred_check
          %p828 = pneg %p336
        $region134: #{tpu_custom_call.1} parent=115 // pred_check_branch
          %830 = sbr.rel (%p828) target = $region136
        $region135: #{tpu_custom_call.1} parent=115 // pred_region
          %832 = dma.done [#allocation9], 512
        $region136: #{tpu_custom_call.1} parent=115 // pred_fallthru
          _
        // Predicated region
        $region137: #{tpu_custom_call.1} parent=115 // pred_check
          %p833 = pneg %p378
        $region138: #{tpu_custom_call.1} parent=115 // pred_check_branch
          %835 = sbr.rel (%p833) target = $region140
        $region139: #{tpu_custom_call.1} parent=115 // pred_region
          %837 = dma.done [#allocation12], 512
        $region140: #{tpu_custom_call.1} parent=115 // pred_fallthru
          _
        // Predicated region
        $region141: #{tpu_custom_call.1} parent=115 // pred_check
          %p838 = pneg %p462
        $region142: #{tpu_custom_call.1} parent=115 // pred_check_branch
          %840 = sbr.rel (%p838) target = $region144
        $region143: #{tpu_custom_call.1} parent=115 // pred_region
          %842 = dma.done [#allocation12], 512
        $region144: #{tpu_custom_call.1} parent=115 // pred_fallthru
          _
        %s843 = sand.u32 %s56, 1
        %s844 = scalar_lea.sflag [#allocation3], %s843
        %s845 = sand.u32 %s56, 1
        %s846 = smul.addr %s845, 8
        %s847 = scalar_lea.vmem [#allocation2], %s846
        %p848 = pneg %p69
        %p849 = pneg %p66
        %s850 = sand.u32 %s48, 1
        %s851 = scalar_lea.sflag [#allocation6], %s850
        %s852 = sand.u32 %s82, 1
        %s853 = smul.addr %s852, 8
        %s854 = scalar_lea.vmem [#allocation5], %s853
        %p855 = pneg %p95
        %p856 = pneg %p92
        %s857 = sand.u32 %s48, 1
        %s858 = scalar_lea.sflag [#allocation6], %s857
        %s859 = sand.u32 %s108, 1
        %s860 = smul.addr %s859, 8
        %s861 = scalar_lea.vmem [#allocation7], %s860
        %p862 = pneg %p121
        %p863 = pneg %p118
        %s864 = sand.u32 %s48, 1
        %s865 = scalar_lea.sflag [#allocation9], %s864
        %s866 = sand.u32 %s134, 1
        %s867 = smul.addr %s866, 8
        %s868 = scalar_lea.vmem [#allocation8], %s867
        %p869 = pneg %p147
        %p870 = pneg %p144
        %p871 = pneg %p168
        %p872 = pneg %p165
        %p873 = pneg %p189
        %p874 = pneg %p186
        %p875 = pneg %p210
        %p876 = pneg %p207
        %p877 = pneg %p231
        %p878 = pneg %p228
        %p879 = pneg %p252
        %p880 = pneg %p249
        %p881 = pneg %p273
        %p882 = pneg %p270
        %p883 = pneg %p294
        %p884 = pneg %p291
        %p885 = pneg %p315
        %p886 = pneg %p312
        %p887 = pneg %p336
        %p888 = pneg %p333
        %p889 = pneg %p357
        %p890 = pneg %p354
        %p891 = pneg %p378
        %p892 = pneg %p375
        %p893 = pneg %p399
        %p894 = pneg %p396
        %p895 = pneg %p420
        %p896 = pneg %p417
        %p897 = pneg %p441
        %p898 = pneg %p438
        %p899 = pneg %p462
        %p900 = pneg %p459
        %p901 = pneg %p483
        %p902 = pneg %p480
        %p903 = pneg %p504
        %p904 = pneg %p501
        %p905 = pneg %p525
        %p906 = pneg %p522
        %p907 = pneg %p546
        %p908 = pneg %p543
        %p909 = pneg %p567
        %p910 = pneg %p564
        %p911 = pneg %p593
        %p912 = pneg %p590
        %s913 = sand.u32 %s580, 1
        %s914 = scalar_lea.sflag [#allocation4], %s913
        %s915 = sand.u32 %s580, 1
        %s916 = smul.addr %s915, 8
        %s917 = scalar_lea.vmem [#allocation14], %s916
        %v918 = vld [vmem:[%s792] sm:$0xff]
        %v919 = vld [vmem:[%s802] sm:$0xff]
        %v920 = vld [vmem:[%s812] sm:$0xff]
        %v921 = vld [vmem:[%s822] sm:$0xff]
        %v922 = vld [vmem:[%s8] sm:$0x1]
        %v923 = vld [vmem:[%s9] sm:$0x1]
        %vm924 = vcmask 261120
        %v925 = vsel %vm924, %v918, 0.0
        %926 = vadd.xlane.f32.xlu0 %v925
        %v927 = vpop.xlane.xlu0 %926
        %v928 = vrcp.pop 32.0
        %v929 = vmul.f32 32.0, %v928
        %v930 = vsub.f32 1.0, %v929
        %v931 = vmul.f32 %v928, %v930
        %v932 = vadd.f32 %v928, %v931
        %vm933 = vweird.f32 %v928
        %v934 = vsel %vm933, %v928, %v932
        %v935 = vmul.f32 %v927, %v934
        %v936 = vsub.f32 %v918, %v935
        %v937 = vmul.f32 %v936, %v936
        %v938 = vsel %vm924, %v937, 0.0
        %939 = vadd.xlane.f32.xlu0 %v938
        %v940 = vpop.xlane.xlu0 %939
        %v941 = vmul.f32 %v940, %v934
        %v943 = vperm.slane %v922, 0
        %v945 = vmul.f32 %v943, %v936
        %v946 = vadd.f32 %v941, 1e-06
        %v947 = vrsqrt.pop %v946
        %v948 = vmul.f32 %v947, %v946
        %v949 = vmul.f32 %v948, %v947
        %v950 = vmul.f32 0.5, %v949
        %v951 = vsub.f32 1.5, %v950
        %v952 = vmul.f32 %v947, %v951
        %vm953 = vweird.f32 %v946
        %vm954 = vweird.f32 %v947
        %vm955 = vmor %vm953, %vm954
        %v956 = vsel %vm955, %v947, %v952
        %v957 = vmul.f32 %v945, %v956
        %v959 = vperm.slane %v923, 0
        %v961 = vadd.f32 %v957, %v959
        %v962 = vld [vmem:[%s4] sm:$0xff]
        %v963 = vld [vmem:[%s4 + $0x8] sm:$0xff]
        %v964 = vld [vmem:[%s4 + $0x10] sm:$0xff]
        %v965 = vld [vmem:[%s4 + $0x18] sm:$0xff]
        %v966 = vld [vmem:[%s5] sm:$0x1]
        %v968 = vperm.slane %v966, 0
        %v971 = vsel %vm924, %v961, 0
        %973 = vmatpush.msra.mxu0 0.0
        %974 = vmatpush.msra.mxu0 0.0
        %975 = vmatpush.msra.mxu0 0.0
        %976 = vmatpush.msra.mxu0 0.0
        %977 = vmatpush.msra.mxu0 0.0
        %978 = vmatpush.msra.mxu0 0.0
        %979 = vmatpush.msra.mxu0 0.0
        %980 = vmatpush.msra.mxu0 0.0
        %981 = vmatpush.msra.mxu0 0.0
        %982 = vmatpush.msra.mxu0 0.0
        %983 = vmatpush.msra.mxu0 0.0
        %984 = vmatpush.msra.mxu0 0.0
        %v985 = vand.u32 %v965, 4294901760
        %986 = vmatpush.msra.mxu0 %v985
        %v987 = vand.u32 %v964, 4294901760
        %988 = vmatpush.msra.mxu0 %v987
        %v989 = vand.u32 %v963, 4294901760
        %990 = vmatpush.msra.mxu0 %v989
        %v991 = vand.u32 %v962, 4294901760
        %992 = vmatpush.msra.mxu0 %v991
        %v993 = vand.u32 %v971, 4294901760
        %v994 = vsub.f32 %v971, %v993
        %v995 = vand.u32 %v994, 4294901760
        %v996 = vsub.f32 %v994, %v995
        %v997 = vand.u32 %v996, 4294901760
        %998 = vmatmul.f32.gmra.mxu0 %v997
        %v999 = vpop.f32.mrf.mxu0
        %v1000 = vadd.f32 %v968, %v999
        %1001 = vdwg.mxu0
        %1002 = vmatpush.msra.mxu0 0.0
        %1003 = vmatpush.msra.mxu0 0.0
        %1004 = vmatpush.msra.mxu0 0.0
        %1005 = vmatpush.msra.mxu0 0.0
        %1006 = vmatpush.msra.mxu0 0.0
        %1007 = vmatpush.msra.mxu0 0.0
        %1008 = vmatpush.msra.mxu0 0.0
        %1009 = vmatpush.msra.mxu0 0.0
        %1010 = vmatpush.msra.mxu0 0.0
        %1011 = vmatpush.msra.mxu0 0.0
        %1012 = vmatpush.msra.mxu0 0.0
        %1013 = vmatpush.msra.mxu0 0.0
        %v1014 = vand.u32 %v965, 4294901760
        %v1015 = vsub.f32 %v965, %v1014
        %v1016 = vand.u32 %v1015, 4294901760
        %v1017 = vsub.f32 %v1015, %v1016
        %v1018 = vand.u32 %v1017, 4294901760
        %1019 = vmatpush.msra.mxu0 %v1018
        %v1020 = vand.u32 %v964, 4294901760
        %v1021 = vsub.f32 %v964, %v1020
        %v1022 = vand.u32 %v1021, 4294901760
        %v1023 = vsub.f32 %v1021, %v1022
        %v1024 = vand.u32 %v1023, 4294901760
        %1025 = vmatpush.msra.mxu0 %v1024
        %v1026 = vand.u32 %v963, 4294901760
        %v1027 = vsub.f32 %v963, %v1026
        %v1028 = vand.u32 %v1027, 4294901760
        %v1029 = vsub.f32 %v1027, %v1028
        %v1030 = vand.u32 %v1029, 4294901760
        %1031 = vmatpush.msra.mxu0 %v1030
        %v1032 = vand.u32 %v962, 4294901760
        %v1033 = vsub.f32 %v962, %v1032
        %v1034 = vand.u32 %v1033, 4294901760
        %v1035 = vsub.f32 %v1033, %v1034
        %v1036 = vand.u32 %v1035, 4294901760
        %1037 = vmatpush.msra.mxu0 %v1036
        %v1038 = vand.u32 %v971, 4294901760
        %1039 = vmatmul.f32.gmra.mxu0 %v1038
        %v1040 = vpop.f32.mrf.mxu0
        %v1041 = vadd.f32 %v1000, %v1040
        %1042 = vdwg.mxu0
        %1043 = vmatpush.msra.mxu0 0.0
        %1044 = vmatpush.msra.mxu0 0.0
        %1045 = vmatpush.msra.mxu0 0.0
        %1046 = vmatpush.msra.mxu0 0.0
        %1047 = vmatpush.msra.mxu0 0.0
        %1048 = vmatpush.msra.mxu0 0.0
        %1049 = vmatpush.msra.mxu0 0.0
        %1050 = vmatpush.msra.mxu0 0.0
        %1051 = vmatpush.msra.mxu0 0.0
        %1052 = vmatpush.msra.mxu0 0.0
        %1053 = vmatpush.msra.mxu0 0.0
        %1054 = vmatpush.msra.mxu0 0.0
        %v1055 = vand.u32 %v965, 4294901760
        %v1056 = vsub.f32 %v965, %v1055
        %1057 = vmatpush.msra.mxu0 %v1056
        %v1058 = vand.u32 %v964, 4294901760
        %v1059 = vsub.f32 %v964, %v1058
        %1060 = vmatpush.msra.mxu0 %v1059
        %v1061 = vand.u32 %v963, 4294901760
        %v1062 = vsub.f32 %v963, %v1061
        %1063 = vmatpush.msra.mxu0 %v1062
        %v1064 = vand.u32 %v962, 4294901760
        %v1065 = vsub.f32 %v962, %v1064
        %1066 = vmatpush.msra.mxu0 %v1065
        %v1067 = vand.u32 %v971, 4294901760
        %v1068 = vsub.f32 %v971, %v1067
        %1069 = vmatmul.f32.gmra.mxu0 %v1068
        %v1070 = vpop.f32.mrf.mxu0
        %v1071 = vadd.f32 %v1041, %v1070
        %1072 = vdwg.mxu0
        %1073 = vmatpush.msra.mxu0 0.0
        %1074 = vmatpush.msra.mxu0 0.0
        %1075 = vmatpush.msra.mxu0 0.0
        %1076 = vmatpush.msra.mxu0 0.0
        %1077 = vmatpush.msra.mxu0 0.0
        %1078 = vmatpush.msra.mxu0 0.0
        %1079 = vmatpush.msra.mxu0 0.0
        %1080 = vmatpush.msra.mxu0 0.0
        %1081 = vmatpush.msra.mxu0 0.0
        %1082 = vmatpush.msra.mxu0 0.0
        %1083 = vmatpush.msra.mxu0 0.0
        %1084 = vmatpush.msra.mxu0 0.0
        %v1085 = vand.u32 %v965, 4294901760
        %1086 = vmatpush.msra.mxu0 %v1085
        %v1087 = vand.u32 %v964, 4294901760
        %1088 = vmatpush.msra.mxu0 %v1087
        %v1089 = vand.u32 %v963, 4294901760
        %1090 = vmatpush.msra.mxu0 %v1089
        %v1091 = vand.u32 %v962, 4294901760
        %1092 = vmatpush.msra.mxu0 %v1091
        %v1093 = vand.u32 %v971, 4294901760
        %v1094 = vsub.f32 %v971, %v1093
        %v1095 = vand.u32 %v1094, 4294901760
        %1096 = vmatmul.f32.gmra.mxu0 %v1095
        %v1097 = vpop.f32.mrf.mxu0
        %v1098 = vadd.f32 %v1071, %v1097
        %1099 = vdwg.mxu0
        %1100 = vmatpush.msra.mxu0 0.0
        %1101 = vmatpush.msra.mxu0 0.0
        %1102 = vmatpush.msra.mxu0 0.0
        %1103 = vmatpush.msra.mxu0 0.0
        %1104 = vmatpush.msra.mxu0 0.0
        %1105 = vmatpush.msra.mxu0 0.0
        %1106 = vmatpush.msra.mxu0 0.0
        %1107 = vmatpush.msra.mxu0 0.0
        %1108 = vmatpush.msra.mxu0 0.0
        %1109 = vmatpush.msra.mxu0 0.0
        %1110 = vmatpush.msra.mxu0 0.0
        %1111 = vmatpush.msra.mxu0 0.0
        %v1112 = vand.u32 %v965, 4294901760
        %v1113 = vsub.f32 %v965, %v1112
        %v1114 = vand.u32 %v1113, 4294901760
        %1115 = vmatpush.msra.mxu0 %v1114
        %v1116 = vand.u32 %v964, 4294901760
        %v1117 = vsub.f32 %v964, %v1116
        %v1118 = vand.u32 %v1117, 4294901760
        %1119 = vmatpush.msra.mxu0 %v1118
        %v1120 = vand.u32 %v963, 4294901760
        %v1121 = vsub.f32 %v963, %v1120
        %v1122 = vand.u32 %v1121, 4294901760
        %1123 = vmatpush.msra.mxu0 %v1122
        %v1124 = vand.u32 %v962, 4294901760
        %v1125 = vsub.f32 %v962, %v1124
        %v1126 = vand.u32 %v1125, 4294901760
        %1127 = vmatpush.msra.mxu0 %v1126
        %v1128 = vand.u32 %v971, 4294901760
        %1129 = vmatmul.f32.gmra.mxu0 %v1128
        %v1130 = vpop.f32.mrf.mxu0
        %v1131 = vadd.f32 %v1098, %v1130
        %1132 = vdwg.mxu0
        %1133 = vmatpush.msra.mxu0 0.0
        %1134 = vmatpush.msra.mxu0 0.0
        %1135 = vmatpush.msra.mxu0 0.0
        %1136 = vmatpush.msra.mxu0 0.0
        %1137 = vmatpush.msra.mxu0 0.0
        %1138 = vmatpush.msra.mxu0 0.0
        %1139 = vmatpush.msra.mxu0 0.0
        %1140 = vmatpush.msra.mxu0 0.0
        %1141 = vmatpush.msra.mxu0 0.0
        %1142 = vmatpush.msra.mxu0 0.0
        %1143 = vmatpush.msra.mxu0 0.0
        %1144 = vmatpush.msra.mxu0 0.0
        %v1145 = vand.u32 %v965, 4294901760
        %1146 = vmatpush.msra.mxu0 %v1145
        %v1147 = vand.u32 %v964, 4294901760
        %1148 = vmatpush.msra.mxu0 %v1147
        %v1149 = vand.u32 %v963, 4294901760
        %1150 = vmatpush.msra.mxu0 %v1149
        %v1151 = vand.u32 %v962, 4294901760
        %1152 = vmatpush.msra.mxu0 %v1151
        %v1153 = vand.u32 %v971, 4294901760
        %1154 = vmatmul.f32.gmra.mxu0 %v1153
        %v1155 = vpop.f32.mrf.mxu0
        %v1156 = vadd.f32 %v1131, %v1155
        %1157 = vdwg.mxu0
        %1159 = vrot.lane.b32.xlu0 %v1156, 96
        %v1160 = vpop.permute.xlu0 %1159
        %vm1161 = vcmask 64512
        %v1162 = vsel %vm1161, %v1156, 0
        %v1164 = vsel %vm1161, %v1160, 0
        %1166 = vmatpush.xpose.msra.mxu0 0.0
        %1167 = vmatpush.xpose.msra.mxu0 0.0
        %1168 = vmatpush.xpose.msra.mxu0 0.0
        %1169 = vmatpush.xpose.msra.mxu0 0.0
        %1170 = vmatpush.xpose.msra.mxu0 0.0
        %1171 = vmatpush.xpose.msra.mxu0 0.0
        %1172 = vmatpush.xpose.msra.mxu0 0.0
        %1173 = vmatpush.xpose.msra.mxu0 0.0
        %1174 = vmatpush.xpose.msra.mxu0 0.0
        %1175 = vmatpush.xpose.msra.mxu0 0.0
        %1176 = vmatpush.xpose.msra.mxu0 0.0
        %1177 = vmatpush.xpose.msra.mxu0 0.0
        %1178 = vmatpush.xpose.msra.mxu0 0.0
        %1179 = vmatpush.xpose.msra.mxu0 0.0
        %1180 = vmatpush.xpose.msra.mxu0 0.0
        %v1181 = vand.u32 %v1164, 4294901760
        %1182 = vmatpush.xpose.msra.mxu0 %v1181
        %v1183 = vand.u32 %v1162, 4294901760
        %v1184 = vsub.f32 %v1162, %v1183
        %v1185 = vand.u32 %v1184, 4294901760
        %v1186 = vsub.f32 %v1184, %v1185
        %v1187 = vand.u32 %v1186, 4294901760
        %1188 = vmatmul.f32.gmra.mxu0 %v1187
        %v1189 = vpop.f32.mrf.mxu0
        %v1190 = vadd.f32 0.0, %v1189
        %1191 = vdwg.mxu0
        %1192 = vmatpush.xpose.msra.mxu0 0.0
        %1193 = vmatpush.xpose.msra.mxu0 0.0
        %1194 = vmatpush.xpose.msra.mxu0 0.0
        %1195 = vmatpush.xpose.msra.mxu0 0.0
        %1196 = vmatpush.xpose.msra.mxu0 0.0
        %1197 = vmatpush.xpose.msra.mxu0 0.0
        %1198 = vmatpush.xpose.msra.mxu0 0.0
        %1199 = vmatpush.xpose.msra.mxu0 0.0
        %1200 = vmatpush.xpose.msra.mxu0 0.0
        %1201 = vmatpush.xpose.msra.mxu0 0.0
        %1202 = vmatpush.xpose.msra.mxu0 0.0
        %1203 = vmatpush.xpose.msra.mxu0 0.0
        %1204 = vmatpush.xpose.msra.mxu0 0.0
        %1205 = vmatpush.xpose.msra.mxu0 0.0
        %1206 = vmatpush.xpose.msra.mxu0 0.0
        %v1207 = vand.u32 %v1164, 4294901760
        %v1208 = vsub.f32 %v1164, %v1207
        %v1209 = vand.u32 %v1208, 4294901760
        %v1210 = vsub.f32 %v1208, %v1209
        %v1211 = vand.u32 %v1210, 4294901760
        %1212 = vmatpush.xpose.msra.mxu0 %v1211
        %v1213 = vand.u32 %v1162, 4294901760
        %1214 = vmatmul.f32.gmra.mxu0 %v1213
        %v1215 = vpop.f32.mrf.mxu0
        %v1216 = vadd.f32 %v1190, %v1215
        %1217 = vdwg.mxu0
        %1218 = vmatpush.xpose.msra.mxu0 0.0
        %1219 = vmatpush.xpose.msra.mxu0 0.0
        %1220 = vmatpush.xpose.msra.mxu0 0.0
        %1221 = vmatpush.xpose.msra.mxu0 0.0
        %1222 = vmatpush.xpose.msra.mxu0 0.0
        %1223 = vmatpush.xpose.msra.mxu0 0.0
        %1224 = vmatpush.xpose.msra.mxu0 0.0
        %1225 = vmatpush.xpose.msra.mxu0 0.0
        %1226 = vmatpush.xpose.msra.mxu0 0.0
        %1227 = vmatpush.xpose.msra.mxu0 0.0
        %1228 = vmatpush.xpose.msra.mxu0 0.0
        %1229 = vmatpush.xpose.msra.mxu0 0.0
        %1230 = vmatpush.xpose.msra.mxu0 0.0
        %1231 = vmatpush.xpose.msra.mxu0 0.0
        %1232 = vmatpush.xpose.msra.mxu0 0.0
        %v1233 = vand.u32 %v1164, 4294901760
        %v1234 = vsub.f32 %v1164, %v1233
        %1235 = vmatpush.xpose.msra.mxu0 %v1234
        %v1236 = vand.u32 %v1162, 4294901760
        %v1237 = vsub.f32 %v1162, %v1236
        %1238 = vmatmul.f32.gmra.mxu0 %v1237
        %v1239 = vpop.f32.mrf.mxu0
        %v1240 = vadd.f32 %v1216, %v1239
        %1241 = vdwg.mxu0
        %1242 = vmatpush.xpose.msra.mxu0 0.0
        %1243 = vmatpush.xpose.msra.mxu0 0.0
        %1244 = vmatpush.xpose.msra.mxu0 0.0
        %1245 = vmatpush.xpose.msra.mxu0 0.0
        %1246 = vmatpush.xpose.msra.mxu0 0.0
        %1247 = vmatpush.xpose.msra.mxu0 0.0
        %1248 = vmatpush.xpose.msra.mxu0 0.0
        %1249 = vmatpush.xpose.msra.mxu0 0.0
        %1250 = vmatpush.xpose.msra.mxu0 0.0
        %1251 = vmatpush.xpose.msra.mxu0 0.0
        %1252 = vmatpush.xpose.msra.mxu0 0.0
        %1253 = vmatpush.xpose.msra.mxu0 0.0
        %1254 = vmatpush.xpose.msra.mxu0 0.0
        %1255 = vmatpush.xpose.msra.mxu0 0.0
        %1256 = vmatpush.xpose.msra.mxu0 0.0
        %v1257 = vand.u32 %v1164, 4294901760
        %1258 = vmatpush.xpose.msra.mxu0 %v1257
        %v1259 = vand.u32 %v1162, 4294901760
        %v1260 = vsub.f32 %v1162, %v1259
        %v1261 = vand.u32 %v1260, 4294901760
        %1262 = vmatmul.f32.gmra.mxu0 %v1261
        %v1263 = vpop.f32.mrf.mxu0
        %v1264 = vadd.f32 %v1240, %v1263
        %1265 = vdwg.mxu0
        %1266 = vmatpush.xpose.msra.mxu0 0.0
        %1267 = vmatpush.xpose.msra.mxu0 0.0
        %1268 = vmatpush.xpose.msra.mxu0 0.0
        %1269 = vmatpush.xpose.msra.mxu0 0.0
        %1270 = vmatpush.xpose.msra.mxu0 0.0
        %1271 = vmatpush.xpose.msra.mxu0 0.0
        %1272 = vmatpush.xpose.msra.mxu0 0.0
        %1273 = vmatpush.xpose.msra.mxu0 0.0
        %1274 = vmatpush.xpose.msra.mxu0 0.0
        %1275 = vmatpush.xpose.msra.mxu0 0.0
        %1276 = vmatpush.xpose.msra.mxu0 0.0
        %1277 = vmatpush.xpose.msra.mxu0 0.0
        %1278 = vmatpush.xpose.msra.mxu0 0.0
        %1279 = vmatpush.xpose.msra.mxu0 0.0
        %1280 = vmatpush.xpose.msra.mxu0 0.0
        %v1281 = vand.u32 %v1164, 4294901760
        %v1282 = vsub.f32 %v1164, %v1281
        %v1283 = vand.u32 %v1282, 4294901760
        %1284 = vmatpush.xpose.msra.mxu0 %v1283
        %v1285 = vand.u32 %v1162, 4294901760
        %1286 = vmatmul.f32.gmra.mxu0 %v1285
        %v1287 = vpop.f32.mrf.mxu0
        %v1288 = vadd.f32 %v1264, %v1287
        %1289 = vdwg.mxu0
        %1290 = vmatpush.xpose.msra.mxu0 0.0
        %1291 = vmatpush.xpose.msra.mxu0 0.0
        %1292 = vmatpush.xpose.msra.mxu0 0.0
        %1293 = vmatpush.xpose.msra.mxu0 0.0
        %1294 = vmatpush.xpose.msra.mxu0 0.0
        %1295 = vmatpush.xpose.msra.mxu0 0.0
        %1296 = vmatpush.xpose.msra.mxu0 0.0
        %1297 = vmatpush.xpose.msra.mxu0 0.0
        %1298 = vmatpush.xpose.msra.mxu0 0.0
        %1299 = vmatpush.xpose.msra.mxu0 0.0
        %1300 = vmatpush.xpose.msra.mxu0 0.0
        %1301 = vmatpush.xpose.msra.mxu0 0.0
        %1302 = vmatpush.xpose.msra.mxu0 0.0
        %1303 = vmatpush.xpose.msra.mxu0 0.0
        %1304 = vmatpush.xpose.msra.mxu0 0.0
        %v1305 = vand.u32 %v1164, 4294901760
        %1306 = vmatpush.xpose.msra.mxu0 %v1305
        %v1307 = vand.u32 %v1162, 4294901760
        %1308 = vmatmul.f32.gmra.mxu0 %v1307
        %v1309 = vpop.f32.mrf.mxu0
        %v1310 = vadd.f32 %v1288, %v1309
        %1311 = vdwg.mxu0
        %v1312 = vmul.f32 %v1310, 0.35355338
        %v1313 = vadd.f32 %v1312, %v920
        %v1314 = vsel %vm1161, %v1313, -inf
        %1315 = vmax.xlane.f32.xlu0 %v1314
        %v1316 = vpop.xlane.xlu0 %1315
        %v1317 = vsub.f32 %v1313, %v1316
        %v1318 = vmul.f32 %v1317, 1.442695
        %v1319 = vpow.pop %v1318
        %v1320 = vsel %vm1161, %v1319, 0.0
        %1321 = vadd.xlane.f32.xlu0 %v1320
        %v1322 = vpop.xlane.xlu0 %1321
        %v1323 = vrcp.pop %v1322
        %v1324 = vmul.f32 %v1322, %v1323
        %v1325 = vsub.f32 1.0, %v1324
        %v1326 = vmul.f32 %v1323, %v1325
        %v1327 = vadd.f32 %v1323, %v1326
        %vm1328 = vweird.f32 %v1322
        %vm1329 = vweird.f32 %v1323
        %vm1330 = vmor %vm1328, %vm1329
        %v1331 = vsel %vm1330, %v1323, %v1327
        %v1332 = vand.u32 2147483647, %v1322
        %vm1333 = vcmp.eq.f32.partialorder %v1332, 8.507059e+37
        %v1334 = vand.u32 %v1322, 2147483648
        %v1335 = vor.u32 1.1754944e-38, %v1334
        %v1336 = vsel %vm1333, %v1335, %v1331
        %v1337 = vmul.f32 %v1319, %v1336
        %1338 = vrot.lane.b32.xlu0 %v1156, 64
        %v1339 = vpop.permute.xlu0 %1338
        %v1342 = vsel %vm1161, %v1337, 0
        %1344 = vmatpush.msra.mxu0 0.0
        %1345 = vmatpush.msra.mxu0 0.0
        %1346 = vmatpush.msra.mxu0 0.0
        %1347 = vmatpush.msra.mxu0 0.0
        %1348 = vmatpush.msra.mxu0 0.0
        %1349 = vmatpush.msra.mxu0 0.0
        %1350 = vmatpush.msra.mxu0 0.0
        %1351 = vmatpush.msra.mxu0 0.0
        %1352 = vmatpush.msra.mxu0 0.0
        %1353 = vmatpush.msra.mxu0 0.0
        %1354 = vmatpush.msra.mxu0 0.0
        %1355 = vmatpush.msra.mxu0 0.0
        %1356 = vmatpush.msra.mxu0 0.0
        %1357 = vmatpush.msra.mxu0 0.0
        %1358 = vmatpush.msra.mxu0 0.0
        %v1359 = vand.u32 %v1339, 4294901760
        %1360 = vmatpush.msra.mxu0 %v1359
        %v1361 = vand.u32 %v1342, 4294901760
        %v1362 = vsub.f32 %v1342, %v1361
        %v1363 = vand.u32 %v1362, 4294901760
        %v1364 = vsub.f32 %v1362, %v1363
        %v1365 = vand.u32 %v1364, 4294901760
        %1366 = vmatmul.f32.gmra.mxu0 %v1365
        %v1367 = vpop.f32.mrf.mxu0
        %v1368 = vadd.f32 0.0, %v1367
        %1369 = vdwg.mxu0
        %1370 = vmatpush.msra.mxu0 0.0
        %1371 = vmatpush.msra.mxu0 0.0
        %1372 = vmatpush.msra.mxu0 0.0
        %1373 = vmatpush.msra.mxu0 0.0
        %1374 = vmatpush.msra.mxu0 0.0
        %1375 = vmatpush.msra.mxu0 0.0
        %1376 = vmatpush.msra.mxu0 0.0
        %1377 = vmatpush.msra.mxu0 0.0
        %1378 = vmatpush.msra.mxu0 0.0
        %1379 = vmatpush.msra.mxu0 0.0
        %1380 = vmatpush.msra.mxu0 0.0
        %1381 = vmatpush.msra.mxu0 0.0
        %1382 = vmatpush.msra.mxu0 0.0
        %1383 = vmatpush.msra.mxu0 0.0
        %1384 = vmatpush.msra.mxu0 0.0
        %v1385 = vand.u32 %v1339, 4294901760
        %v1386 = vsub.f32 %v1339, %v1385
        %v1387 = vand.u32 %v1386, 4294901760
        %v1388 = vsub.f32 %v1386, %v1387
        %v1389 = vand.u32 %v1388, 4294901760
        %1390 = vmatpush.msra.mxu0 %v1389
        %v1391 = vand.u32 %v1342, 4294901760
        %1392 = vmatmul.f32.gmra.mxu0 %v1391
        %v1393 = vpop.f32.mrf.mxu0
        %v1394 = vadd.f32 %v1368, %v1393
        %1395 = vdwg.mxu0
        %1396 = vmatpush.msra.mxu0 0.0
        %1397 = vmatpush.msra.mxu0 0.0
        %1398 = vmatpush.msra.mxu0 0.0
        %1399 = vmatpush.msra.mxu0 0.0
        %1400 = vmatpush.msra.mxu0 0.0
        %1401 = vmatpush.msra.mxu0 0.0
        %1402 = vmatpush.msra.mxu0 0.0
        %1403 = vmatpush.msra.mxu0 0.0
        %1404 = vmatpush.msra.mxu0 0.0
        %1405 = vmatpush.msra.mxu0 0.0
        %1406 = vmatpush.msra.mxu0 0.0
        %1407 = vmatpush.msra.mxu0 0.0
        %1408 = vmatpush.msra.mxu0 0.0
        %1409 = vmatpush.msra.mxu0 0.0
        %1410 = vmatpush.msra.mxu0 0.0
        %v1411 = vand.u32 %v1339, 4294901760
        %v1412 = vsub.f32 %v1339, %v1411
        %1413 = vmatpush.msra.mxu0 %v1412
        %v1414 = vand.u32 %v1342, 4294901760
        %v1415 = vsub.f32 %v1342, %v1414
        %1416 = vmatmul.f32.gmra.mxu0 %v1415
        %v1417 = vpop.f32.mrf.mxu0
        %v1418 = vadd.f32 %v1394, %v1417
        %1419 = vdwg.mxu0
        %1420 = vmatpush.msra.mxu0 0.0
        %1421 = vmatpush.msra.mxu0 0.0
        %1422 = vmatpush.msra.mxu0 0.0
        %1423 = vmatpush.msra.mxu0 0.0
        %1424 = vmatpush.msra.mxu0 0.0
        %1425 = vmatpush.msra.mxu0 0.0
        %1426 = vmatpush.msra.mxu0 0.0
        %1427 = vmatpush.msra.mxu0 0.0
        %1428 = vmatpush.msra.mxu0 0.0
        %1429 = vmatpush.msra.mxu0 0.0
        %1430 = vmatpush.msra.mxu0 0.0
        %1431 = vmatpush.msra.mxu0 0.0
        %1432 = vmatpush.msra.mxu0 0.0
        %1433 = vmatpush.msra.mxu0 0.0
        %1434 = vmatpush.msra.mxu0 0.0
        %v1435 = vand.u32 %v1339, 4294901760
        %1436 = vmatpush.msra.mxu0 %v1435
        %v1437 = vand.u32 %v1342, 4294901760
        %v1438 = vsub.f32 %v1342, %v1437
        %v1439 = vand.u32 %v1438, 4294901760
        %1440 = vmatmul.f32.gmra.mxu0 %v1439
        %v1441 = vpop.f32.mrf.mxu0
        %v1442 = vadd.f32 %v1418, %v1441
        %1443 = vdwg.mxu0
        %1444 = vmatpush.msra.mxu0 0.0
        %1445 = vmatpush.msra.mxu0 0.0
        %1446 = vmatpush.msra.mxu0 0.0
        %1447 = vmatpush.msra.mxu0 0.0
        %1448 = vmatpush.msra.mxu0 0.0
        %1449 = vmatpush.msra.mxu0 0.0
        %1450 = vmatpush.msra.mxu0 0.0
        %1451 = vmatpush.msra.mxu0 0.0
        %1452 = vmatpush.msra.mxu0 0.0
        %1453 = vmatpush.msra.mxu0 0.0
        %1454 = vmatpush.msra.mxu0 0.0
        %1455 = vmatpush.msra.mxu0 0.0
        %1456 = vmatpush.msra.mxu0 0.0
        %1457 = vmatpush.msra.mxu0 0.0
        %1458 = vmatpush.msra.mxu0 0.0
        %v1459 = vand.u32 %v1339, 4294901760
        %v1460 = vsub.f32 %v1339, %v1459
        %v1461 = vand.u32 %v1460, 4294901760
        %1462 = vmatpush.msra.mxu0 %v1461
        %v1463 = vand.u32 %v1342, 4294901760
        %1464 = vmatmul.f32.gmra.mxu0 %v1463
        %v1465 = vpop.f32.mrf.mxu0
        %v1466 = vadd.f32 %v1442, %v1465
        %1467 = vdwg.mxu0
        %1468 = vmatpush.msra.mxu0 0.0
        %1469 = vmatpush.msra.mxu0 0.0
        %1470 = vmatpush.msra.mxu0 0.0
        %1471 = vmatpush.msra.mxu0 0.0
        %1472 = vmatpush.msra.mxu0 0.0
        %1473 = vmatpush.msra.mxu0 0.0
        %1474 = vmatpush.msra.mxu0 0.0
        %1475 = vmatpush.msra.mxu0 0.0
        %1476 = vmatpush.msra.mxu0 0.0
        %1477 = vmatpush.msra.mxu0 0.0
        %1478 = vmatpush.msra.mxu0 0.0
        %1479 = vmatpush.msra.mxu0 0.0
        %1480 = vmatpush.msra.mxu0 0.0
        %1481 = vmatpush.msra.mxu0 0.0
        %1482 = vmatpush.msra.mxu0 0.0
        %v1483 = vand.u32 %v1339, 4294901760
        %1484 = vmatpush.msra.mxu0 %v1483
        %v1485 = vand.u32 %v1342, 4294901760
        %1486 = vmatmul.f32.gmra.mxu0 %v1485
        %v1487 = vpop.f32.mrf.mxu0
        %v1488 = vadd.f32 %v1466, %v1487
        %1489 = vdwg.mxu0
        %1490 = vrot.lane.b32.xlu0 %v1156, 120
        %v1491 = vpop.permute.xlu0 %1490
        %1492 = vrot.lane.b32.xlu0 %v1156, 88
        %v1493 = vpop.permute.xlu0 %1492
        %v1494 = vsel %vm1161, %v1491, 0
        %v1496 = vsel %vm1161, %v1493, 0
        %1498 = vmatpush.xpose.msra.mxu0 0.0
        %1499 = vmatpush.xpose.msra.mxu0 0.0
        %1500 = vmatpush.xpose.msra.mxu0 0.0
        %1501 = vmatpush.xpose.msra.mxu0 0.0
        %1502 = vmatpush.xpose.msra.mxu0 0.0
        %1503 = vmatpush.xpose.msra.mxu0 0.0
        %1504 = vmatpush.xpose.msra.mxu0 0.0
        %1505 = vmatpush.xpose.msra.mxu0 0.0
        %1506 = vmatpush.xpose.msra.mxu0 0.0
        %1507 = vmatpush.xpose.msra.mxu0 0.0
        %1508 = vmatpush.xpose.msra.mxu0 0.0
        %1509 = vmatpush.xpose.msra.mxu0 0.0
        %1510 = vmatpush.xpose.msra.mxu0 0.0
        %1511 = vmatpush.xpose.msra.mxu0 0.0
        %1512 = vmatpush.xpose.msra.mxu0 0.0
        %v1513 = vand.u32 %v1496, 4294901760
        %1514 = vmatpush.xpose.msra.mxu0 %v1513
        %v1515 = vand.u32 %v1494, 4294901760
        %v1516 = vsub.f32 %v1494, %v1515
        %v1517 = vand.u32 %v1516, 4294901760
        %v1518 = vsub.f32 %v1516, %v1517
        %v1519 = vand.u32 %v1518, 4294901760
        %1520 = vmatmul.f32.gmra.mxu0 %v1519
        %v1521 = vpop.f32.mrf.mxu0
        %v1522 = vadd.f32 0.0, %v1521
        %1523 = vdwg.mxu0
        %1524 = vmatpush.xpose.msra.mxu0 0.0
        %1525 = vmatpush.xpose.msra.mxu0 0.0
        %1526 = vmatpush.xpose.msra.mxu0 0.0
        %1527 = vmatpush.xpose.msra.mxu0 0.0
        %1528 = vmatpush.xpose.msra.mxu0 0.0
        %1529 = vmatpush.xpose.msra.mxu0 0.0
        %1530 = vmatpush.xpose.msra.mxu0 0.0
        %1531 = vmatpush.xpose.msra.mxu0 0.0
        %1532 = vmatpush.xpose.msra.mxu0 0.0
        %1533 = vmatpush.xpose.msra.mxu0 0.0
        %1534 = vmatpush.xpose.msra.mxu0 0.0
        %1535 = vmatpush.xpose.msra.mxu0 0.0
        %1536 = vmatpush.xpose.msra.mxu0 0.0
        %1537 = vmatpush.xpose.msra.mxu0 0.0
        %1538 = vmatpush.xpose.msra.mxu0 0.0
        %v1539 = vand.u32 %v1496, 4294901760
        %v1540 = vsub.f32 %v1496, %v1539
        %v1541 = vand.u32 %v1540, 4294901760
        %v1542 = vsub.f32 %v1540, %v1541
        %v1543 = vand.u32 %v1542, 4294901760
        %1544 = vmatpush.xpose.msra.mxu0 %v1543
        %v1545 = vand.u32 %v1494, 4294901760
        %1546 = vmatmul.f32.gmra.mxu0 %v1545
        %v1547 = vpop.f32.mrf.mxu0
        %v1548 = vadd.f32 %v1522, %v1547
        %1549 = vdwg.mxu0
        %1550 = vmatpush.xpose.msra.mxu0 0.0
        %1551 = vmatpush.xpose.msra.mxu0 0.0
        %1552 = vmatpush.xpose.msra.mxu0 0.0
        %1553 = vmatpush.xpose.msra.mxu0 0.0
        %1554 = vmatpush.xpose.msra.mxu0 0.0
        %1555 = vmatpush.xpose.msra.mxu0 0.0
        %1556 = vmatpush.xpose.msra.mxu0 0.0
        %1557 = vmatpush.xpose.msra.mxu0 0.0
        %1558 = vmatpush.xpose.msra.mxu0 0.0
        %1559 = vmatpush.xpose.msra.mxu0 0.0
        %1560 = vmatpush.xpose.msra.mxu0 0.0
        %1561 = vmatpush.xpose.msra.mxu0 0.0
        %1562 = vmatpush.xpose.msra.mxu0 0.0
        %1563 = vmatpush.xpose.msra.mxu0 0.0
        %1564 = vmatpush.xpose.msra.mxu0 0.0
        %v1565 = vand.u32 %v1496, 4294901760
        %v1566 = vsub.f32 %v1496, %v1565
        %1567 = vmatpush.xpose.msra.mxu0 %v1566
        %v1568 = vand.u32 %v1494, 4294901760
        %v1569 = vsub.f32 %v1494, %v1568
        %1570 = vmatmul.f32.gmra.mxu0 %v1569
        %v1571 = vpop.f32.mrf.mxu0
        %v1572 = vadd.f32 %v1548, %v1571
        %1573 = vdwg.mxu0
        %1574 = vmatpush.xpose.msra.mxu0 0.0
        %1575 = vmatpush.xpose.msra.mxu0 0.0
        %1576 = vmatpush.xpose.msra.mxu0 0.0
        %1577 = vmatpush.xpose.msra.mxu0 0.0
        %1578 = vmatpush.xpose.msra.mxu0 0.0
        %1579 = vmatpush.xpose.msra.mxu0 0.0
        %1580 = vmatpush.xpose.msra.mxu0 0.0
        %1581 = vmatpush.xpose.msra.mxu0 0.0
        %1582 = vmatpush.xpose.msra.mxu0 0.0
        %1583 = vmatpush.xpose.msra.mxu0 0.0
        %1584 = vmatpush.xpose.msra.mxu0 0.0
        %1585 = vmatpush.xpose.msra.mxu0 0.0
        %1586 = vmatpush.xpose.msra.mxu0 0.0
        %1587 = vmatpush.xpose.msra.mxu0 0.0
        %1588 = vmatpush.xpose.msra.mxu0 0.0
        %v1589 = vand.u32 %v1496, 4294901760
        %1590 = vmatpush.xpose.msra.mxu0 %v1589
        %v1591 = vand.u32 %v1494, 4294901760
        %v1592 = vsub.f32 %v1494, %v1591
        %v1593 = vand.u32 %v1592, 4294901760
        %1594 = vmatmul.f32.gmra.mxu0 %v1593
        %v1595 = vpop.f32.mrf.mxu0
        %v1596 = vadd.f32 %v1572, %v1595
        %1597 = vdwg.mxu0
        %1598 = vmatpush.xpose.msra.mxu0 0.0
        %1599 = vmatpush.xpose.msra.mxu0 0.0
        %1600 = vmatpush.xpose.msra.mxu0 0.0
        %1601 = vmatpush.xpose.msra.mxu0 0.0
        %1602 = vmatpush.xpose.msra.mxu0 0.0
        %1603 = vmatpush.xpose.msra.mxu0 0.0
        %1604 = vmatpush.xpose.msra.mxu0 0.0
        %1605 = vmatpush.xpose.msra.mxu0 0.0
        %1606 = vmatpush.xpose.msra.mxu0 0.0
        %1607 = vmatpush.xpose.msra.mxu0 0.0
        %1608 = vmatpush.xpose.msra.mxu0 0.0
        %1609 = vmatpush.xpose.msra.mxu0 0.0
        %1610 = vmatpush.xpose.msra.mxu0 0.0
        %1611 = vmatpush.xpose.msra.mxu0 0.0
        %1612 = vmatpush.xpose.msra.mxu0 0.0
        %v1613 = vand.u32 %v1496, 4294901760
        %v1614 = vsub.f32 %v1496, %v1613
        %v1615 = vand.u32 %v1614, 4294901760
        %1616 = vmatpush.xpose.msra.mxu0 %v1615
        %v1617 = vand.u32 %v1494, 4294901760
        %1618 = vmatmul.f32.gmra.mxu0 %v1617
        %v1619 = vpop.f32.mrf.mxu0
        %v1620 = vadd.f32 %v1596, %v1619
        %1621 = vdwg.mxu0
        %1622 = vmatpush.xpose.msra.mxu0 0.0
        %1623 = vmatpush.xpose.msra.mxu0 0.0
        %1624 = vmatpush.xpose.msra.mxu0 0.0
        %1625 = vmatpush.xpose.msra.mxu0 0.0
        %1626 = vmatpush.xpose.msra.mxu0 0.0
        %1627 = vmatpush.xpose.msra.mxu0 0.0
        %1628 = vmatpush.xpose.msra.mxu0 0.0
        %1629 = vmatpush.xpose.msra.mxu0 0.0
        %1630 = vmatpush.xpose.msra.mxu0 0.0
        %1631 = vmatpush.xpose.msra.mxu0 0.0
        %1632 = vmatpush.xpose.msra.mxu0 0.0
        %1633 = vmatpush.xpose.msra.mxu0 0.0
        %1634 = vmatpush.xpose.msra.mxu0 0.0
        %1635 = vmatpush.xpose.msra.mxu0 0.0
        %1636 = vmatpush.xpose.msra.mxu0 0.0
        %v1637 = vand.u32 %v1496, 4294901760
        %1638 = vmatpush.xpose.msra.mxu0 %v1637
        %v1639 = vand.u32 %v1494, 4294901760
        %1640 = vmatmul.f32.gmra.mxu0 %v1639
        %v1641 = vpop.f32.mrf.mxu0
        %v1642 = vadd.f32 %v1620, %v1641
        %1643 = vdwg.mxu0
        %v1644 = vmul.f32 %v1642, 0.35355338
        %v1645 = vadd.f32 %v1644, %v920
        %v1646 = vsel %vm1161, %v1645, -inf
        %1647 = vmax.xlane.f32.xlu0 %v1646
        %v1648 = vpop.xlane.xlu0 %1647
        %v1649 = vsub.f32 %v1645, %v1648
        %v1650 = vmul.f32 %v1649, 1.442695
        %v1651 = vpow.pop %v1650
        %v1652 = vsel %vm1161, %v1651, 0.0
        %1653 = vadd.xlane.f32.xlu0 %v1652
        %v1654 = vpop.xlane.xlu0 %1653
        %v1655 = vrcp.pop %v1654
        %v1656 = vmul.f32 %v1654, %v1655
        %v1657 = vsub.f32 1.0, %v1656
        %v1658 = vmul.f32 %v1655, %v1657
        %v1659 = vadd.f32 %v1655, %v1658
        %vm1660 = vweird.f32 %v1654
        %vm1661 = vweird.f32 %v1655
        %vm1662 = vmor %vm1660, %vm1661
        %v1663 = vsel %vm1662, %v1655, %v1659
        %v1664 = vand.u32 2147483647, %v1654
        %vm1665 = vcmp.eq.f32.partialorder %v1664, 8.507059e+37
        %v1666 = vand.u32 %v1654, 2147483648
        %v1667 = vor.u32 1.1754944e-38, %v1666
        %v1668 = vsel %vm1665, %v1667, %v1663
        %v1669 = vmul.f32 %v1651, %v1668
        %1670 = vrot.lane.b32.xlu0 %v1156, 56
        %v1671 = vpop.permute.xlu0 %1670
        %v1674 = vsel %vm1161, %v1669, 0
        %1676 = vmatpush.msra.mxu0 0.0
        %1677 = vmatpush.msra.mxu0 0.0
        %1678 = vmatpush.msra.mxu0 0.0
        %1679 = vmatpush.msra.mxu0 0.0
        %1680 = vmatpush.msra.mxu0 0.0
        %1681 = vmatpush.msra.mxu0 0.0
        %1682 = vmatpush.msra.mxu0 0.0
        %1683 = vmatpush.msra.mxu0 0.0
        %1684 = vmatpush.msra.mxu0 0.0
        %1685 = vmatpush.msra.mxu0 0.0
        %1686 = vmatpush.msra.mxu0 0.0
        %1687 = vmatpush.msra.mxu0 0.0
        %1688 = vmatpush.msra.mxu0 0.0
        %1689 = vmatpush.msra.mxu0 0.0
        %1690 = vmatpush.msra.mxu0 0.0
        %v1691 = vand.u32 %v1671, 4294901760
        %1692 = vmatpush.msra.mxu0 %v1691
        %v1693 = vand.u32 %v1674, 4294901760
        %v1694 = vsub.f32 %v1674, %v1693
        %v1695 = vand.u32 %v1694, 4294901760
        %v1696 = vsub.f32 %v1694, %v1695
        %v1697 = vand.u32 %v1696, 4294901760
        %1698 = vmatmul.f32.gmra.mxu0 %v1697
        %v1699 = vpop.f32.mrf.mxu0
        %v1700 = vadd.f32 0.0, %v1699
        %1701 = vdwg.mxu0
        %1702 = vmatpush.msra.mxu0 0.0
        %1703 = vmatpush.msra.mxu0 0.0
        %1704 = vmatpush.msra.mxu0 0.0
        %1705 = vmatpush.msra.mxu0 0.0
        %1706 = vmatpush.msra.mxu0 0.0
        %1707 = vmatpush.msra.mxu0 0.0
        %1708 = vmatpush.msra.mxu0 0.0
        %1709 = vmatpush.msra.mxu0 0.0
        %1710 = vmatpush.msra.mxu0 0.0
        %1711 = vmatpush.msra.mxu0 0.0
        %1712 = vmatpush.msra.mxu0 0.0
        %1713 = vmatpush.msra.mxu0 0.0
        %1714 = vmatpush.msra.mxu0 0.0
        %1715 = vmatpush.msra.mxu0 0.0
        %1716 = vmatpush.msra.mxu0 0.0
        %v1717 = vand.u32 %v1671, 4294901760
        %v1718 = vsub.f32 %v1671, %v1717
        %v1719 = vand.u32 %v1718, 4294901760
        %v1720 = vsub.f32 %v1718, %v1719
        %v1721 = vand.u32 %v1720, 4294901760
        %1722 = vmatpush.msra.mxu0 %v1721
        %v1723 = vand.u32 %v1674, 4294901760
        %1724 = vmatmul.f32.gmra.mxu0 %v1723
        %v1725 = vpop.f32.mrf.mxu0
        %v1726 = vadd.f32 %v1700, %v1725
        %1727 = vdwg.mxu0
        %1728 = vmatpush.msra.mxu0 0.0
        %1729 = vmatpush.msra.mxu0 0.0
        %1730 = vmatpush.msra.mxu0 0.0
        %1731 = vmatpush.msra.mxu0 0.0
        %1732 = vmatpush.msra.mxu0 0.0
        %1733 = vmatpush.msra.mxu0 0.0
        %1734 = vmatpush.msra.mxu0 0.0
        %1735 = vmatpush.msra.mxu0 0.0
        %1736 = vmatpush.msra.mxu0 0.0
        %1737 = vmatpush.msra.mxu0 0.0
        %1738 = vmatpush.msra.mxu0 0.0
        %1739 = vmatpush.msra.mxu0 0.0
        %1740 = vmatpush.msra.mxu0 0.0
        %1741 = vmatpush.msra.mxu0 0.0
        %1742 = vmatpush.msra.mxu0 0.0
        %v1743 = vand.u32 %v1671, 4294901760
        %v1744 = vsub.f32 %v1671, %v1743
        %1745 = vmatpush.msra.mxu0 %v1744
        %v1746 = vand.u32 %v1674, 4294901760
        %v1747 = vsub.f32 %v1674, %v1746
        %1748 = vmatmul.f32.gmra.mxu0 %v1747
        %v1749 = vpop.f32.mrf.mxu0
        %v1750 = vadd.f32 %v1726, %v1749
        %1751 = vdwg.mxu0
        %1752 = vmatpush.msra.mxu0 0.0
        %1753 = vmatpush.msra.mxu0 0.0
        %1754 = vmatpush.msra.mxu0 0.0
        %1755 = vmatpush.msra.mxu0 0.0
        %1756 = vmatpush.msra.mxu0 0.0
        %1757 = vmatpush.msra.mxu0 0.0
        %1758 = vmatpush.msra.mxu0 0.0
        %1759 = vmatpush.msra.mxu0 0.0
        %1760 = vmatpush.msra.mxu0 0.0
        %1761 = vmatpush.msra.mxu0 0.0
        %1762 = vmatpush.msra.mxu0 0.0
        %1763 = vmatpush.msra.mxu0 0.0
        %1764 = vmatpush.msra.mxu0 0.0
        %1765 = vmatpush.msra.mxu0 0.0
        %1766 = vmatpush.msra.mxu0 0.0
        %v1767 = vand.u32 %v1671, 4294901760
        %1768 = vmatpush.msra.mxu0 %v1767
        %v1769 = vand.u32 %v1674, 4294901760
        %v1770 = vsub.f32 %v1674, %v1769
        %v1771 = vand.u32 %v1770, 4294901760
        %1772 = vmatmul.f32.gmra.mxu0 %v1771
        %v1773 = vpop.f32.mrf.mxu0
        %v1774 = vadd.f32 %v1750, %v1773
        %1775 = vdwg.mxu0
        %1776 = vmatpush.msra.mxu0 0.0
        %1777 = vmatpush.msra.mxu0 0.0
        %1778 = vmatpush.msra.mxu0 0.0
        %1779 = vmatpush.msra.mxu0 0.0
        %1780 = vmatpush.msra.mxu0 0.0
        %1781 = vmatpush.msra.mxu0 0.0
        %1782 = vmatpush.msra.mxu0 0.0
        %1783 = vmatpush.msra.mxu0 0.0
        %1784 = vmatpush.msra.mxu0 0.0
        %1785 = vmatpush.msra.mxu0 0.0
        %1786 = vmatpush.msra.mxu0 0.0
        %1787 = vmatpush.msra.mxu0 0.0
        %1788 = vmatpush.msra.mxu0 0.0
        %1789 = vmatpush.msra.mxu0 0.0
        %1790 = vmatpush.msra.mxu0 0.0
        %v1791 = vand.u32 %v1671, 4294901760
        %v1792 = vsub.f32 %v1671, %v1791
        %v1793 = vand.u32 %v1792, 4294901760
        %1794 = vmatpush.msra.mxu0 %v1793
        %v1795 = vand.u32 %v1674, 4294901760
        %1796 = vmatmul.f32.gmra.mxu0 %v1795
        %v1797 = vpop.f32.mrf.mxu0
        %v1798 = vadd.f32 %v1774, %v1797
        %1799 = vdwg.mxu0
        %1800 = vmatpush.msra.mxu0 0.0
        %1801 = vmatpush.msra.mxu0 0.0
        %1802 = vmatpush.msra.mxu0 0.0
        %1803 = vmatpush.msra.mxu0 0.0
        %1804 = vmatpush.msra.mxu0 0.0
        %1805 = vmatpush.msra.mxu0 0.0
        %1806 = vmatpush.msra.mxu0 0.0
        %1807 = vmatpush.msra.mxu0 0.0
        %1808 = vmatpush.msra.mxu0 0.0
        %1809 = vmatpush.msra.mxu0 0.0
        %1810 = vmatpush.msra.mxu0 0.0
        %1811 = vmatpush.msra.mxu0 0.0
        %1812 = vmatpush.msra.mxu0 0.0
        %1813 = vmatpush.msra.mxu0 0.0
        %1814 = vmatpush.msra.mxu0 0.0
        %v1815 = vand.u32 %v1671, 4294901760
        %1816 = vmatpush.msra.mxu0 %v1815
        %v1817 = vand.u32 %v1674, 4294901760
        %1818 = vmatmul.f32.gmra.mxu0 %v1817
        %v1819 = vpop.f32.mrf.mxu0
        %v1820 = vadd.f32 %v1798, %v1819
        %1821 = vdwg.mxu0
        %1822 = vrot.lane.b32.xlu0 %v1156, 112
        %v1823 = vpop.permute.xlu0 %1822
        %1824 = vrot.lane.b32.xlu0 %v1156, 80
        %v1825 = vpop.permute.xlu0 %1824
        %v1826 = vsel %vm1161, %v1823, 0
        %v1828 = vsel %vm1161, %v1825, 0
        %1830 = vmatpush.xpose.msra.mxu0 0.0
        %1831 = vmatpush.xpose.msra.mxu0 0.0
        %1832 = vmatpush.xpose.msra.mxu0 0.0
        %1833 = vmatpush.xpose.msra.mxu0 0.0
        %1834 = vmatpush.xpose.msra.mxu0 0.0
        %1835 = vmatpush.xpose.msra.mxu0 0.0
        %1836 = vmatpush.xpose.msra.mxu0 0.0
        %1837 = vmatpush.xpose.msra.mxu0 0.0
        %1838 = vmatpush.xpose.msra.mxu0 0.0
        %1839 = vmatpush.xpose.msra.mxu0 0.0
        %1840 = vmatpush.xpose.msra.mxu0 0.0
        %1841 = vmatpush.xpose.msra.mxu0 0.0
        %1842 = vmatpush.xpose.msra.mxu0 0.0
        %1843 = vmatpush.xpose.msra.mxu0 0.0
        %1844 = vmatpush.xpose.msra.mxu0 0.0
        %v1845 = vand.u32 %v1828, 4294901760
        %1846 = vmatpush.xpose.msra.mxu0 %v1845
        %v1847 = vand.u32 %v1826, 4294901760
        %v1848 = vsub.f32 %v1826, %v1847
        %v1849 = vand.u32 %v1848, 4294901760
        %v1850 = vsub.f32 %v1848, %v1849
        %v1851 = vand.u32 %v1850, 4294901760
        %1852 = vmatmul.f32.gmra.mxu0 %v1851
        %v1853 = vpop.f32.mrf.mxu0
        %v1854 = vadd.f32 0.0, %v1853
        %1855 = vdwg.mxu0
        %1856 = vmatpush.xpose.msra.mxu0 0.0
        %1857 = vmatpush.xpose.msra.mxu0 0.0
        %1858 = vmatpush.xpose.msra.mxu0 0.0
        %1859 = vmatpush.xpose.msra.mxu0 0.0
        %1860 = vmatpush.xpose.msra.mxu0 0.0
        %1861 = vmatpush.xpose.msra.mxu0 0.0
        %1862 = vmatpush.xpose.msra.mxu0 0.0
        %1863 = vmatpush.xpose.msra.mxu0 0.0
        %1864 = vmatpush.xpose.msra.mxu0 0.0
        %1865 = vmatpush.xpose.msra.mxu0 0.0
        %1866 = vmatpush.xpose.msra.mxu0 0.0
        %1867 = vmatpush.xpose.msra.mxu0 0.0
        %1868 = vmatpush.xpose.msra.mxu0 0.0
        %1869 = vmatpush.xpose.msra.mxu0 0.0
        %1870 = vmatpush.xpose.msra.mxu0 0.0
        %v1871 = vand.u32 %v1828, 4294901760
        %v1872 = vsub.f32 %v1828, %v1871
        %v1873 = vand.u32 %v1872, 4294901760
        %v1874 = vsub.f32 %v1872, %v1873
        %v1875 = vand.u32 %v1874, 4294901760
        %1876 = vmatpush.xpose.msra.mxu0 %v1875
        %v1877 = vand.u32 %v1826, 4294901760
        %1878 = vmatmul.f32.gmra.mxu0 %v1877
        %v1879 = vpop.f32.mrf.mxu0
        %v1880 = vadd.f32 %v1854, %v1879
        %1881 = vdwg.mxu0
        %1882 = vmatpush.xpose.msra.mxu0 0.0
        %1883 = vmatpush.xpose.msra.mxu0 0.0
        %1884 = vmatpush.xpose.msra.mxu0 0.0
        %1885 = vmatpush.xpose.msra.mxu0 0.0
        %1886 = vmatpush.xpose.msra.mxu0 0.0
        %1887 = vmatpush.xpose.msra.mxu0 0.0
        %1888 = vmatpush.xpose.msra.mxu0 0.0
        %1889 = vmatpush.xpose.msra.mxu0 0.0
        %1890 = vmatpush.xpose.msra.mxu0 0.0
        %1891 = vmatpush.xpose.msra.mxu0 0.0
        %1892 = vmatpush.xpose.msra.mxu0 0.0
        %1893 = vmatpush.xpose.msra.mxu0 0.0
        %1894 = vmatpush.xpose.msra.mxu0 0.0
        %1895 = vmatpush.xpose.msra.mxu0 0.0
        %1896 = vmatpush.xpose.msra.mxu0 0.0
        %v1897 = vand.u32 %v1828, 4294901760
        %v1898 = vsub.f32 %v1828, %v1897
        %1899 = vmatpush.xpose.msra.mxu0 %v1898
        %v1900 = vand.u32 %v1826, 4294901760
        %v1901 = vsub.f32 %v1826, %v1900
        %1902 = vmatmul.f32.gmra.mxu0 %v1901
        %v1903 = vpop.f32.mrf.mxu0
        %v1904 = vadd.f32 %v1880, %v1903
        %1905 = vdwg.mxu0
        %1906 = vmatpush.xpose.msra.mxu0 0.0
        %1907 = vmatpush.xpose.msra.mxu0 0.0
        %1908 = vmatpush.xpose.msra.mxu0 0.0
        %1909 = vmatpush.xpose.msra.mxu0 0.0
        %1910 = vmatpush.xpose.msra.mxu0 0.0
        %1911 = vmatpush.xpose.msra.mxu0 0.0
        %1912 = vmatpush.xpose.msra.mxu0 0.0
        %1913 = vmatpush.xpose.msra.mxu0 0.0
        %1914 = vmatpush.xpose.msra.mxu0 0.0
        %1915 = vmatpush.xpose.msra.mxu0 0.0
        %1916 = vmatpush.xpose.msra.mxu0 0.0
        %1917 = vmatpush.xpose.msra.mxu0 0.0
        %1918 = vmatpush.xpose.msra.mxu0 0.0
        %1919 = vmatpush.xpose.msra.mxu0 0.0
        %1920 = vmatpush.xpose.msra.mxu0 0.0
        %v1921 = vand.u32 %v1828, 4294901760
        %1922 = vmatpush.xpose.msra.mxu0 %v1921
        %v1923 = vand.u32 %v1826, 4294901760
        %v1924 = vsub.f32 %v1826, %v1923
        %v1925 = vand.u32 %v1924, 4294901760
        %1926 = vmatmul.f32.gmra.mxu0 %v1925
        %v1927 = vpop.f32.mrf.mxu0
        %v1928 = vadd.f32 %v1904, %v1927
        %1929 = vdwg.mxu0
        %1930 = vmatpush.xpose.msra.mxu0 0.0
        %1931 = vmatpush.xpose.msra.mxu0 0.0
        %1932 = vmatpush.xpose.msra.mxu0 0.0
        %1933 = vmatpush.xpose.msra.mxu0 0.0
        %1934 = vmatpush.xpose.msra.mxu0 0.0
        %1935 = vmatpush.xpose.msra.mxu0 0.0
        %1936 = vmatpush.xpose.msra.mxu0 0.0
        %1937 = vmatpush.xpose.msra.mxu0 0.0
        %1938 = vmatpush.xpose.msra.mxu0 0.0
        %1939 = vmatpush.xpose.msra.mxu0 0.0
        %1940 = vmatpush.xpose.msra.mxu0 0.0
        %1941 = vmatpush.xpose.msra.mxu0 0.0
        %1942 = vmatpush.xpose.msra.mxu0 0.0
        %1943 = vmatpush.xpose.msra.mxu0 0.0
        %1944 = vmatpush.xpose.msra.mxu0 0.0
        %v1945 = vand.u32 %v1828, 4294901760
        %v1946 = vsub.f32 %v1828, %v1945
        %v1947 = vand.u32 %v1946, 4294901760
        %1948 = vmatpush.xpose.msra.mxu0 %v1947
        %v1949 = vand.u32 %v1826, 4294901760
        %1950 = vmatmul.f32.gmra.mxu0 %v1949
        %v1951 = vpop.f32.mrf.mxu0
        %v1952 = vadd.f32 %v1928, %v1951
        %1953 = vdwg.mxu0
        %1954 = vmatpush.xpose.msra.mxu0 0.0
        %1955 = vmatpush.xpose.msra.mxu0 0.0
        %1956 = vmatpush.xpose.msra.mxu0 0.0
        %1957 = vmatpush.xpose.msra.mxu0 0.0
        %1958 = vmatpush.xpose.msra.mxu0 0.0
        %1959 = vmatpush.xpose.msra.mxu0 0.0
        %1960 = vmatpush.xpose.msra.mxu0 0.0
        %1961 = vmatpush.xpose.msra.mxu0 0.0
        %1962 = vmatpush.xpose.msra.mxu0 0.0
        %1963 = vmatpush.xpose.msra.mxu0 0.0
        %1964 = vmatpush.xpose.msra.mxu0 0.0
        %1965 = vmatpush.xpose.msra.mxu0 0.0
        %1966 = vmatpush.xpose.msra.mxu0 0.0
        %1967 = vmatpush.xpose.msra.mxu0 0.0
        %1968 = vmatpush.xpose.msra.mxu0 0.0
        %v1969 = vand.u32 %v1828, 4294901760
        %1970 = vmatpush.xpose.msra.mxu0 %v1969
        %v1971 = vand.u32 %v1826, 4294901760
        %1972 = vmatmul.f32.gmra.mxu0 %v1971
        %v1973 = vpop.f32.mrf.mxu0
        %v1974 = vadd.f32 %v1952, %v1973
        %1975 = vdwg.mxu0
        %v1976 = vmul.f32 %v1974, 0.35355338
        %v1977 = vadd.f32 %v1976, %v920
        %v1978 = vsel %vm1161, %v1977, -inf
        %1979 = vmax.xlane.f32.xlu0 %v1978
        %v1980 = vpop.xlane.xlu0 %1979
        %v1981 = vsub.f32 %v1977, %v1980
        %v1982 = vmul.f32 %v1981, 1.442695
        %v1983 = vpow.pop %v1982
        %v1984 = vsel %vm1161, %v1983, 0.0
        %1985 = vadd.xlane.f32.xlu0 %v1984
        %v1986 = vpop.xlane.xlu0 %1985
        %v1987 = vrcp.pop %v1986
        %v1988 = vmul.f32 %v1986, %v1987
        %v1989 = vsub.f32 1.0, %v1988
        %v1990 = vmul.f32 %v1987, %v1989
        %v1991 = vadd.f32 %v1987, %v1990
        %vm1992 = vweird.f32 %v1986
        %vm1993 = vweird.f32 %v1987
        %vm1994 = vmor %vm1992, %vm1993
        %v1995 = vsel %vm1994, %v1987, %v1991
        %v1996 = vand.u32 2147483647, %v1986
        %vm1997 = vcmp.eq.f32.partialorder %v1996, 8.507059e+37
        %v1998 = vand.u32 %v1986, 2147483648
        %v1999 = vor.u32 1.1754944e-38, %v1998
        %v2000 = vsel %vm1997, %v1999, %v1995
        %v2001 = vmul.f32 %v1983, %v2000
        %2002 = vrot.lane.b32.xlu0 %v1156, 48
        %v2003 = vpop.permute.xlu0 %2002
        %v2006 = vsel %vm1161, %v2001, 0
        %2008 = vmatpush.msra.mxu0 0.0
        %2009 = vmatpush.msra.mxu0 0.0
        %2010 = vmatpush.msra.mxu0 0.0
        %2011 = vmatpush.msra.mxu0 0.0
        %2012 = vmatpush.msra.mxu0 0.0
        %2013 = vmatpush.msra.mxu0 0.0
        %2014 = vmatpush.msra.mxu0 0.0
        %2015 = vmatpush.msra.mxu0 0.0
        %2016 = vmatpush.msra.mxu0 0.0
        %2017 = vmatpush.msra.mxu0 0.0
        %2018 = vmatpush.msra.mxu0 0.0
        %2019 = vmatpush.msra.mxu0 0.0
        %2020 = vmatpush.msra.mxu0 0.0
        %2021 = vmatpush.msra.mxu0 0.0
        %2022 = vmatpush.msra.mxu0 0.0
        %v2023 = vand.u32 %v2003, 4294901760
        %2024 = vmatpush.msra.mxu0 %v2023
        %v2025 = vand.u32 %v2006, 4294901760
        %v2026 = vsub.f32 %v2006, %v2025
        %v2027 = vand.u32 %v2026, 4294901760
        %v2028 = vsub.f32 %v2026, %v2027
        %v2029 = vand.u32 %v2028, 4294901760
        %2030 = vmatmul.f32.gmra.mxu0 %v2029
        %v2031 = vpop.f32.mrf.mxu0
        %v2032 = vadd.f32 0.0, %v2031
        %2033 = vdwg.mxu0
        %2034 = vmatpush.msra.mxu0 0.0
        %2035 = vmatpush.msra.mxu0 0.0
        %2036 = vmatpush.msra.mxu0 0.0
        %2037 = vmatpush.msra.mxu0 0.0
        %2038 = vmatpush.msra.mxu0 0.0
        %2039 = vmatpush.msra.mxu0 0.0
        %2040 = vmatpush.msra.mxu0 0.0
        %2041 = vmatpush.msra.mxu0 0.0
        %2042 = vmatpush.msra.mxu0 0.0
        %2043 = vmatpush.msra.mxu0 0.0
        %2044 = vmatpush.msra.mxu0 0.0
        %2045 = vmatpush.msra.mxu0 0.0
        %2046 = vmatpush.msra.mxu0 0.0
        %2047 = vmatpush.msra.mxu0 0.0
        %2048 = vmatpush.msra.mxu0 0.0
        %v2049 = vand.u32 %v2003, 4294901760
        %v2050 = vsub.f32 %v2003, %v2049
        %v2051 = vand.u32 %v2050, 4294901760
        %v2052 = vsub.f32 %v2050, %v2051
        %v2053 = vand.u32 %v2052, 4294901760
        %2054 = vmatpush.msra.mxu0 %v2053
        %v2055 = vand.u32 %v2006, 4294901760
        %2056 = vmatmul.f32.gmra.mxu0 %v2055
        %v2057 = vpop.f32.mrf.mxu0
        %v2058 = vadd.f32 %v2032, %v2057
        %2059 = vdwg.mxu0
        %2060 = vmatpush.msra.mxu0 0.0
        %2061 = vmatpush.msra.mxu0 0.0
        %2062 = vmatpush.msra.mxu0 0.0
        %2063 = vmatpush.msra.mxu0 0.0
        %2064 = vmatpush.msra.mxu0 0.0
        %2065 = vmatpush.msra.mxu0 0.0
        %2066 = vmatpush.msra.mxu0 0.0
        %2067 = vmatpush.msra.mxu0 0.0
        %2068 = vmatpush.msra.mxu0 0.0
        %2069 = vmatpush.msra.mxu0 0.0
        %2070 = vmatpush.msra.mxu0 0.0
        %2071 = vmatpush.msra.mxu0 0.0
        %2072 = vmatpush.msra.mxu0 0.0
        %2073 = vmatpush.msra.mxu0 0.0
        %2074 = vmatpush.msra.mxu0 0.0
        %v2075 = vand.u32 %v2003, 4294901760
        %v2076 = vsub.f32 %v2003, %v2075
        %2077 = vmatpush.msra.mxu0 %v2076
        %v2078 = vand.u32 %v2006, 4294901760
        %v2079 = vsub.f32 %v2006, %v2078
        %2080 = vmatmul.f32.gmra.mxu0 %v2079
        %v2081 = vpop.f32.mrf.mxu0
        %v2082 = vadd.f32 %v2058, %v2081
        %2083 = vdwg.mxu0
        %2084 = vmatpush.msra.mxu0 0.0
        %2085 = vmatpush.msra.mxu0 0.0
        %2086 = vmatpush.msra.mxu0 0.0
        %2087 = vmatpush.msra.mxu0 0.0
        %2088 = vmatpush.msra.mxu0 0.0
        %2089 = vmatpush.msra.mxu0 0.0
        %2090 = vmatpush.msra.mxu0 0.0
        %2091 = vmatpush.msra.mxu0 0.0
        %2092 = vmatpush.msra.mxu0 0.0
        %2093 = vmatpush.msra.mxu0 0.0
        %2094 = vmatpush.msra.mxu0 0.0
        %2095 = vmatpush.msra.mxu0 0.0
        %2096 = vmatpush.msra.mxu0 0.0
        %2097 = vmatpush.msra.mxu0 0.0
        %2098 = vmatpush.msra.mxu0 0.0
        %v2099 = vand.u32 %v2003, 4294901760
        %2100 = vmatpush.msra.mxu0 %v2099
        %v2101 = vand.u32 %v2006, 4294901760
        %v2102 = vsub.f32 %v2006, %v2101
        %v2103 = vand.u32 %v2102, 4294901760
        %2104 = vmatmul.f32.gmra.mxu0 %v2103
        %v2105 = vpop.f32.mrf.mxu0
        %v2106 = vadd.f32 %v2082, %v2105
        %2107 = vdwg.mxu0
        %2108 = vmatpush.msra.mxu0 0.0
        %2109 = vmatpush.msra.mxu0 0.0
        %2110 = vmatpush.msra.mxu0 0.0
        %2111 = vmatpush.msra.mxu0 0.0
        %2112 = vmatpush.msra.mxu0 0.0
        %2113 = vmatpush.msra.mxu0 0.0
        %2114 = vmatpush.msra.mxu0 0.0
        %2115 = vmatpush.msra.mxu0 0.0
        %2116 = vmatpush.msra.mxu0 0.0
        %2117 = vmatpush.msra.mxu0 0.0
        %2118 = vmatpush.msra.mxu0 0.0
        %2119 = vmatpush.msra.mxu0 0.0
        %2120 = vmatpush.msra.mxu0 0.0
        %2121 = vmatpush.msra.mxu0 0.0
        %2122 = vmatpush.msra.mxu0 0.0
        %v2123 = vand.u32 %v2003, 4294901760
        %v2124 = vsub.f32 %v2003, %v2123
        %v2125 = vand.u32 %v2124, 4294901760
        %2126 = vmatpush.msra.mxu0 %v2125
        %v2127 = vand.u32 %v2006, 4294901760
        %2128 = vmatmul.f32.gmra.mxu0 %v2127
        %v2129 = vpop.f32.mrf.mxu0
        %v2130 = vadd.f32 %v2106, %v2129
        %2131 = vdwg.mxu0
        %2132 = vmatpush.msra.mxu0 0.0
        %2133 = vmatpush.msra.mxu0 0.0
        %2134 = vmatpush.msra.mxu0 0.0
        %2135 = vmatpush.msra.mxu0 0.0
        %2136 = vmatpush.msra.mxu0 0.0
        %2137 = vmatpush.msra.mxu0 0.0
        %2138 = vmatpush.msra.mxu0 0.0
        %2139 = vmatpush.msra.mxu0 0.0
        %2140 = vmatpush.msra.mxu0 0.0
        %2141 = vmatpush.msra.mxu0 0.0
        %2142 = vmatpush.msra.mxu0 0.0
        %2143 = vmatpush.msra.mxu0 0.0
        %2144 = vmatpush.msra.mxu0 0.0
        %2145 = vmatpush.msra.mxu0 0.0
        %2146 = vmatpush.msra.mxu0 0.0
        %v2147 = vand.u32 %v2003, 4294901760
        %2148 = vmatpush.msra.mxu0 %v2147
        %v2149 = vand.u32 %v2006, 4294901760
        %2150 = vmatmul.f32.gmra.mxu0 %v2149
        %v2151 = vpop.f32.mrf.mxu0
        %v2152 = vadd.f32 %v2130, %v2151
        %2153 = vdwg.mxu0
        %2154 = vrot.lane.b32.xlu0 %v1156, 104
        %v2155 = vpop.permute.xlu0 %2154
        %2156 = vrot.lane.b32.xlu0 %v1156, 72
        %v2157 = vpop.permute.xlu0 %2156
        %v2158 = vsel %vm1161, %v2155, 0
        %v2160 = vsel %vm1161, %v2157, 0
        %2162 = vmatpush.xpose.msra.mxu0 0.0
        %2163 = vmatpush.xpose.msra.mxu0 0.0
        %2164 = vmatpush.xpose.msra.mxu0 0.0
        %2165 = vmatpush.xpose.msra.mxu0 0.0
        %2166 = vmatpush.xpose.msra.mxu0 0.0
        %2167 = vmatpush.xpose.msra.mxu0 0.0
        %2168 = vmatpush.xpose.msra.mxu0 0.0
        %2169 = vmatpush.xpose.msra.mxu0 0.0
        %2170 = vmatpush.xpose.msra.mxu0 0.0
        %2171 = vmatpush.xpose.msra.mxu0 0.0
        %2172 = vmatpush.xpose.msra.mxu0 0.0
        %2173 = vmatpush.xpose.msra.mxu0 0.0
        %2174 = vmatpush.xpose.msra.mxu0 0.0
        %2175 = vmatpush.xpose.msra.mxu0 0.0
        %2176 = vmatpush.xpose.msra.mxu0 0.0
        %v2177 = vand.u32 %v2160, 4294901760
        %2178 = vmatpush.xpose.msra.mxu0 %v2177
        %v2179 = vand.u32 %v2158, 4294901760
        %v2180 = vsub.f32 %v2158, %v2179
        %v2181 = vand.u32 %v2180, 4294901760
        %v2182 = vsub.f32 %v2180, %v2181
        %v2183 = vand.u32 %v2182, 4294901760
        %2184 = vmatmul.f32.gmra.mxu0 %v2183
        %v2185 = vpop.f32.mrf.mxu0
        %v2186 = vadd.f32 0.0, %v2185
        %2187 = vdwg.mxu0
        %2188 = vmatpush.xpose.msra.mxu0 0.0
        %2189 = vmatpush.xpose.msra.mxu0 0.0
        %2190 = vmatpush.xpose.msra.mxu0 0.0
        %2191 = vmatpush.xpose.msra.mxu0 0.0
        %2192 = vmatpush.xpose.msra.mxu0 0.0
        %2193 = vmatpush.xpose.msra.mxu0 0.0
        %2194 = vmatpush.xpose.msra.mxu0 0.0
        %2195 = vmatpush.xpose.msra.mxu0 0.0
        %2196 = vmatpush.xpose.msra.mxu0 0.0
        %2197 = vmatpush.xpose.msra.mxu0 0.0
        %2198 = vmatpush.xpose.msra.mxu0 0.0
        %2199 = vmatpush.xpose.msra.mxu0 0.0
        %2200 = vmatpush.xpose.msra.mxu0 0.0
        %2201 = vmatpush.xpose.msra.mxu0 0.0
        %2202 = vmatpush.xpose.msra.mxu0 0.0
        %v2203 = vand.u32 %v2160, 4294901760
        %v2204 = vsub.f32 %v2160, %v2203
        %v2205 = vand.u32 %v2204, 4294901760
        %v2206 = vsub.f32 %v2204, %v2205
        %v2207 = vand.u32 %v2206, 4294901760
        %2208 = vmatpush.xpose.msra.mxu0 %v2207
        %v2209 = vand.u32 %v2158, 4294901760
        %2210 = vmatmul.f32.gmra.mxu0 %v2209
        %v2211 = vpop.f32.mrf.mxu0
        %v2212 = vadd.f32 %v2186, %v2211
        %2213 = vdwg.mxu0
        %2214 = vmatpush.xpose.msra.mxu0 0.0
        %2215 = vmatpush.xpose.msra.mxu0 0.0
        %2216 = vmatpush.xpose.msra.mxu0 0.0
        %2217 = vmatpush.xpose.msra.mxu0 0.0
        %2218 = vmatpush.xpose.msra.mxu0 0.0
        %2219 = vmatpush.xpose.msra.mxu0 0.0
        %2220 = vmatpush.xpose.msra.mxu0 0.0
        %2221 = vmatpush.xpose.msra.mxu0 0.0
        %2222 = vmatpush.xpose.msra.mxu0 0.0
        %2223 = vmatpush.xpose.msra.mxu0 0.0
        %2224 = vmatpush.xpose.msra.mxu0 0.0
        %2225 = vmatpush.xpose.msra.mxu0 0.0
        %2226 = vmatpush.xpose.msra.mxu0 0.0
        %2227 = vmatpush.xpose.msra.mxu0 0.0
        %2228 = vmatpush.xpose.msra.mxu0 0.0
        %v2229 = vand.u32 %v2160, 4294901760
        %v2230 = vsub.f32 %v2160, %v2229
        %2231 = vmatpush.xpose.msra.mxu0 %v2230
        %v2232 = vand.u32 %v2158, 4294901760
        %v2233 = vsub.f32 %v2158, %v2232
        %2234 = vmatmul.f32.gmra.mxu0 %v2233
        %v2235 = vpop.f32.mrf.mxu0
        %v2236 = vadd.f32 %v2212, %v2235
        %2237 = vdwg.mxu0
        %2238 = vmatpush.xpose.msra.mxu0 0.0
        %2239 = vmatpush.xpose.msra.mxu0 0.0
        %2240 = vmatpush.xpose.msra.mxu0 0.0
        %2241 = vmatpush.xpose.msra.mxu0 0.0
        %2242 = vmatpush.xpose.msra.mxu0 0.0
        %2243 = vmatpush.xpose.msra.mxu0 0.0
        %2244 = vmatpush.xpose.msra.mxu0 0.0
        %2245 = vmatpush.xpose.msra.mxu0 0.0
        %2246 = vmatpush.xpose.msra.mxu0 0.0
        %2247 = vmatpush.xpose.msra.mxu0 0.0
        %2248 = vmatpush.xpose.msra.mxu0 0.0
        %2249 = vmatpush.xpose.msra.mxu0 0.0
        %2250 = vmatpush.xpose.msra.mxu0 0.0
        %2251 = vmatpush.xpose.msra.mxu0 0.0
        %2252 = vmatpush.xpose.msra.mxu0 0.0
        %v2253 = vand.u32 %v2160, 4294901760
        %2254 = vmatpush.xpose.msra.mxu0 %v2253
        %v2255 = vand.u32 %v2158, 4294901760
        %v2256 = vsub.f32 %v2158, %v2255
        %v2257 = vand.u32 %v2256, 4294901760
        %2258 = vmatmul.f32.gmra.mxu0 %v2257
        %v2259 = vpop.f32.mrf.mxu0
        %v2260 = vadd.f32 %v2236, %v2259
        %2261 = vdwg.mxu0
        %2262 = vmatpush.xpose.msra.mxu0 0.0
        %2263 = vmatpush.xpose.msra.mxu0 0.0
        %2264 = vmatpush.xpose.msra.mxu0 0.0
        %2265 = vmatpush.xpose.msra.mxu0 0.0
        %2266 = vmatpush.xpose.msra.mxu0 0.0
        %2267 = vmatpush.xpose.msra.mxu0 0.0
        %2268 = vmatpush.xpose.msra.mxu0 0.0
        %2269 = vmatpush.xpose.msra.mxu0 0.0
        %2270 = vmatpush.xpose.msra.mxu0 0.0
        %2271 = vmatpush.xpose.msra.mxu0 0.0
        %2272 = vmatpush.xpose.msra.mxu0 0.0
        %2273 = vmatpush.xpose.msra.mxu0 0.0
        %2274 = vmatpush.xpose.msra.mxu0 0.0
        %2275 = vmatpush.xpose.msra.mxu0 0.0
        %2276 = vmatpush.xpose.msra.mxu0 0.0
        %v2277 = vand.u32 %v2160, 4294901760
        %v2278 = vsub.f32 %v2160, %v2277
        %v2279 = vand.u32 %v2278, 4294901760
        %2280 = vmatpush.xpose.msra.mxu0 %v2279
        %v2281 = vand.u32 %v2158, 4294901760
        %2282 = vmatmul.f32.gmra.mxu0 %v2281
        %v2283 = vpop.f32.mrf.mxu0
        %v2284 = vadd.f32 %v2260, %v2283
        %2285 = vdwg.mxu0
        %2286 = vmatpush.xpose.msra.mxu0 0.0
        %2287 = vmatpush.xpose.msra.mxu0 0.0
        %2288 = vmatpush.xpose.msra.mxu0 0.0
        %2289 = vmatpush.xpose.msra.mxu0 0.0
        %2290 = vmatpush.xpose.msra.mxu0 0.0
        %2291 = vmatpush.xpose.msra.mxu0 0.0
        %2292 = vmatpush.xpose.msra.mxu0 0.0
        %2293 = vmatpush.xpose.msra.mxu0 0.0
        %2294 = vmatpush.xpose.msra.mxu0 0.0
        %2295 = vmatpush.xpose.msra.mxu0 0.0
        %2296 = vmatpush.xpose.msra.mxu0 0.0
        %2297 = vmatpush.xpose.msra.mxu0 0.0
        %2298 = vmatpush.xpose.msra.mxu0 0.0
        %2299 = vmatpush.xpose.msra.mxu0 0.0
        %2300 = vmatpush.xpose.msra.mxu0 0.0
        %v2301 = vand.u32 %v2160, 4294901760
        %2302 = vmatpush.xpose.msra.mxu0 %v2301
        %v2303 = vand.u32 %v2158, 4294901760
        %2304 = vmatmul.f32.gmra.mxu0 %v2303
        %v2305 = vpop.f32.mrf.mxu0
        %v2306 = vadd.f32 %v2284, %v2305
        %2307 = vdwg.mxu0
        %v2308 = vmul.f32 %v2306, 0.35355338
        %v2309 = vadd.f32 %v2308, %v920
        %v2310 = vsel %vm1161, %v2309, -inf
        %2311 = vmax.xlane.f32.xlu0 %v2310
        %v2312 = vpop.xlane.xlu0 %2311
        %v2313 = vsub.f32 %v2309, %v2312
        %v2314 = vmul.f32 %v2313, 1.442695
        %v2315 = vpow.pop %v2314
        %v2316 = vsel %vm1161, %v2315, 0.0
        %2317 = vadd.xlane.f32.xlu0 %v2316
        %v2318 = vpop.xlane.xlu0 %2317
        %v2319 = vrcp.pop %v2318
        %v2320 = vmul.f32 %v2318, %v2319
        %v2321 = vsub.f32 1.0, %v2320
        %v2322 = vmul.f32 %v2319, %v2321
        %v2323 = vadd.f32 %v2319, %v2322
        %vm2324 = vweird.f32 %v2318
        %vm2325 = vweird.f32 %v2319
        %vm2326 = vmor %vm2324, %vm2325
        %v2327 = vsel %vm2326, %v2319, %v2323
        %v2328 = vand.u32 2147483647, %v2318
        %vm2329 = vcmp.eq.f32.partialorder %v2328, 8.507059e+37
        %v2330 = vand.u32 %v2318, 2147483648
        %v2331 = vor.u32 1.1754944e-38, %v2330
        %v2332 = vsel %vm2329, %v2331, %v2327
        %v2333 = vmul.f32 %v2315, %v2332
        %2334 = vrot.lane.b32.xlu0 %v1156, 40
        %v2335 = vpop.permute.xlu0 %2334
        %v2338 = vsel %vm1161, %v2333, 0
        %2340 = vmatpush.msra.mxu0 0.0
        %2341 = vmatpush.msra.mxu0 0.0
        %2342 = vmatpush.msra.mxu0 0.0
        %2343 = vmatpush.msra.mxu0 0.0
        %2344 = vmatpush.msra.mxu0 0.0
        %2345 = vmatpush.msra.mxu0 0.0
        %2346 = vmatpush.msra.mxu0 0.0
        %2347 = vmatpush.msra.mxu0 0.0
        %2348 = vmatpush.msra.mxu0 0.0
        %2349 = vmatpush.msra.mxu0 0.0
        %2350 = vmatpush.msra.mxu0 0.0
        %2351 = vmatpush.msra.mxu0 0.0
        %2352 = vmatpush.msra.mxu0 0.0
        %2353 = vmatpush.msra.mxu0 0.0
        %2354 = vmatpush.msra.mxu0 0.0
        %v2355 = vand.u32 %v2335, 4294901760
        %2356 = vmatpush.msra.mxu0 %v2355
        %v2357 = vand.u32 %v2338, 4294901760
        %v2358 = vsub.f32 %v2338, %v2357
        %v2359 = vand.u32 %v2358, 4294901760
        %v2360 = vsub.f32 %v2358, %v2359
        %v2361 = vand.u32 %v2360, 4294901760
        %2362 = vmatmul.f32.gmra.mxu0 %v2361
        %v2363 = vpop.f32.mrf.mxu0
        %v2364 = vadd.f32 0.0, %v2363
        %2365 = vdwg.mxu0
        %2366 = vmatpush.msra.mxu0 0.0
        %2367 = vmatpush.msra.mxu0 0.0
        %2368 = vmatpush.msra.mxu0 0.0
        %2369 = vmatpush.msra.mxu0 0.0
        %2370 = vmatpush.msra.mxu0 0.0
        %2371 = vmatpush.msra.mxu0 0.0
        %2372 = vmatpush.msra.mxu0 0.0
        %2373 = vmatpush.msra.mxu0 0.0
        %2374 = vmatpush.msra.mxu0 0.0
        %2375 = vmatpush.msra.mxu0 0.0
        %2376 = vmatpush.msra.mxu0 0.0
        %2377 = vmatpush.msra.mxu0 0.0
        %2378 = vmatpush.msra.mxu0 0.0
        %2379 = vmatpush.msra.mxu0 0.0
        %2380 = vmatpush.msra.mxu0 0.0
        %v2381 = vand.u32 %v2335, 4294901760
        %v2382 = vsub.f32 %v2335, %v2381
        %v2383 = vand.u32 %v2382, 4294901760
        %v2384 = vsub.f32 %v2382, %v2383
        %v2385 = vand.u32 %v2384, 4294901760
        %2386 = vmatpush.msra.mxu0 %v2385
        %v2387 = vand.u32 %v2338, 4294901760
        %2388 = vmatmul.f32.gmra.mxu0 %v2387
        %v2389 = vpop.f32.mrf.mxu0
        %v2390 = vadd.f32 %v2364, %v2389
        %2391 = vdwg.mxu0
        %2392 = vmatpush.msra.mxu0 0.0
        %2393 = vmatpush.msra.mxu0 0.0
        %2394 = vmatpush.msra.mxu0 0.0
        %2395 = vmatpush.msra.mxu0 0.0
        %2396 = vmatpush.msra.mxu0 0.0
        %2397 = vmatpush.msra.mxu0 0.0
        %2398 = vmatpush.msra.mxu0 0.0
        %2399 = vmatpush.msra.mxu0 0.0
        %2400 = vmatpush.msra.mxu0 0.0
        %2401 = vmatpush.msra.mxu0 0.0
        %2402 = vmatpush.msra.mxu0 0.0
        %2403 = vmatpush.msra.mxu0 0.0
        %2404 = vmatpush.msra.mxu0 0.0
        %2405 = vmatpush.msra.mxu0 0.0
        %2406 = vmatpush.msra.mxu0 0.0
        %v2407 = vand.u32 %v2335, 4294901760
        %v2408 = vsub.f32 %v2335, %v2407
        %2409 = vmatpush.msra.mxu0 %v2408
        %v2410 = vand.u32 %v2338, 4294901760
        %v2411 = vsub.f32 %v2338, %v2410
        %2412 = vmatmul.f32.gmra.mxu0 %v2411
        %v2413 = vpop.f32.mrf.mxu0
        %v2414 = vadd.f32 %v2390, %v2413
        %2415 = vdwg.mxu0
        %2416 = vmatpush.msra.mxu0 0.0
        %2417 = vmatpush.msra.mxu0 0.0
        %2418 = vmatpush.msra.mxu0 0.0
        %2419 = vmatpush.msra.mxu0 0.0
        %2420 = vmatpush.msra.mxu0 0.0
        %2421 = vmatpush.msra.mxu0 0.0
        %2422 = vmatpush.msra.mxu0 0.0
        %2423 = vmatpush.msra.mxu0 0.0
        %2424 = vmatpush.msra.mxu0 0.0
        %2425 = vmatpush.msra.mxu0 0.0
        %2426 = vmatpush.msra.mxu0 0.0
        %2427 = vmatpush.msra.mxu0 0.0
        %2428 = vmatpush.msra.mxu0 0.0
        %2429 = vmatpush.msra.mxu0 0.0
        %2430 = vmatpush.msra.mxu0 0.0
        %v2431 = vand.u32 %v2335, 4294901760
        %2432 = vmatpush.msra.mxu0 %v2431
        %v2433 = vand.u32 %v2338, 4294901760
        %v2434 = vsub.f32 %v2338, %v2433
        %v2435 = vand.u32 %v2434, 4294901760
        %2436 = vmatmul.f32.gmra.mxu0 %v2435
        %v2437 = vpop.f32.mrf.mxu0
        %v2438 = vadd.f32 %v2414, %v2437
        %2439 = vdwg.mxu0
        %2440 = vmatpush.msra.mxu0 0.0
        %2441 = vmatpush.msra.mxu0 0.0
        %2442 = vmatpush.msra.mxu0 0.0
        %2443 = vmatpush.msra.mxu0 0.0
        %2444 = vmatpush.msra.mxu0 0.0
        %2445 = vmatpush.msra.mxu0 0.0
        %2446 = vmatpush.msra.mxu0 0.0
        %2447 = vmatpush.msra.mxu0 0.0
        %2448 = vmatpush.msra.mxu0 0.0
        %2449 = vmatpush.msra.mxu0 0.0
        %2450 = vmatpush.msra.mxu0 0.0
        %2451 = vmatpush.msra.mxu0 0.0
        %2452 = vmatpush.msra.mxu0 0.0
        %2453 = vmatpush.msra.mxu0 0.0
        %2454 = vmatpush.msra.mxu0 0.0
        %v2455 = vand.u32 %v2335, 4294901760
        %v2456 = vsub.f32 %v2335, %v2455
        %v2457 = vand.u32 %v2456, 4294901760
        %2458 = vmatpush.msra.mxu0 %v2457
        %v2459 = vand.u32 %v2338, 4294901760
        %2460 = vmatmul.f32.gmra.mxu0 %v2459
        %v2461 = vpop.f32.mrf.mxu0
        %v2462 = vadd.f32 %v2438, %v2461
        %2463 = vdwg.mxu0
        %2464 = vmatpush.msra.mxu0 0.0
        %2465 = vmatpush.msra.mxu0 0.0
        %2466 = vmatpush.msra.mxu0 0.0
        %2467 = vmatpush.msra.mxu0 0.0
        %2468 = vmatpush.msra.mxu0 0.0
        %2469 = vmatpush.msra.mxu0 0.0
        %2470 = vmatpush.msra.mxu0 0.0
        %2471 = vmatpush.msra.mxu0 0.0
        %2472 = vmatpush.msra.mxu0 0.0
        %2473 = vmatpush.msra.mxu0 0.0
        %2474 = vmatpush.msra.mxu0 0.0
        %2475 = vmatpush.msra.mxu0 0.0
        %2476 = vmatpush.msra.mxu0 0.0
        %2477 = vmatpush.msra.mxu0 0.0
        %2478 = vmatpush.msra.mxu0 0.0
        %v2479 = vand.u32 %v2335, 4294901760
        %2480 = vmatpush.msra.mxu0 %v2479
        %v2481 = vand.u32 %v2338, 4294901760
        %2482 = vmatmul.f32.gmra.mxu0 %v2481
        %v2483 = vpop.f32.mrf.mxu0
        %v2484 = vadd.f32 %v2462, %v2483
        %2485 = vdwg.mxu0
        %2487 = vrot.lane.b32.xlu0 %v1820, 8
        %v2488 = vpop.permute.xlu0 %2487
        %2491 = vrot.lane.b32.xlu0 %v2152, 16
        %v2492 = vpop.permute.xlu0 %2491
        %2495 = vrot.lane.b32.xlu0 %v2484, 24
        %v2496 = vpop.permute.xlu0 %2495
        %v2498 = vsel %vm1161, %v1488, %v2488
        %vm2499 = vcmask 130048
        %v2500 = vsel %vm2499, %v2498, %v2492
        %vm2501 = vcmask 195584
        %v2502 = vsel %vm2501, %v2500, %v2496
        %v2503 = vld [vmem:[%s6] sm:$0xff]
        %v2504 = vld [vmem:[%s6 + $0x8] sm:$0xff]
        %v2505 = vld [vmem:[%s6 + $0x10] sm:$0xff]
        %v2506 = vld [vmem:[%s6 + $0x18] sm:$0xff]
        %v2508 = vsel %vm924, %v2502, 0
        %2510 = vmatpush.msra.mxu0 0.0
        %2511 = vmatpush.msra.mxu0 0.0
        %2512 = vmatpush.msra.mxu0 0.0
        %2513 = vmatpush.msra.mxu0 0.0
        %2514 = vmatpush.msra.mxu0 0.0
        %2515 = vmatpush.msra.mxu0 0.0
        %2516 = vmatpush.msra.mxu0 0.0
        %2517 = vmatpush.msra.mxu0 0.0
        %2518 = vmatpush.msra.mxu0 0.0
        %2519 = vmatpush.msra.mxu0 0.0
        %2520 = vmatpush.msra.mxu0 0.0
        %2521 = vmatpush.msra.mxu0 0.0
        %v2522 = vand.u32 %v2506, 4294901760
        %2523 = vmatpush.msra.mxu0 %v2522
        %v2524 = vand.u32 %v2505, 4294901760
        %2525 = vmatpush.msra.mxu0 %v2524
        %v2526 = vand.u32 %v2504, 4294901760
        %2527 = vmatpush.msra.mxu0 %v2526
        %v2528 = vand.u32 %v2503, 4294901760
        %2529 = vmatpush.msra.mxu0 %v2528
        %v2530 = vand.u32 %v2508, 4294901760
        %v2531 = vsub.f32 %v2508, %v2530
        %v2532 = vand.u32 %v2531, 4294901760
        %v2533 = vsub.f32 %v2531, %v2532
        %v2534 = vand.u32 %v2533, 4294901760
        %2535 = vmatmul.f32.gmra.mxu0 %v2534
        %v2536 = vpop.f32.mrf.mxu0
        %v2537 = vadd.f32 0.0, %v2536
        %2538 = vdwg.mxu0
        %2539 = vmatpush.msra.mxu0 0.0
        %2540 = vmatpush.msra.mxu0 0.0
        %2541 = vmatpush.msra.mxu0 0.0
        %2542 = vmatpush.msra.mxu0 0.0
        %2543 = vmatpush.msra.mxu0 0.0
        %2544 = vmatpush.msra.mxu0 0.0
        %2545 = vmatpush.msra.mxu0 0.0
        %2546 = vmatpush.msra.mxu0 0.0
        %2547 = vmatpush.msra.mxu0 0.0
        %2548 = vmatpush.msra.mxu0 0.0
        %2549 = vmatpush.msra.mxu0 0.0
        %2550 = vmatpush.msra.mxu0 0.0
        %v2551 = vand.u32 %v2506, 4294901760
        %v2552 = vsub.f32 %v2506, %v2551
        %v2553 = vand.u32 %v2552, 4294901760
        %v2554 = vsub.f32 %v2552, %v2553
        %v2555 = vand.u32 %v2554, 4294901760
        %2556 = vmatpush.msra.mxu0 %v2555
        %v2557 = vand.u32 %v2505, 4294901760
        %v2558 = vsub.f32 %v2505, %v2557
        %v2559 = vand.u32 %v2558, 4294901760
        %v2560 = vsub.f32 %v2558, %v2559
        %v2561 = vand.u32 %v2560, 4294901760
        %2562 = vmatpush.msra.mxu0 %v2561
        %v2563 = vand.u32 %v2504, 4294901760
        %v2564 = vsub.f32 %v2504, %v2563
        %v2565 = vand.u32 %v2564, 4294901760
        %v2566 = vsub.f32 %v2564, %v2565
        %v2567 = vand.u32 %v2566, 4294901760
        %2568 = vmatpush.msra.mxu0 %v2567
        %v2569 = vand.u32 %v2503, 4294901760
        %v2570 = vsub.f32 %v2503, %v2569
        %v2571 = vand.u32 %v2570, 4294901760
        %v2572 = vsub.f32 %v2570, %v2571
        %v2573 = vand.u32 %v2572, 4294901760
        %2574 = vmatpush.msra.mxu0 %v2573
        %v2575 = vand.u32 %v2508, 4294901760
        %2576 = vmatmul.f32.gmra.mxu0 %v2575
        %v2577 = vpop.f32.mrf.mxu0
        %v2578 = vadd.f32 %v2537, %v2577
        %2579 = vdwg.mxu0
        %2580 = vmatpush.msra.mxu0 0.0
        %2581 = vmatpush.msra.mxu0 0.0
        %2582 = vmatpush.msra.mxu0 0.0
        %2583 = vmatpush.msra.mxu0 0.0
        %2584 = vmatpush.msra.mxu0 0.0
        %2585 = vmatpush.msra.mxu0 0.0
        %2586 = vmatpush.msra.mxu0 0.0
        %2587 = vmatpush.msra.mxu0 0.0
        %2588 = vmatpush.msra.mxu0 0.0
        %2589 = vmatpush.msra.mxu0 0.0
        %2590 = vmatpush.msra.mxu0 0.0
        %2591 = vmatpush.msra.mxu0 0.0
        %v2592 = vand.u32 %v2506, 4294901760
        %v2593 = vsub.f32 %v2506, %v2592
        %2594 = vmatpush.msra.mxu0 %v2593
        %v2595 = vand.u32 %v2505, 4294901760
        %v2596 = vsub.f32 %v2505, %v2595
        %2597 = vmatpush.msra.mxu0 %v2596
        %v2598 = vand.u32 %v2504, 4294901760
        %v2599 = vsub.f32 %v2504, %v2598
        %2600 = vmatpush.msra.mxu0 %v2599
        %v2601 = vand.u32 %v2503, 4294901760
        %v2602 = vsub.f32 %v2503, %v2601
        %2603 = vmatpush.msra.mxu0 %v2602
        %v2604 = vand.u32 %v2508, 4294901760
        %v2605 = vsub.f32 %v2508, %v2604
        %2606 = vmatmul.f32.gmra.mxu0 %v2605
        %v2607 = vpop.f32.mrf.mxu0
        %v2608 = vadd.f32 %v2578, %v2607
        %2609 = vdwg.mxu0
        %2610 = vmatpush.msra.mxu0 0.0
        %2611 = vmatpush.msra.mxu0 0.0
        %2612 = vmatpush.msra.mxu0 0.0
        %2613 = vmatpush.msra.mxu0 0.0
        %2614 = vmatpush.msra.mxu0 0.0
        %2615 = vmatpush.msra.mxu0 0.0
        %2616 = vmatpush.msra.mxu0 0.0
        %2617 = vmatpush.msra.mxu0 0.0
        %2618 = vmatpush.msra.mxu0 0.0
        %2619 = vmatpush.msra.mxu0 0.0
        %2620 = vmatpush.msra.mxu0 0.0
        %2621 = vmatpush.msra.mxu0 0.0
        %v2622 = vand.u32 %v2506, 4294901760
        %2623 = vmatpush.msra.mxu0 %v2622
        %v2624 = vand.u32 %v2505, 4294901760
        %2625 = vmatpush.msra.mxu0 %v2624
        %v2626 = vand.u32 %v2504, 4294901760
        %2627 = vmatpush.msra.mxu0 %v2626
        %v2628 = vand.u32 %v2503, 4294901760
        %2629 = vmatpush.msra.mxu0 %v2628
        %v2630 = vand.u32 %v2508, 4294901760
        %v2631 = vsub.f32 %v2508, %v2630
        %v2632 = vand.u32 %v2631, 4294901760
        %2633 = vmatmul.f32.gmra.mxu0 %v2632
        %v2634 = vpop.f32.mrf.mxu0
        %v2635 = vadd.f32 %v2608, %v2634
        %2636 = vdwg.mxu0
        %2637 = vmatpush.msra.mxu0 0.0
        %2638 = vmatpush.msra.mxu0 0.0
        %2639 = vmatpush.msra.mxu0 0.0
        %2640 = vmatpush.msra.mxu0 0.0
        %2641 = vmatpush.msra.mxu0 0.0
        %2642 = vmatpush.msra.mxu0 0.0
        %2643 = vmatpush.msra.mxu0 0.0
        %2644 = vmatpush.msra.mxu0 0.0
        %2645 = vmatpush.msra.mxu0 0.0
        %2646 = vmatpush.msra.mxu0 0.0
        %2647 = vmatpush.msra.mxu0 0.0
        %2648 = vmatpush.msra.mxu0 0.0
        %v2649 = vand.u32 %v2506, 4294901760
        %v2650 = vsub.f32 %v2506, %v2649
        %v2651 = vand.u32 %v2650, 4294901760
        %2652 = vmatpush.msra.mxu0 %v2651
        %v2653 = vand.u32 %v2505, 4294901760
        %v2654 = vsub.f32 %v2505, %v2653
        %v2655 = vand.u32 %v2654, 4294901760
        %2656 = vmatpush.msra.mxu0 %v2655
        %v2657 = vand.u32 %v2504, 4294901760
        %v2658 = vsub.f32 %v2504, %v2657
        %v2659 = vand.u32 %v2658, 4294901760
        %2660 = vmatpush.msra.mxu0 %v2659
        %v2661 = vand.u32 %v2503, 4294901760
        %v2662 = vsub.f32 %v2503, %v2661
        %v2663 = vand.u32 %v2662, 4294901760
        %2664 = vmatpush.msra.mxu0 %v2663
        %v2665 = vand.u32 %v2508, 4294901760
        %2666 = vmatmul.f32.gmra.mxu0 %v2665
        %v2667 = vpop.f32.mrf.mxu0
        %v2668 = vadd.f32 %v2635, %v2667
        %2669 = vdwg.mxu0
        %2670 = vmatpush.msra.mxu0 0.0
        %2671 = vmatpush.msra.mxu0 0.0
        %2672 = vmatpush.msra.mxu0 0.0
        %2673 = vmatpush.msra.mxu0 0.0
        %2674 = vmatpush.msra.mxu0 0.0
        %2675 = vmatpush.msra.mxu0 0.0
        %2676 = vmatpush.msra.mxu0 0.0
        %2677 = vmatpush.msra.mxu0 0.0
        %2678 = vmatpush.msra.mxu0 0.0
        %2679 = vmatpush.msra.mxu0 0.0
        %2680 = vmatpush.msra.mxu0 0.0
        %2681 = vmatpush.msra.mxu0 0.0
        %v2682 = vand.u32 %v2506, 4294901760
        %2683 = vmatpush.msra.mxu0 %v2682
        %v2684 = vand.u32 %v2505, 4294901760
        %2685 = vmatpush.msra.mxu0 %v2684
        %v2686 = vand.u32 %v2504, 4294901760
        %2687 = vmatpush.msra.mxu0 %v2686
        %v2688 = vand.u32 %v2503, 4294901760
        %2689 = vmatpush.msra.mxu0 %v2688
        %v2690 = vand.u32 %v2508, 4294901760
        %2691 = vmatmul.f32.gmra.mxu0 %v2690
        %v2692 = vpop.f32.mrf.mxu0
        %v2693 = vadd.f32 %v2668, %v2692
        %2694 = vdwg.mxu0
        %v2695 = vadd.f32 %v918, %v2693
        %v2696 = vld [vmem:[%s7] sm:$0x1]
        %v2698 = vperm.slane %v2696, 0
        %v2700 = vadd.f32 %v2695, %v2698
        %v2701 = vld [vmem:[%s16] sm:$0x1]
        %v2702 = vld [vmem:[%s17] sm:$0x1]
        %v2703 = vsel %vm924, %v2700, 0.0
        %2704 = vadd.xlane.f32.xlu0 %v2703
        %v2705 = vpop.xlane.xlu0 %2704
        %v2706 = vmul.f32 %v2705, %v934
        %v2707 = vsub.f32 %v2700, %v2706
        %v2708 = vmul.f32 %v2707, %v2707
        %v2709 = vsel %vm924, %v2708, 0.0
        %2710 = vadd.xlane.f32.xlu0 %v2709
        %v2711 = vpop.xlane.xlu0 %2710
        %v2712 = vmul.f32 %v2711, %v934
        %v2714 = vperm.slane %v2701, 0
        %v2716 = vmul.f32 %v2714, %v2707
        %v2717 = vadd.f32 %v2712, 1e-06
        %v2718 = vrsqrt.pop %v2717
        %v2719 = vmul.f32 %v2718, %v2717
        %v2720 = vmul.f32 %v2719, %v2718
        %v2721 = vmul.f32 0.5, %v2720
        %v2722 = vsub.f32 1.5, %v2721
        %v2723 = vmul.f32 %v2718, %v2722
        %vm2724 = vweird.f32 %v2717
        %vm2725 = vweird.f32 %v2718
        %vm2726 = vmor %vm2724, %vm2725
        %v2727 = vsel %vm2726, %v2718, %v2723
        %v2728 = vmul.f32 %v2716, %v2727
        %v2730 = vperm.slane %v2702, 0
        %v2732 = vadd.f32 %v2728, %v2730
        %v2733 = vld [vmem:[%s10] sm:$0xff]
        %v2734 = vld [vmem:[%s10 + $0x8] sm:$0xff]
        %v2735 = vld [vmem:[%s10 + $0x10] sm:$0xff]
        %v2736 = vld [vmem:[%s10 + $0x18] sm:$0xff]
        %v2737 = vld [vmem:[%s11] sm:$0x1]
        %v2739 = vperm.slane %v2737, 0
        %v2742 = vsel %vm924, %v2732, 0
        %2744 = vmatpush.msra.mxu0 0.0
        %2745 = vmatpush.msra.mxu0 0.0
        %2746 = vmatpush.msra.mxu0 0.0
        %2747 = vmatpush.msra.mxu0 0.0
        %2748 = vmatpush.msra.mxu0 0.0
        %2749 = vmatpush.msra.mxu0 0.0
        %2750 = vmatpush.msra.mxu0 0.0
        %2751 = vmatpush.msra.mxu0 0.0
        %2752 = vmatpush.msra.mxu0 0.0
        %2753 = vmatpush.msra.mxu0 0.0
        %2754 = vmatpush.msra.mxu0 0.0
        %2755 = vmatpush.msra.mxu0 0.0
        %v2756 = vand.u32 %v2736, 4294901760
        %2757 = vmatpush.msra.mxu0 %v2756
        %v2758 = vand.u32 %v2735, 4294901760
        %2759 = vmatpush.msra.mxu0 %v2758
        %v2760 = vand.u32 %v2734, 4294901760
        %2761 = vmatpush.msra.mxu0 %v2760
        %v2762 = vand.u32 %v2733, 4294901760
        %2763 = vmatpush.msra.mxu0 %v2762
        %v2764 = vand.u32 %v2742, 4294901760
        %v2765 = vsub.f32 %v2742, %v2764
        %v2766 = vand.u32 %v2765, 4294901760
        %v2767 = vsub.f32 %v2765, %v2766
        %v2768 = vand.u32 %v2767, 4294901760
        %2769 = vmatmul.f32.gmra.mxu0 %v2768
        %v2770 = vpop.f32.mrf.mxu0
        %v2771 = vadd.f32 %v2739, %v2770
        %2772 = vdwg.mxu0
        %2773 = vmatpush.msra.mxu0 0.0
        %2774 = vmatpush.msra.mxu0 0.0
        %2775 = vmatpush.msra.mxu0 0.0
        %2776 = vmatpush.msra.mxu0 0.0
        %2777 = vmatpush.msra.mxu0 0.0
        %2778 = vmatpush.msra.mxu0 0.0
        %2779 = vmatpush.msra.mxu0 0.0
        %2780 = vmatpush.msra.mxu0 0.0
        %2781 = vmatpush.msra.mxu0 0.0
        %2782 = vmatpush.msra.mxu0 0.0
        %2783 = vmatpush.msra.mxu0 0.0
        %2784 = vmatpush.msra.mxu0 0.0
        %v2785 = vand.u32 %v2736, 4294901760
        %v2786 = vsub.f32 %v2736, %v2785
        %v2787 = vand.u32 %v2786, 4294901760
        %v2788 = vsub.f32 %v2786, %v2787
        %v2789 = vand.u32 %v2788, 4294901760
        %2790 = vmatpush.msra.mxu0 %v2789
        %v2791 = vand.u32 %v2735, 4294901760
        %v2792 = vsub.f32 %v2735, %v2791
        %v2793 = vand.u32 %v2792, 4294901760
        %v2794 = vsub.f32 %v2792, %v2793
        %v2795 = vand.u32 %v2794, 4294901760
        %2796 = vmatpush.msra.mxu0 %v2795
        %v2797 = vand.u32 %v2734, 4294901760
        %v2798 = vsub.f32 %v2734, %v2797
        %v2799 = vand.u32 %v2798, 4294901760
        %v2800 = vsub.f32 %v2798, %v2799
        %v2801 = vand.u32 %v2800, 4294901760
        %2802 = vmatpush.msra.mxu0 %v2801
        %v2803 = vand.u32 %v2733, 4294901760
        %v2804 = vsub.f32 %v2733, %v2803
        %v2805 = vand.u32 %v2804, 4294901760
        %v2806 = vsub.f32 %v2804, %v2805
        %v2807 = vand.u32 %v2806, 4294901760
        %2808 = vmatpush.msra.mxu0 %v2807
        %v2809 = vand.u32 %v2742, 4294901760
        %2810 = vmatmul.f32.gmra.mxu0 %v2809
        %v2811 = vpop.f32.mrf.mxu0
        %v2812 = vadd.f32 %v2771, %v2811
        %2813 = vdwg.mxu0
        %2814 = vmatpush.msra.mxu0 0.0
        %2815 = vmatpush.msra.mxu0 0.0
        %2816 = vmatpush.msra.mxu0 0.0
        %2817 = vmatpush.msra.mxu0 0.0
        %2818 = vmatpush.msra.mxu0 0.0
        %2819 = vmatpush.msra.mxu0 0.0
        %2820 = vmatpush.msra.mxu0 0.0
        %2821 = vmatpush.msra.mxu0 0.0
        %2822 = vmatpush.msra.mxu0 0.0
        %2823 = vmatpush.msra.mxu0 0.0
        %2824 = vmatpush.msra.mxu0 0.0
        %2825 = vmatpush.msra.mxu0 0.0
        %v2826 = vand.u32 %v2736, 4294901760
        %v2827 = vsub.f32 %v2736, %v2826
        %2828 = vmatpush.msra.mxu0 %v2827
        %v2829 = vand.u32 %v2735, 4294901760
        %v2830 = vsub.f32 %v2735, %v2829
        %2831 = vmatpush.msra.mxu0 %v2830
        %v2832 = vand.u32 %v2734, 4294901760
        %v2833 = vsub.f32 %v2734, %v2832
        %2834 = vmatpush.msra.mxu0 %v2833
        %v2835 = vand.u32 %v2733, 4294901760
        %v2836 = vsub.f32 %v2733, %v2835
        %2837 = vmatpush.msra.mxu0 %v2836
        %v2838 = vand.u32 %v2742, 4294901760
        %v2839 = vsub.f32 %v2742, %v2838
        %2840 = vmatmul.f32.gmra.mxu0 %v2839
        %v2841 = vpop.f32.mrf.mxu0
        %v2842 = vadd.f32 %v2812, %v2841
        %2843 = vdwg.mxu0
        %2844 = vmatpush.msra.mxu0 0.0
        %2845 = vmatpush.msra.mxu0 0.0
        %2846 = vmatpush.msra.mxu0 0.0
        %2847 = vmatpush.msra.mxu0 0.0
        %2848 = vmatpush.msra.mxu0 0.0
        %2849 = vmatpush.msra.mxu0 0.0
        %2850 = vmatpush.msra.mxu0 0.0
        %2851 = vmatpush.msra.mxu0 0.0
        %2852 = vmatpush.msra.mxu0 0.0
        %2853 = vmatpush.msra.mxu0 0.0
        %2854 = vmatpush.msra.mxu0 0.0
        %2855 = vmatpush.msra.mxu0 0.0
        %v2856 = vand.u32 %v2736, 4294901760
        %2857 = vmatpush.msra.mxu0 %v2856
        %v2858 = vand.u32 %v2735, 4294901760
        %2859 = vmatpush.msra.mxu0 %v2858
        %v2860 = vand.u32 %v2734, 4294901760
        %2861 = vmatpush.msra.mxu0 %v2860
        %v2862 = vand.u32 %v2733, 4294901760
        %2863 = vmatpush.msra.mxu0 %v2862
        %v2864 = vand.u32 %v2742, 4294901760
        %v2865 = vsub.f32 %v2742, %v2864
        %v2866 = vand.u32 %v2865, 4294901760
        %2867 = vmatmul.f32.gmra.mxu0 %v2866
        %v2868 = vpop.f32.mrf.mxu0
        %v2869 = vadd.f32 %v2842, %v2868
        %2870 = vdwg.mxu0
        %2871 = vmatpush.msra.mxu0 0.0
        %2872 = vmatpush.msra.mxu0 0.0
        %2873 = vmatpush.msra.mxu0 0.0
        %2874 = vmatpush.msra.mxu0 0.0
        %2875 = vmatpush.msra.mxu0 0.0
        %2876 = vmatpush.msra.mxu0 0.0
        %2877 = vmatpush.msra.mxu0 0.0
        %2878 = vmatpush.msra.mxu0 0.0
        %2879 = vmatpush.msra.mxu0 0.0
        %2880 = vmatpush.msra.mxu0 0.0
        %2881 = vmatpush.msra.mxu0 0.0
        %2882 = vmatpush.msra.mxu0 0.0
        %v2883 = vand.u32 %v2736, 4294901760
        %v2884 = vsub.f32 %v2736, %v2883
        %v2885 = vand.u32 %v2884, 4294901760
        %2886 = vmatpush.msra.mxu0 %v2885
        %v2887 = vand.u32 %v2735, 4294901760
        %v2888 = vsub.f32 %v2735, %v2887
        %v2889 = vand.u32 %v2888, 4294901760
        %2890 = vmatpush.msra.mxu0 %v2889
        %v2891 = vand.u32 %v2734, 4294901760
        %v2892 = vsub.f32 %v2734, %v2891
        %v2893 = vand.u32 %v2892, 4294901760
        %2894 = vmatpush.msra.mxu0 %v2893
        %v2895 = vand.u32 %v2733, 4294901760
        %v2896 = vsub.f32 %v2733, %v2895
        %v2897 = vand.u32 %v2896, 4294901760
        %2898 = vmatpush.msra.mxu0 %v2897
        %v2899 = vand.u32 %v2742, 4294901760
        %2900 = vmatmul.f32.gmra.mxu0 %v2899
        %v2901 = vpop.f32.mrf.mxu0
        %v2902 = vadd.f32 %v2869, %v2901
        %2903 = vdwg.mxu0
        %2904 = vmatpush.msra.mxu0 0.0
        %2905 = vmatpush.msra.mxu0 0.0
        %2906 = vmatpush.msra.mxu0 0.0
        %2907 = vmatpush.msra.mxu0 0.0
        %2908 = vmatpush.msra.mxu0 0.0
        %2909 = vmatpush.msra.mxu0 0.0
        %2910 = vmatpush.msra.mxu0 0.0
        %2911 = vmatpush.msra.mxu0 0.0
        %2912 = vmatpush.msra.mxu0 0.0
        %2913 = vmatpush.msra.mxu0 0.0
        %2914 = vmatpush.msra.mxu0 0.0
        %2915 = vmatpush.msra.mxu0 0.0
        %v2916 = vand.u32 %v2736, 4294901760
        %2917 = vmatpush.msra.mxu0 %v2916
        %v2918 = vand.u32 %v2735, 4294901760
        %2919 = vmatpush.msra.mxu0 %v2918
        %v2920 = vand.u32 %v2734, 4294901760
        %2921 = vmatpush.msra.mxu0 %v2920
        %v2922 = vand.u32 %v2733, 4294901760
        %2923 = vmatpush.msra.mxu0 %v2922
        %v2924 = vand.u32 %v2742, 4294901760
        %2925 = vmatmul.f32.gmra.mxu0 %v2924
        %v2926 = vpop.f32.mrf.mxu0
        %v2927 = vadd.f32 %v2902, %v2926
        %2928 = vdwg.mxu0
        %v2929 = vld [vmem:[#allocation10] sm:$0xff]
        %v2930 = vld [vmem:[#allocation10 + $0x8] sm:$0xff]
        %v2931 = vld [vmem:[#allocation10 + $0x10] sm:$0xff]
        %v2932 = vld [vmem:[#allocation10 + $0x18] sm:$0xff]
        %v2933 = vld [vmem:[%s13] sm:$0x1]
        %v2935 = vperm.slane %v2933, 0
        %v2938 = vsel %vm924, %v919, 0
        %2940 = vmatpush.msra.mxu0 0.0
        %2941 = vmatpush.msra.mxu0 0.0
        %2942 = vmatpush.msra.mxu0 0.0
        %2943 = vmatpush.msra.mxu0 0.0
        %2944 = vmatpush.msra.mxu0 0.0
        %2945 = vmatpush.msra.mxu0 0.0
        %2946 = vmatpush.msra.mxu0 0.0
        %2947 = vmatpush.msra.mxu0 0.0
        %2948 = vmatpush.msra.mxu0 0.0
        %2949 = vmatpush.msra.mxu0 0.0
        %2950 = vmatpush.msra.mxu0 0.0
        %2951 = vmatpush.msra.mxu0 0.0
        %v2952 = vand.u32 %v2932, 4294901760
        %2953 = vmatpush.msra.mxu0 %v2952
        %v2954 = vand.u32 %v2931, 4294901760
        %2955 = vmatpush.msra.mxu0 %v2954
        %v2956 = vand.u32 %v2930, 4294901760
        %2957 = vmatpush.msra.mxu0 %v2956
        %v2958 = vand.u32 %v2929, 4294901760
        %2959 = vmatpush.msra.mxu0 %v2958
        %v2960 = vand.u32 %v2938, 4294901760
        %v2961 = vsub.f32 %v2938, %v2960
        %v2962 = vand.u32 %v2961, 4294901760
        %v2963 = vsub.f32 %v2961, %v2962
        %v2964 = vand.u32 %v2963, 4294901760
        %2965 = vmatmul.f32.gmra.mxu0 %v2964
        %v2966 = vpop.f32.mrf.mxu0
        %v2967 = vadd.f32 %v2935, %v2966
        %2968 = vdwg.mxu0
        %2969 = vmatpush.msra.mxu0 0.0
        %2970 = vmatpush.msra.mxu0 0.0
        %2971 = vmatpush.msra.mxu0 0.0
        %2972 = vmatpush.msra.mxu0 0.0
        %2973 = vmatpush.msra.mxu0 0.0
        %2974 = vmatpush.msra.mxu0 0.0
        %2975 = vmatpush.msra.mxu0 0.0
        %2976 = vmatpush.msra.mxu0 0.0
        %2977 = vmatpush.msra.mxu0 0.0
        %2978 = vmatpush.msra.mxu0 0.0
        %2979 = vmatpush.msra.mxu0 0.0
        %2980 = vmatpush.msra.mxu0 0.0
        %v2981 = vand.u32 %v2932, 4294901760
        %v2982 = vsub.f32 %v2932, %v2981
        %v2983 = vand.u32 %v2982, 4294901760
        %v2984 = vsub.f32 %v2982, %v2983
        %v2985 = vand.u32 %v2984, 4294901760
        %2986 = vmatpush.msra.mxu0 %v2985
        %v2987 = vand.u32 %v2931, 4294901760
        %v2988 = vsub.f32 %v2931, %v2987
        %v2989 = vand.u32 %v2988, 4294901760
        %v2990 = vsub.f32 %v2988, %v2989
        %v2991 = vand.u32 %v2990, 4294901760
        %2992 = vmatpush.msra.mxu0 %v2991
        %v2993 = vand.u32 %v2930, 4294901760
        %v2994 = vsub.f32 %v2930, %v2993
        %v2995 = vand.u32 %v2994, 4294901760
        %v2996 = vsub.f32 %v2994, %v2995
        %v2997 = vand.u32 %v2996, 4294901760
        %2998 = vmatpush.msra.mxu0 %v2997
        %v2999 = vand.u32 %v2929, 4294901760
        %v3000 = vsub.f32 %v2929, %v2999
        %v3001 = vand.u32 %v3000, 4294901760
        %v3002 = vsub.f32 %v3000, %v3001
        %v3003 = vand.u32 %v3002, 4294901760
        %3004 = vmatpush.msra.mxu0 %v3003
        %v3005 = vand.u32 %v2938, 4294901760
        %3006 = vmatmul.f32.gmra.mxu0 %v3005
        %v3007 = vpop.f32.mrf.mxu0
        %v3008 = vadd.f32 %v2967, %v3007
        %3009 = vdwg.mxu0
        %3010 = vmatpush.msra.mxu0 0.0
        %3011 = vmatpush.msra.mxu0 0.0
        %3012 = vmatpush.msra.mxu0 0.0
        %3013 = vmatpush.msra.mxu0 0.0
        %3014 = vmatpush.msra.mxu0 0.0
        %3015 = vmatpush.msra.mxu0 0.0
        %3016 = vmatpush.msra.mxu0 0.0
        %3017 = vmatpush.msra.mxu0 0.0
        %3018 = vmatpush.msra.mxu0 0.0
        %3019 = vmatpush.msra.mxu0 0.0
        %3020 = vmatpush.msra.mxu0 0.0
        %3021 = vmatpush.msra.mxu0 0.0
        %v3022 = vand.u32 %v2932, 4294901760
        %v3023 = vsub.f32 %v2932, %v3022
        %3024 = vmatpush.msra.mxu0 %v3023
        %v3025 = vand.u32 %v2931, 4294901760
        %v3026 = vsub.f32 %v2931, %v3025
        %3027 = vmatpush.msra.mxu0 %v3026
        %v3028 = vand.u32 %v2930, 4294901760
        %v3029 = vsub.f32 %v2930, %v3028
        %3030 = vmatpush.msra.mxu0 %v3029
        %v3031 = vand.u32 %v2929, 4294901760
        %v3032 = vsub.f32 %v2929, %v3031
        %3033 = vmatpush.msra.mxu0 %v3032
        %v3034 = vand.u32 %v2938, 4294901760
        %v3035 = vsub.f32 %v2938, %v3034
        %3036 = vmatmul.f32.gmra.mxu0 %v3035
        %v3037 = vpop.f32.mrf.mxu0
        %v3038 = vadd.f32 %v3008, %v3037
        %3039 = vdwg.mxu0
        %3040 = vmatpush.msra.mxu0 0.0
        %3041 = vmatpush.msra.mxu0 0.0
        %3042 = vmatpush.msra.mxu0 0.0
        %3043 = vmatpush.msra.mxu0 0.0
        %3044 = vmatpush.msra.mxu0 0.0
        %3045 = vmatpush.msra.mxu0 0.0
        %3046 = vmatpush.msra.mxu0 0.0
        %3047 = vmatpush.msra.mxu0 0.0
        %3048 = vmatpush.msra.mxu0 0.0
        %3049 = vmatpush.msra.mxu0 0.0
        %3050 = vmatpush.msra.mxu0 0.0
        %3051 = vmatpush.msra.mxu0 0.0
        %v3052 = vand.u32 %v2932, 4294901760
        %3053 = vmatpush.msra.mxu0 %v3052
        %v3054 = vand.u32 %v2931, 4294901760
        %3055 = vmatpush.msra.mxu0 %v3054
        %v3056 = vand.u32 %v2930, 4294901760
        %3057 = vmatpush.msra.mxu0 %v3056
        %v3058 = vand.u32 %v2929, 4294901760
        %3059 = vmatpush.msra.mxu0 %v3058
        %v3060 = vand.u32 %v2938, 4294901760
        %v3061 = vsub.f32 %v2938, %v3060
        %v3062 = vand.u32 %v3061, 4294901760
        %3063 = vmatmul.f32.gmra.mxu0 %v3062
        %v3064 = vpop.f32.mrf.mxu0
        %v3065 = vadd.f32 %v3038, %v3064
        %3066 = vdwg.mxu0
        %3067 = vmatpush.msra.mxu0 0.0
        %3068 = vmatpush.msra.mxu0 0.0
        %3069 = vmatpush.msra.mxu0 0.0
        %3070 = vmatpush.msra.mxu0 0.0
        %3071 = vmatpush.msra.mxu0 0.0
        %3072 = vmatpush.msra.mxu0 0.0
        %3073 = vmatpush.msra.mxu0 0.0
        %3074 = vmatpush.msra.mxu0 0.0
        %3075 = vmatpush.msra.mxu0 0.0
        %3076 = vmatpush.msra.mxu0 0.0
        %3077 = vmatpush.msra.mxu0 0.0
        %3078 = vmatpush.msra.mxu0 0.0
        %v3079 = vand.u32 %v2932, 4294901760
        %v3080 = vsub.f32 %v2932, %v3079
        %v3081 = vand.u32 %v3080, 4294901760
        %3082 = vmatpush.msra.mxu0 %v3081
        %v3083 = vand.u32 %v2931, 4294901760
        %v3084 = vsub.f32 %v2931, %v3083
        %v3085 = vand.u32 %v3084, 4294901760
        %3086 = vmatpush.msra.mxu0 %v3085
        %v3087 = vand.u32 %v2930, 4294901760
        %v3088 = vsub.f32 %v2930, %v3087
        %v3089 = vand.u32 %v3088, 4294901760
        %3090 = vmatpush.msra.mxu0 %v3089
        %v3091 = vand.u32 %v2929, 4294901760
        %v3092 = vsub.f32 %v2929, %v3091
        %v3093 = vand.u32 %v3092, 4294901760
        %3094 = vmatpush.msra.mxu0 %v3093
        %v3095 = vand.u32 %v2938, 4294901760
        %3096 = vmatmul.f32.gmra.mxu0 %v3095
        %v3097 = vpop.f32.mrf.mxu0
        %v3098 = vadd.f32 %v3065, %v3097
        %3099 = vdwg.mxu0
        %3100 = vmatpush.msra.mxu0 0.0
        %3101 = vmatpush.msra.mxu0 0.0
        %3102 = vmatpush.msra.mxu0 0.0
        %3103 = vmatpush.msra.mxu0 0.0
        %3104 = vmatpush.msra.mxu0 0.0
        %3105 = vmatpush.msra.mxu0 0.0
        %3106 = vmatpush.msra.mxu0 0.0
        %3107 = vmatpush.msra.mxu0 0.0
        %3108 = vmatpush.msra.mxu0 0.0
        %3109 = vmatpush.msra.mxu0 0.0
        %3110 = vmatpush.msra.mxu0 0.0
        %3111 = vmatpush.msra.mxu0 0.0
        %v3112 = vand.u32 %v2932, 4294901760
        %3113 = vmatpush.msra.mxu0 %v3112
        %v3114 = vand.u32 %v2931, 4294901760
        %3115 = vmatpush.msra.mxu0 %v3114
        %v3116 = vand.u32 %v2930, 4294901760
        %3117 = vmatpush.msra.mxu0 %v3116
        %v3118 = vand.u32 %v2929, 4294901760
        %3119 = vmatpush.msra.mxu0 %v3118
        %v3120 = vand.u32 %v2938, 4294901760
        %3121 = vmatmul.f32.gmra.mxu0 %v3120
        %v3122 = vpop.f32.mrf.mxu0
        %v3123 = vadd.f32 %v3098, %v3122
        %3124 = vdwg.mxu0
        %v3126 = vsel %vm1161, %v2927, 0
        %v3129 = vsel %vm1161, %v3123, 0
        %3131 = vmatpush.xpose.msra.mxu0 0.0
        %3132 = vmatpush.xpose.msra.mxu0 0.0
        %3133 = vmatpush.xpose.msra.mxu0 0.0
        %3134 = vmatpush.xpose.msra.mxu0 0.0
        %3135 = vmatpush.xpose.msra.mxu0 0.0
        %3136 = vmatpush.xpose.msra.mxu0 0.0
        %3137 = vmatpush.xpose.msra.mxu0 0.0
        %3138 = vmatpush.xpose.msra.mxu0 0.0
        %3139 = vmatpush.xpose.msra.mxu0 0.0
        %3140 = vmatpush.xpose.msra.mxu0 0.0
        %3141 = vmatpush.xpose.msra.mxu0 0.0
        %3142 = vmatpush.xpose.msra.mxu0 0.0
        %3143 = vmatpush.xpose.msra.mxu0 0.0
        %3144 = vmatpush.xpose.msra.mxu0 0.0
        %3145 = vmatpush.xpose.msra.mxu0 0.0
        %v3146 = vand.u32 %v3129, 4294901760
        %3147 = vmatpush.xpose.msra.mxu0 %v3146
        %v3148 = vand.u32 %v3126, 4294901760
        %v3149 = vsub.f32 %v3126, %v3148
        %v3150 = vand.u32 %v3149, 4294901760
        %v3151 = vsub.f32 %v3149, %v3150
        %v3152 = vand.u32 %v3151, 4294901760
        %3153 = vmatmul.f32.gmra.mxu0 %v3152
        %v3154 = vpop.f32.mrf.mxu0
        %v3155 = vadd.f32 0.0, %v3154
        %3156 = vdwg.mxu0
        %3157 = vmatpush.xpose.msra.mxu0 0.0
        %3158 = vmatpush.xpose.msra.mxu0 0.0
        %3159 = vmatpush.xpose.msra.mxu0 0.0
        %3160 = vmatpush.xpose.msra.mxu0 0.0
        %3161 = vmatpush.xpose.msra.mxu0 0.0
        %3162 = vmatpush.xpose.msra.mxu0 0.0
        %3163 = vmatpush.xpose.msra.mxu0 0.0
        %3164 = vmatpush.xpose.msra.mxu0 0.0
        %3165 = vmatpush.xpose.msra.mxu0 0.0
        %3166 = vmatpush.xpose.msra.mxu0 0.0
        %3167 = vmatpush.xpose.msra.mxu0 0.0
        %3168 = vmatpush.xpose.msra.mxu0 0.0
        %3169 = vmatpush.xpose.msra.mxu0 0.0
        %3170 = vmatpush.xpose.msra.mxu0 0.0
        %3171 = vmatpush.xpose.msra.mxu0 0.0
        %v3172 = vand.u32 %v3129, 4294901760
        %v3173 = vsub.f32 %v3129, %v3172
        %v3174 = vand.u32 %v3173, 4294901760
        %v3175 = vsub.f32 %v3173, %v3174
        %v3176 = vand.u32 %v3175, 4294901760
        %3177 = vmatpush.xpose.msra.mxu0 %v3176
        %v3178 = vand.u32 %v3126, 4294901760
        %3179 = vmatmul.f32.gmra.mxu0 %v3178
        %v3180 = vpop.f32.mrf.mxu0
        %v3181 = vadd.f32 %v3155, %v3180
        %3182 = vdwg.mxu0
        %3183 = vmatpush.xpose.msra.mxu0 0.0
        %3184 = vmatpush.xpose.msra.mxu0 0.0
        %3185 = vmatpush.xpose.msra.mxu0 0.0
        %3186 = vmatpush.xpose.msra.mxu0 0.0
        %3187 = vmatpush.xpose.msra.mxu0 0.0
        %3188 = vmatpush.xpose.msra.mxu0 0.0
        %3189 = vmatpush.xpose.msra.mxu0 0.0
        %3190 = vmatpush.xpose.msra.mxu0 0.0
        %3191 = vmatpush.xpose.msra.mxu0 0.0
        %3192 = vmatpush.xpose.msra.mxu0 0.0
        %3193 = vmatpush.xpose.msra.mxu0 0.0
        %3194 = vmatpush.xpose.msra.mxu0 0.0
        %3195 = vmatpush.xpose.msra.mxu0 0.0
        %3196 = vmatpush.xpose.msra.mxu0 0.0
        %3197 = vmatpush.xpose.msra.mxu0 0.0
        %v3198 = vand.u32 %v3129, 4294901760
        %v3199 = vsub.f32 %v3129, %v3198
        %3200 = vmatpush.xpose.msra.mxu0 %v3199
        %v3201 = vand.u32 %v3126, 4294901760
        %v3202 = vsub.f32 %v3126, %v3201
        %3203 = vmatmul.f32.gmra.mxu0 %v3202
        %v3204 = vpop.f32.mrf.mxu0
        %v3205 = vadd.f32 %v3181, %v3204
        %3206 = vdwg.mxu0
        %3207 = vmatpush.xpose.msra.mxu0 0.0
        %3208 = vmatpush.xpose.msra.mxu0 0.0
        %3209 = vmatpush.xpose.msra.mxu0 0.0
        %3210 = vmatpush.xpose.msra.mxu0 0.0
        %3211 = vmatpush.xpose.msra.mxu0 0.0
        %3212 = vmatpush.xpose.msra.mxu0 0.0
        %3213 = vmatpush.xpose.msra.mxu0 0.0
        %3214 = vmatpush.xpose.msra.mxu0 0.0
        %3215 = vmatpush.xpose.msra.mxu0 0.0
        %3216 = vmatpush.xpose.msra.mxu0 0.0
        %3217 = vmatpush.xpose.msra.mxu0 0.0
        %3218 = vmatpush.xpose.msra.mxu0 0.0
        %3219 = vmatpush.xpose.msra.mxu0 0.0
        %3220 = vmatpush.xpose.msra.mxu0 0.0
        %3221 = vmatpush.xpose.msra.mxu0 0.0
        %v3222 = vand.u32 %v3129, 4294901760
        %3223 = vmatpush.xpose.msra.mxu0 %v3222
        %v3224 = vand.u32 %v3126, 4294901760
        %v3225 = vsub.f32 %v3126, %v3224
        %v3226 = vand.u32 %v3225, 4294901760
        %3227 = vmatmul.f32.gmra.mxu0 %v3226
        %v3228 = vpop.f32.mrf.mxu0
        %v3229 = vadd.f32 %v3205, %v3228
        %3230 = vdwg.mxu0
        %3231 = vmatpush.xpose.msra.mxu0 0.0
        %3232 = vmatpush.xpose.msra.mxu0 0.0
        %3233 = vmatpush.xpose.msra.mxu0 0.0
        %3234 = vmatpush.xpose.msra.mxu0 0.0
        %3235 = vmatpush.xpose.msra.mxu0 0.0
        %3236 = vmatpush.xpose.msra.mxu0 0.0
        %3237 = vmatpush.xpose.msra.mxu0 0.0
        %3238 = vmatpush.xpose.msra.mxu0 0.0
        %3239 = vmatpush.xpose.msra.mxu0 0.0
        %3240 = vmatpush.xpose.msra.mxu0 0.0
        %3241 = vmatpush.xpose.msra.mxu0 0.0
        %3242 = vmatpush.xpose.msra.mxu0 0.0
        %3243 = vmatpush.xpose.msra.mxu0 0.0
        %3244 = vmatpush.xpose.msra.mxu0 0.0
        %3245 = vmatpush.xpose.msra.mxu0 0.0
        %v3246 = vand.u32 %v3129, 4294901760
        %v3247 = vsub.f32 %v3129, %v3246
        %v3248 = vand.u32 %v3247, 4294901760
        %3249 = vmatpush.xpose.msra.mxu0 %v3248
        %v3250 = vand.u32 %v3126, 4294901760
        %3251 = vmatmul.f32.gmra.mxu0 %v3250
        %v3252 = vpop.f32.mrf.mxu0
        %v3253 = vadd.f32 %v3229, %v3252
        %3254 = vdwg.mxu0
        %3255 = vmatpush.xpose.msra.mxu0 0.0
        %3256 = vmatpush.xpose.msra.mxu0 0.0
        %3257 = vmatpush.xpose.msra.mxu0 0.0
        %3258 = vmatpush.xpose.msra.mxu0 0.0
        %3259 = vmatpush.xpose.msra.mxu0 0.0
        %3260 = vmatpush.xpose.msra.mxu0 0.0
        %3261 = vmatpush.xpose.msra.mxu0 0.0
        %3262 = vmatpush.xpose.msra.mxu0 0.0
        %3263 = vmatpush.xpose.msra.mxu0 0.0
        %3264 = vmatpush.xpose.msra.mxu0 0.0
        %3265 = vmatpush.xpose.msra.mxu0 0.0
        %3266 = vmatpush.xpose.msra.mxu0 0.0
        %3267 = vmatpush.xpose.msra.mxu0 0.0
        %3268 = vmatpush.xpose.msra.mxu0 0.0
        %3269 = vmatpush.xpose.msra.mxu0 0.0
        %v3270 = vand.u32 %v3129, 4294901760
        %3271 = vmatpush.xpose.msra.mxu0 %v3270
        %v3272 = vand.u32 %v3126, 4294901760
        %3273 = vmatmul.f32.gmra.mxu0 %v3272
        %v3274 = vpop.f32.mrf.mxu0
        %v3275 = vadd.f32 %v3253, %v3274
        %3276 = vdwg.mxu0
        %v3277 = vmul.f32 %v3275, 0.35355338
        %v3278 = vadd.f32 %v3277, %v921
        %v3279 = vsel %vm1161, %v3278, -inf
        %3280 = vmax.xlane.f32.xlu0 %v3279
        %v3281 = vpop.xlane.xlu0 %3280
        %v3282 = vsub.f32 %v3278, %v3281
        %v3283 = vmul.f32 %v3282, 1.442695
        %v3284 = vpow.pop %v3283
        %v3285 = vsel %vm1161, %v3284, 0.0
        %3286 = vadd.xlane.f32.xlu0 %v3285
        %v3287 = vpop.xlane.xlu0 %3286
        %v3288 = vrcp.pop %v3287
        %v3289 = vmul.f32 %v3287, %v3288
        %v3290 = vsub.f32 1.0, %v3289
        %v3291 = vmul.f32 %v3288, %v3290
        %v3292 = vadd.f32 %v3288, %v3291
        %vm3293 = vweird.f32 %v3287
        %vm3294 = vweird.f32 %v3288
        %vm3295 = vmor %vm3293, %vm3294
        %v3296 = vsel %vm3295, %v3288, %v3292
        %v3297 = vand.u32 2147483647, %v3287
        %vm3298 = vcmp.eq.f32.partialorder %v3297, 8.507059e+37
        %v3299 = vand.u32 %v3287, 2147483648
        %v3300 = vor.u32 1.1754944e-38, %v3299
        %v3301 = vsel %vm3298, %v3300, %v3296
        %v3302 = vmul.f32 %v3284, %v3301
        %3303 = vrot.lane.b32.xlu0 %v3123, 96
        %v3304 = vpop.permute.xlu0 %3303
        %v3307 = vsel %vm1161, %v3302, 0
        %3309 = vmatpush.msra.mxu0 0.0
        %3310 = vmatpush.msra.mxu0 0.0
        %3311 = vmatpush.msra.mxu0 0.0
        %3312 = vmatpush.msra.mxu0 0.0
        %3313 = vmatpush.msra.mxu0 0.0
        %3314 = vmatpush.msra.mxu0 0.0
        %3315 = vmatpush.msra.mxu0 0.0
        %3316 = vmatpush.msra.mxu0 0.0
        %3317 = vmatpush.msra.mxu0 0.0
        %3318 = vmatpush.msra.mxu0 0.0
        %3319 = vmatpush.msra.mxu0 0.0
        %3320 = vmatpush.msra.mxu0 0.0
        %3321 = vmatpush.msra.mxu0 0.0
        %3322 = vmatpush.msra.mxu0 0.0
        %3323 = vmatpush.msra.mxu0 0.0
        %v3324 = vand.u32 %v3304, 4294901760
        %3325 = vmatpush.msra.mxu0 %v3324
        %v3326 = vand.u32 %v3307, 4294901760
        %v3327 = vsub.f32 %v3307, %v3326
        %v3328 = vand.u32 %v3327, 4294901760
        %v3329 = vsub.f32 %v3327, %v3328
        %v3330 = vand.u32 %v3329, 4294901760
        %3331 = vmatmul.f32.gmra.mxu0 %v3330
        %v3332 = vpop.f32.mrf.mxu0
        %v3333 = vadd.f32 0.0, %v3332
        %3334 = vdwg.mxu0
        %3335 = vmatpush.msra.mxu0 0.0
        %3336 = vmatpush.msra.mxu0 0.0
        %3337 = vmatpush.msra.mxu0 0.0
        %3338 = vmatpush.msra.mxu0 0.0
        %3339 = vmatpush.msra.mxu0 0.0
        %3340 = vmatpush.msra.mxu0 0.0
        %3341 = vmatpush.msra.mxu0 0.0
        %3342 = vmatpush.msra.mxu0 0.0
        %3343 = vmatpush.msra.mxu0 0.0
        %3344 = vmatpush.msra.mxu0 0.0
        %3345 = vmatpush.msra.mxu0 0.0
        %3346 = vmatpush.msra.mxu0 0.0
        %3347 = vmatpush.msra.mxu0 0.0
        %3348 = vmatpush.msra.mxu0 0.0
        %3349 = vmatpush.msra.mxu0 0.0
        %v3350 = vand.u32 %v3304, 4294901760
        %v3351 = vsub.f32 %v3304, %v3350
        %v3352 = vand.u32 %v3351, 4294901760
        %v3353 = vsub.f32 %v3351, %v3352
        %v3354 = vand.u32 %v3353, 4294901760
        %3355 = vmatpush.msra.mxu0 %v3354
        %v3356 = vand.u32 %v3307, 4294901760
        %3357 = vmatmul.f32.gmra.mxu0 %v3356
        %v3358 = vpop.f32.mrf.mxu0
        %v3359 = vadd.f32 %v3333, %v3358
        %3360 = vdwg.mxu0
        %3361 = vmatpush.msra.mxu0 0.0
        %3362 = vmatpush.msra.mxu0 0.0
        %3363 = vmatpush.msra.mxu0 0.0
        %3364 = vmatpush.msra.mxu0 0.0
        %3365 = vmatpush.msra.mxu0 0.0
        %3366 = vmatpush.msra.mxu0 0.0
        %3367 = vmatpush.msra.mxu0 0.0
        %3368 = vmatpush.msra.mxu0 0.0
        %3369 = vmatpush.msra.mxu0 0.0
        %3370 = vmatpush.msra.mxu0 0.0
        %3371 = vmatpush.msra.mxu0 0.0
        %3372 = vmatpush.msra.mxu0 0.0
        %3373 = vmatpush.msra.mxu0 0.0
        %3374 = vmatpush.msra.mxu0 0.0
        %3375 = vmatpush.msra.mxu0 0.0
        %v3376 = vand.u32 %v3304, 4294901760
        %v3377 = vsub.f32 %v3304, %v3376
        %3378 = vmatpush.msra.mxu0 %v3377
        %v3379 = vand.u32 %v3307, 4294901760
        %v3380 = vsub.f32 %v3307, %v3379
        %3381 = vmatmul.f32.gmra.mxu0 %v3380
        %v3382 = vpop.f32.mrf.mxu0
        %v3383 = vadd.f32 %v3359, %v3382
        %3384 = vdwg.mxu0
        %3385 = vmatpush.msra.mxu0 0.0
        %3386 = vmatpush.msra.mxu0 0.0
        %3387 = vmatpush.msra.mxu0 0.0
        %3388 = vmatpush.msra.mxu0 0.0
        %3389 = vmatpush.msra.mxu0 0.0
        %3390 = vmatpush.msra.mxu0 0.0
        %3391 = vmatpush.msra.mxu0 0.0
        %3392 = vmatpush.msra.mxu0 0.0
        %3393 = vmatpush.msra.mxu0 0.0
        %3394 = vmatpush.msra.mxu0 0.0
        %3395 = vmatpush.msra.mxu0 0.0
        %3396 = vmatpush.msra.mxu0 0.0
        %3397 = vmatpush.msra.mxu0 0.0
        %3398 = vmatpush.msra.mxu0 0.0
        %3399 = vmatpush.msra.mxu0 0.0
        %v3400 = vand.u32 %v3304, 4294901760
        %3401 = vmatpush.msra.mxu0 %v3400
        %v3402 = vand.u32 %v3307, 4294901760
        %v3403 = vsub.f32 %v3307, %v3402
        %v3404 = vand.u32 %v3403, 4294901760
        %3405 = vmatmul.f32.gmra.mxu0 %v3404
        %v3406 = vpop.f32.mrf.mxu0
        %v3407 = vadd.f32 %v3383, %v3406
        %3408 = vdwg.mxu0
        %3409 = vmatpush.msra.mxu0 0.0
        %3410 = vmatpush.msra.mxu0 0.0
        %3411 = vmatpush.msra.mxu0 0.0
        %3412 = vmatpush.msra.mxu0 0.0
        %3413 = vmatpush.msra.mxu0 0.0
        %3414 = vmatpush.msra.mxu0 0.0
        %3415 = vmatpush.msra.mxu0 0.0
        %3416 = vmatpush.msra.mxu0 0.0
        %3417 = vmatpush.msra.mxu0 0.0
        %3418 = vmatpush.msra.mxu0 0.0
        %3419 = vmatpush.msra.mxu0 0.0
        %3420 = vmatpush.msra.mxu0 0.0
        %3421 = vmatpush.msra.mxu0 0.0
        %3422 = vmatpush.msra.mxu0 0.0
        %3423 = vmatpush.msra.mxu0 0.0
        %v3424 = vand.u32 %v3304, 4294901760
        %v3425 = vsub.f32 %v3304, %v3424
        %v3426 = vand.u32 %v3425, 4294901760
        %3427 = vmatpush.msra.mxu0 %v3426
        %v3428 = vand.u32 %v3307, 4294901760
        %3429 = vmatmul.f32.gmra.mxu0 %v3428
        %v3430 = vpop.f32.mrf.mxu0
        %v3431 = vadd.f32 %v3407, %v3430
        %3432 = vdwg.mxu0
        %3433 = vmatpush.msra.mxu0 0.0
        %3434 = vmatpush.msra.mxu0 0.0
        %3435 = vmatpush.msra.mxu0 0.0
        %3436 = vmatpush.msra.mxu0 0.0
        %3437 = vmatpush.msra.mxu0 0.0
        %3438 = vmatpush.msra.mxu0 0.0
        %3439 = vmatpush.msra.mxu0 0.0
        %3440 = vmatpush.msra.mxu0 0.0
        %3441 = vmatpush.msra.mxu0 0.0
        %3442 = vmatpush.msra.mxu0 0.0
        %3443 = vmatpush.msra.mxu0 0.0
        %3444 = vmatpush.msra.mxu0 0.0
        %3445 = vmatpush.msra.mxu0 0.0
        %3446 = vmatpush.msra.mxu0 0.0
        %3447 = vmatpush.msra.mxu0 0.0
        %v3448 = vand.u32 %v3304, 4294901760
        %3449 = vmatpush.msra.mxu0 %v3448
        %v3450 = vand.u32 %v3307, 4294901760
        %3451 = vmatmul.f32.gmra.mxu0 %v3450
        %v3452 = vpop.f32.mrf.mxu0
        %v3453 = vadd.f32 %v3431, %v3452
        %3454 = vdwg.mxu0
        %3455 = vrot.lane.b32.xlu0 %v2927, 120
        %v3456 = vpop.permute.xlu0 %3455
        %3457 = vrot.lane.b32.xlu0 %v3123, 120
        %v3458 = vpop.permute.xlu0 %3457
        %v3459 = vsel %vm1161, %v3456, 0
        %v3461 = vsel %vm1161, %v3458, 0
        %3463 = vmatpush.xpose.msra.mxu0 0.0
        %3464 = vmatpush.xpose.msra.mxu0 0.0
        %3465 = vmatpush.xpose.msra.mxu0 0.0
        %3466 = vmatpush.xpose.msra.mxu0 0.0
        %3467 = vmatpush.xpose.msra.mxu0 0.0
        %3468 = vmatpush.xpose.msra.mxu0 0.0
        %3469 = vmatpush.xpose.msra.mxu0 0.0
        %3470 = vmatpush.xpose.msra.mxu0 0.0
        %3471 = vmatpush.xpose.msra.mxu0 0.0
        %3472 = vmatpush.xpose.msra.mxu0 0.0
        %3473 = vmatpush.xpose.msra.mxu0 0.0
        %3474 = vmatpush.xpose.msra.mxu0 0.0
        %3475 = vmatpush.xpose.msra.mxu0 0.0
        %3476 = vmatpush.xpose.msra.mxu0 0.0
        %3477 = vmatpush.xpose.msra.mxu0 0.0
        %v3478 = vand.u32 %v3461, 4294901760
        %3479 = vmatpush.xpose.msra.mxu0 %v3478
        %v3480 = vand.u32 %v3459, 4294901760
        %v3481 = vsub.f32 %v3459, %v3480
        %v3482 = vand.u32 %v3481, 4294901760
        %v3483 = vsub.f32 %v3481, %v3482
        %v3484 = vand.u32 %v3483, 4294901760
        %3485 = vmatmul.f32.gmra.mxu0 %v3484
        %v3486 = vpop.f32.mrf.mxu0
        %v3487 = vadd.f32 0.0, %v3486
        %3488 = vdwg.mxu0
        %3489 = vmatpush.xpose.msra.mxu0 0.0
        %3490 = vmatpush.xpose.msra.mxu0 0.0
        %3491 = vmatpush.xpose.msra.mxu0 0.0
        %3492 = vmatpush.xpose.msra.mxu0 0.0
        %3493 = vmatpush.xpose.msra.mxu0 0.0
        %3494 = vmatpush.xpose.msra.mxu0 0.0
        %3495 = vmatpush.xpose.msra.mxu0 0.0
        %3496 = vmatpush.xpose.msra.mxu0 0.0
        %3497 = vmatpush.xpose.msra.mxu0 0.0
        %3498 = vmatpush.xpose.msra.mxu0 0.0
        %3499 = vmatpush.xpose.msra.mxu0 0.0
        %3500 = vmatpush.xpose.msra.mxu0 0.0
        %3501 = vmatpush.xpose.msra.mxu0 0.0
        %3502 = vmatpush.xpose.msra.mxu0 0.0
        %3503 = vmatpush.xpose.msra.mxu0 0.0
        %v3504 = vand.u32 %v3461, 4294901760
        %v3505 = vsub.f32 %v3461, %v3504
        %v3506 = vand.u32 %v3505, 4294901760
        %v3507 = vsub.f32 %v3505, %v3506
        %v3508 = vand.u32 %v3507, 4294901760
        %3509 = vmatpush.xpose.msra.mxu0 %v3508
        %v3510 = vand.u32 %v3459, 4294901760
        %3511 = vmatmul.f32.gmra.mxu0 %v3510
        %v3512 = vpop.f32.mrf.mxu0
        %v3513 = vadd.f32 %v3487, %v3512
        %3514 = vdwg.mxu0
        %3515 = vmatpush.xpose.msra.mxu0 0.0
        %3516 = vmatpush.xpose.msra.mxu0 0.0
        %3517 = vmatpush.xpose.msra.mxu0 0.0
        %3518 = vmatpush.xpose.msra.mxu0 0.0
        %3519 = vmatpush.xpose.msra.mxu0 0.0
        %3520 = vmatpush.xpose.msra.mxu0 0.0
        %3521 = vmatpush.xpose.msra.mxu0 0.0
        %3522 = vmatpush.xpose.msra.mxu0 0.0
        %3523 = vmatpush.xpose.msra.mxu0 0.0
        %3524 = vmatpush.xpose.msra.mxu0 0.0
        %3525 = vmatpush.xpose.msra.mxu0 0.0
        %3526 = vmatpush.xpose.msra.mxu0 0.0
        %3527 = vmatpush.xpose.msra.mxu0 0.0
        %3528 = vmatpush.xpose.msra.mxu0 0.0
        %3529 = vmatpush.xpose.msra.mxu0 0.0
        %v3530 = vand.u32 %v3461, 4294901760
        %v3531 = vsub.f32 %v3461, %v3530
        %3532 = vmatpush.xpose.msra.mxu0 %v3531
        %v3533 = vand.u32 %v3459, 4294901760
        %v3534 = vsub.f32 %v3459, %v3533
        %3535 = vmatmul.f32.gmra.mxu0 %v3534
        %v3536 = vpop.f32.mrf.mxu0
        %v3537 = vadd.f32 %v3513, %v3536
        %3538 = vdwg.mxu0
        %3539 = vmatpush.xpose.msra.mxu0 0.0
        %3540 = vmatpush.xpose.msra.mxu0 0.0
        %3541 = vmatpush.xpose.msra.mxu0 0.0
        %3542 = vmatpush.xpose.msra.mxu0 0.0
        %3543 = vmatpush.xpose.msra.mxu0 0.0
        %3544 = vmatpush.xpose.msra.mxu0 0.0
        %3545 = vmatpush.xpose.msra.mxu0 0.0
        %3546 = vmatpush.xpose.msra.mxu0 0.0
        %3547 = vmatpush.xpose.msra.mxu0 0.0
        %3548 = vmatpush.xpose.msra.mxu0 0.0
        %3549 = vmatpush.xpose.msra.mxu0 0.0
        %3550 = vmatpush.xpose.msra.mxu0 0.0
        %3551 = vmatpush.xpose.msra.mxu0 0.0
        %3552 = vmatpush.xpose.msra.mxu0 0.0
        %3553 = vmatpush.xpose.msra.mxu0 0.0
        %v3554 = vand.u32 %v3461, 4294901760
        %3555 = vmatpush.xpose.msra.mxu0 %v3554
        %v3556 = vand.u32 %v3459, 4294901760
        %v3557 = vsub.f32 %v3459, %v3556
        %v3558 = vand.u32 %v3557, 4294901760
        %3559 = vmatmul.f32.gmra.mxu0 %v3558
        %v3560 = vpop.f32.mrf.mxu0
        %v3561 = vadd.f32 %v3537, %v3560
        %3562 = vdwg.mxu0
        %3563 = vmatpush.xpose.msra.mxu0 0.0
        %3564 = vmatpush.xpose.msra.mxu0 0.0
        %3565 = vmatpush.xpose.msra.mxu0 0.0
        %3566 = vmatpush.xpose.msra.mxu0 0.0
        %3567 = vmatpush.xpose.msra.mxu0 0.0
        %3568 = vmatpush.xpose.msra.mxu0 0.0
        %3569 = vmatpush.xpose.msra.mxu0 0.0
        %3570 = vmatpush.xpose.msra.mxu0 0.0
        %3571 = vmatpush.xpose.msra.mxu0 0.0
        %3572 = vmatpush.xpose.msra.mxu0 0.0
        %3573 = vmatpush.xpose.msra.mxu0 0.0
        %3574 = vmatpush.xpose.msra.mxu0 0.0
        %3575 = vmatpush.xpose.msra.mxu0 0.0
        %3576 = vmatpush.xpose.msra.mxu0 0.0
        %3577 = vmatpush.xpose.msra.mxu0 0.0
        %v3578 = vand.u32 %v3461, 4294901760
        %v3579 = vsub.f32 %v3461, %v3578
        %v3580 = vand.u32 %v3579, 4294901760
        %3581 = vmatpush.xpose.msra.mxu0 %v3580
        %v3582 = vand.u32 %v3459, 4294901760
        %3583 = vmatmul.f32.gmra.mxu0 %v3582
        %v3584 = vpop.f32.mrf.mxu0
        %v3585 = vadd.f32 %v3561, %v3584
        %3586 = vdwg.mxu0
        %3587 = vmatpush.xpose.msra.mxu0 0.0
        %3588 = vmatpush.xpose.msra.mxu0 0.0
        %3589 = vmatpush.xpose.msra.mxu0 0.0
        %3590 = vmatpush.xpose.msra.mxu0 0.0
        %3591 = vmatpush.xpose.msra.mxu0 0.0
        %3592 = vmatpush.xpose.msra.mxu0 0.0
        %3593 = vmatpush.xpose.msra.mxu0 0.0
        %3594 = vmatpush.xpose.msra.mxu0 0.0
        %3595 = vmatpush.xpose.msra.mxu0 0.0
        %3596 = vmatpush.xpose.msra.mxu0 0.0
        %3597 = vmatpush.xpose.msra.mxu0 0.0
        %3598 = vmatpush.xpose.msra.mxu0 0.0
        %3599 = vmatpush.xpose.msra.mxu0 0.0
        %3600 = vmatpush.xpose.msra.mxu0 0.0
        %3601 = vmatpush.xpose.msra.mxu0 0.0
        %v3602 = vand.u32 %v3461, 4294901760
        %3603 = vmatpush.xpose.msra.mxu0 %v3602
        %v3604 = vand.u32 %v3459, 4294901760
        %3605 = vmatmul.f32.gmra.mxu0 %v3604
        %v3606 = vpop.f32.mrf.mxu0
        %v3607 = vadd.f32 %v3585, %v3606
        %3608 = vdwg.mxu0
        %v3609 = vmul.f32 %v3607, 0.35355338
        %v3610 = vadd.f32 %v3609, %v921
        %v3611 = vsel %vm1161, %v3610, -inf
        %3612 = vmax.xlane.f32.xlu0 %v3611
        %v3613 = vpop.xlane.xlu0 %3612
        %v3614 = vsub.f32 %v3610, %v3613
        %v3615 = vmul.f32 %v3614, 1.442695
        %v3616 = vpow.pop %v3615
        %v3617 = vsel %vm1161, %v3616, 0.0
        %3618 = vadd.xlane.f32.xlu0 %v3617
        %v3619 = vpop.xlane.xlu0 %3618
        %v3620 = vrcp.pop %v3619
        %v3621 = vmul.f32 %v3619, %v3620
        %v3622 = vsub.f32 1.0, %v3621
        %v3623 = vmul.f32 %v3620, %v3622
        %v3624 = vadd.f32 %v3620, %v3623
        %vm3625 = vweird.f32 %v3619
        %vm3626 = vweird.f32 %v3620
        %vm3627 = vmor %vm3625, %vm3626
        %v3628 = vsel %vm3627, %v3620, %v3624
        %v3629 = vand.u32 2147483647, %v3619
        %vm3630 = vcmp.eq.f32.partialorder %v3629, 8.507059e+37
        %v3631 = vand.u32 %v3619, 2147483648
        %v3632 = vor.u32 1.1754944e-38, %v3631
        %v3633 = vsel %vm3630, %v3632, %v3628
        %v3634 = vmul.f32 %v3616, %v3633
        %3635 = vrot.lane.b32.xlu0 %v3123, 88
        %v3636 = vpop.permute.xlu0 %3635
        %v3639 = vsel %vm1161, %v3634, 0
        %3641 = vmatpush.msra.mxu0 0.0
        %3642 = vmatpush.msra.mxu0 0.0
        %3643 = vmatpush.msra.mxu0 0.0
        %3644 = vmatpush.msra.mxu0 0.0
        %3645 = vmatpush.msra.mxu0 0.0
        %3646 = vmatpush.msra.mxu0 0.0
        %3647 = vmatpush.msra.mxu0 0.0
        %3648 = vmatpush.msra.mxu0 0.0
        %3649 = vmatpush.msra.mxu0 0.0
        %3650 = vmatpush.msra.mxu0 0.0
        %3651 = vmatpush.msra.mxu0 0.0
        %3652 = vmatpush.msra.mxu0 0.0
        %3653 = vmatpush.msra.mxu0 0.0
        %3654 = vmatpush.msra.mxu0 0.0
        %3655 = vmatpush.msra.mxu0 0.0
        %v3656 = vand.u32 %v3636, 4294901760
        %3657 = vmatpush.msra.mxu0 %v3656
        %v3658 = vand.u32 %v3639, 4294901760
        %v3659 = vsub.f32 %v3639, %v3658
        %v3660 = vand.u32 %v3659, 4294901760
        %v3661 = vsub.f32 %v3659, %v3660
        %v3662 = vand.u32 %v3661, 4294901760
        %3663 = vmatmul.f32.gmra.mxu0 %v3662
        %v3664 = vpop.f32.mrf.mxu0
        %v3665 = vadd.f32 0.0, %v3664
        %3666 = vdwg.mxu0
        %3667 = vmatpush.msra.mxu0 0.0
        %3668 = vmatpush.msra.mxu0 0.0
        %3669 = vmatpush.msra.mxu0 0.0
        %3670 = vmatpush.msra.mxu0 0.0
        %3671 = vmatpush.msra.mxu0 0.0
        %3672 = vmatpush.msra.mxu0 0.0
        %3673 = vmatpush.msra.mxu0 0.0
        %3674 = vmatpush.msra.mxu0 0.0
        %3675 = vmatpush.msra.mxu0 0.0
        %3676 = vmatpush.msra.mxu0 0.0
        %3677 = vmatpush.msra.mxu0 0.0
        %3678 = vmatpush.msra.mxu0 0.0
        %3679 = vmatpush.msra.mxu0 0.0
        %3680 = vmatpush.msra.mxu0 0.0
        %3681 = vmatpush.msra.mxu0 0.0
        %v3682 = vand.u32 %v3636, 4294901760
        %v3683 = vsub.f32 %v3636, %v3682
        %v3684 = vand.u32 %v3683, 4294901760
        %v3685 = vsub.f32 %v3683, %v3684
        %v3686 = vand.u32 %v3685, 4294901760
        %3687 = vmatpush.msra.mxu0 %v3686
        %v3688 = vand.u32 %v3639, 4294901760
        %3689 = vmatmul.f32.gmra.mxu0 %v3688
        %v3690 = vpop.f32.mrf.mxu0
        %v3691 = vadd.f32 %v3665, %v3690
        %3692 = vdwg.mxu0
        %3693 = vmatpush.msra.mxu0 0.0
        %3694 = vmatpush.msra.mxu0 0.0
        %3695 = vmatpush.msra.mxu0 0.0
        %3696 = vmatpush.msra.mxu0 0.0
        %3697 = vmatpush.msra.mxu0 0.0
        %3698 = vmatpush.msra.mxu0 0.0
        %3699 = vmatpush.msra.mxu0 0.0
        %3700 = vmatpush.msra.mxu0 0.0
        %3701 = vmatpush.msra.mxu0 0.0
        %3702 = vmatpush.msra.mxu0 0.0
        %3703 = vmatpush.msra.mxu0 0.0
        %3704 = vmatpush.msra.mxu0 0.0
        %3705 = vmatpush.msra.mxu0 0.0
        %3706 = vmatpush.msra.mxu0 0.0
        %3707 = vmatpush.msra.mxu0 0.0
        %v3708 = vand.u32 %v3636, 4294901760
        %v3709 = vsub.f32 %v3636, %v3708
        %3710 = vmatpush.msra.mxu0 %v3709
        %v3711 = vand.u32 %v3639, 4294901760
        %v3712 = vsub.f32 %v3639, %v3711
        %3713 = vmatmul.f32.gmra.mxu0 %v3712
        %v3714 = vpop.f32.mrf.mxu0
        %v3715 = vadd.f32 %v3691, %v3714
        %3716 = vdwg.mxu0
        %3717 = vmatpush.msra.mxu0 0.0
        %3718 = vmatpush.msra.mxu0 0.0
        %3719 = vmatpush.msra.mxu0 0.0
        %3720 = vmatpush.msra.mxu0 0.0
        %3721 = vmatpush.msra.mxu0 0.0
        %3722 = vmatpush.msra.mxu0 0.0
        %3723 = vmatpush.msra.mxu0 0.0
        %3724 = vmatpush.msra.mxu0 0.0
        %3725 = vmatpush.msra.mxu0 0.0
        %3726 = vmatpush.msra.mxu0 0.0
        %3727 = vmatpush.msra.mxu0 0.0
        %3728 = vmatpush.msra.mxu0 0.0
        %3729 = vmatpush.msra.mxu0 0.0
        %3730 = vmatpush.msra.mxu0 0.0
        %3731 = vmatpush.msra.mxu0 0.0
        %v3732 = vand.u32 %v3636, 4294901760
        %3733 = vmatpush.msra.mxu0 %v3732
        %v3734 = vand.u32 %v3639, 4294901760
        %v3735 = vsub.f32 %v3639, %v3734
        %v3736 = vand.u32 %v3735, 4294901760
        %3737 = vmatmul.f32.gmra.mxu0 %v3736
        %v3738 = vpop.f32.mrf.mxu0
        %v3739 = vadd.f32 %v3715, %v3738
        %3740 = vdwg.mxu0
        %3741 = vmatpush.msra.mxu0 0.0
        %3742 = vmatpush.msra.mxu0 0.0
        %3743 = vmatpush.msra.mxu0 0.0
        %3744 = vmatpush.msra.mxu0 0.0
        %3745 = vmatpush.msra.mxu0 0.0
        %3746 = vmatpush.msra.mxu0 0.0
        %3747 = vmatpush.msra.mxu0 0.0
        %3748 = vmatpush.msra.mxu0 0.0
        %3749 = vmatpush.msra.mxu0 0.0
        %3750 = vmatpush.msra.mxu0 0.0
        %3751 = vmatpush.msra.mxu0 0.0
        %3752 = vmatpush.msra.mxu0 0.0
        %3753 = vmatpush.msra.mxu0 0.0
        %3754 = vmatpush.msra.mxu0 0.0
        %3755 = vmatpush.msra.mxu0 0.0
        %v3756 = vand.u32 %v3636, 4294901760
        %v3757 = vsub.f32 %v3636, %v3756
        %v3758 = vand.u32 %v3757, 4294901760
        %3759 = vmatpush.msra.mxu0 %v3758
        %v3760 = vand.u32 %v3639, 4294901760
        %3761 = vmatmul.f32.gmra.mxu0 %v3760
        %v3762 = vpop.f32.mrf.mxu0
        %v3763 = vadd.f32 %v3739, %v3762
        %3764 = vdwg.mxu0
        %3765 = vmatpush.msra.mxu0 0.0
        %3766 = vmatpush.msra.mxu0 0.0
        %3767 = vmatpush.msra.mxu0 0.0
        %3768 = vmatpush.msra.mxu0 0.0
        %3769 = vmatpush.msra.mxu0 0.0
        %3770 = vmatpush.msra.mxu0 0.0
        %3771 = vmatpush.msra.mxu0 0.0
        %3772 = vmatpush.msra.mxu0 0.0
        %3773 = vmatpush.msra.mxu0 0.0
        %3774 = vmatpush.msra.mxu0 0.0
        %3775 = vmatpush.msra.mxu0 0.0
        %3776 = vmatpush.msra.mxu0 0.0
        %3777 = vmatpush.msra.mxu0 0.0
        %3778 = vmatpush.msra.mxu0 0.0
        %3779 = vmatpush.msra.mxu0 0.0
        %v3780 = vand.u32 %v3636, 4294901760
        %3781 = vmatpush.msra.mxu0 %v3780
        %v3782 = vand.u32 %v3639, 4294901760
        %3783 = vmatmul.f32.gmra.mxu0 %v3782
        %v3784 = vpop.f32.mrf.mxu0
        %v3785 = vadd.f32 %v3763, %v3784
        %3786 = vdwg.mxu0
        %3787 = vrot.lane.b32.xlu0 %v2927, 112
        %v3788 = vpop.permute.xlu0 %3787
        %3789 = vrot.lane.b32.xlu0 %v3123, 112
        %v3790 = vpop.permute.xlu0 %3789
        %v3791 = vsel %vm1161, %v3788, 0
        %v3793 = vsel %vm1161, %v3790, 0
        %3795 = vmatpush.xpose.msra.mxu0 0.0
        %3796 = vmatpush.xpose.msra.mxu0 0.0
        %3797 = vmatpush.xpose.msra.mxu0 0.0
        %3798 = vmatpush.xpose.msra.mxu0 0.0
        %3799 = vmatpush.xpose.msra.mxu0 0.0
        %3800 = vmatpush.xpose.msra.mxu0 0.0
        %3801 = vmatpush.xpose.msra.mxu0 0.0
        %3802 = vmatpush.xpose.msra.mxu0 0.0
        %3803 = vmatpush.xpose.msra.mxu0 0.0
        %3804 = vmatpush.xpose.msra.mxu0 0.0
        %3805 = vmatpush.xpose.msra.mxu0 0.0
        %3806 = vmatpush.xpose.msra.mxu0 0.0
        %3807 = vmatpush.xpose.msra.mxu0 0.0
        %3808 = vmatpush.xpose.msra.mxu0 0.0
        %3809 = vmatpush.xpose.msra.mxu0 0.0
        %v3810 = vand.u32 %v3793, 4294901760
        %3811 = vmatpush.xpose.msra.mxu0 %v3810
        %v3812 = vand.u32 %v3791, 4294901760
        %v3813 = vsub.f32 %v3791, %v3812
        %v3814 = vand.u32 %v3813, 4294901760
        %v3815 = vsub.f32 %v3813, %v3814
        %v3816 = vand.u32 %v3815, 4294901760
        %3817 = vmatmul.f32.gmra.mxu0 %v3816
        %v3818 = vpop.f32.mrf.mxu0
        %v3819 = vadd.f32 0.0, %v3818
        %3820 = vdwg.mxu0
        %3821 = vmatpush.xpose.msra.mxu0 0.0
        %3822 = vmatpush.xpose.msra.mxu0 0.0
        %3823 = vmatpush.xpose.msra.mxu0 0.0
        %3824 = vmatpush.xpose.msra.mxu0 0.0
        %3825 = vmatpush.xpose.msra.mxu0 0.0
        %3826 = vmatpush.xpose.msra.mxu0 0.0
        %3827 = vmatpush.xpose.msra.mxu0 0.0
        %3828 = vmatpush.xpose.msra.mxu0 0.0
        %3829 = vmatpush.xpose.msra.mxu0 0.0
        %3830 = vmatpush.xpose.msra.mxu0 0.0
        %3831 = vmatpush.xpose.msra.mxu0 0.0
        %3832 = vmatpush.xpose.msra.mxu0 0.0
        %3833 = vmatpush.xpose.msra.mxu0 0.0
        %3834 = vmatpush.xpose.msra.mxu0 0.0
        %3835 = vmatpush.xpose.msra.mxu0 0.0
        %v3836 = vand.u32 %v3793, 4294901760
        %v3837 = vsub.f32 %v3793, %v3836
        %v3838 = vand.u32 %v3837, 4294901760
        %v3839 = vsub.f32 %v3837, %v3838
        %v3840 = vand.u32 %v3839, 4294901760
        %3841 = vmatpush.xpose.msra.mxu0 %v3840
        %v3842 = vand.u32 %v3791, 4294901760
        %3843 = vmatmul.f32.gmra.mxu0 %v3842
        %v3844 = vpop.f32.mrf.mxu0
        %v3845 = vadd.f32 %v3819, %v3844
        %3846 = vdwg.mxu0
        %3847 = vmatpush.xpose.msra.mxu0 0.0
        %3848 = vmatpush.xpose.msra.mxu0 0.0
        %3849 = vmatpush.xpose.msra.mxu0 0.0
        %3850 = vmatpush.xpose.msra.mxu0 0.0
        %3851 = vmatpush.xpose.msra.mxu0 0.0
        %3852 = vmatpush.xpose.msra.mxu0 0.0
        %3853 = vmatpush.xpose.msra.mxu0 0.0
        %3854 = vmatpush.xpose.msra.mxu0 0.0
        %3855 = vmatpush.xpose.msra.mxu0 0.0
        %3856 = vmatpush.xpose.msra.mxu0 0.0
        %3857 = vmatpush.xpose.msra.mxu0 0.0
        %3858 = vmatpush.xpose.msra.mxu0 0.0
        %3859 = vmatpush.xpose.msra.mxu0 0.0
        %3860 = vmatpush.xpose.msra.mxu0 0.0
        %3861 = vmatpush.xpose.msra.mxu0 0.0
        %v3862 = vand.u32 %v3793, 4294901760
        %v3863 = vsub.f32 %v3793, %v3862
        %3864 = vmatpush.xpose.msra.mxu0 %v3863
        %v3865 = vand.u32 %v3791, 4294901760
        %v3866 = vsub.f32 %v3791, %v3865
        %3867 = vmatmul.f32.gmra.mxu0 %v3866
        %v3868 = vpop.f32.mrf.mxu0
        %v3869 = vadd.f32 %v3845, %v3868
        %3870 = vdwg.mxu0
        %3871 = vmatpush.xpose.msra.mxu0 0.0
        %3872 = vmatpush.xpose.msra.mxu0 0.0
        %3873 = vmatpush.xpose.msra.mxu0 0.0
        %3874 = vmatpush.xpose.msra.mxu0 0.0
        %3875 = vmatpush.xpose.msra.mxu0 0.0
        %3876 = vmatpush.xpose.msra.mxu0 0.0
        %3877 = vmatpush.xpose.msra.mxu0 0.0
        %3878 = vmatpush.xpose.msra.mxu0 0.0
        %3879 = vmatpush.xpose.msra.mxu0 0.0
        %3880 = vmatpush.xpose.msra.mxu0 0.0
        %3881 = vmatpush.xpose.msra.mxu0 0.0
        %3882 = vmatpush.xpose.msra.mxu0 0.0
        %3883 = vmatpush.xpose.msra.mxu0 0.0
        %3884 = vmatpush.xpose.msra.mxu0 0.0
        %3885 = vmatpush.xpose.msra.mxu0 0.0
        %v3886 = vand.u32 %v3793, 4294901760
        %3887 = vmatpush.xpose.msra.mxu0 %v3886
        %v3888 = vand.u32 %v3791, 4294901760
        %v3889 = vsub.f32 %v3791, %v3888
        %v3890 = vand.u32 %v3889, 4294901760
        %3891 = vmatmul.f32.gmra.mxu0 %v3890
        %v3892 = vpop.f32.mrf.mxu0
        %v3893 = vadd.f32 %v3869, %v3892
        %3894 = vdwg.mxu0
        %3895 = vmatpush.xpose.msra.mxu0 0.0
        %3896 = vmatpush.xpose.msra.mxu0 0.0
        %3897 = vmatpush.xpose.msra.mxu0 0.0
        %3898 = vmatpush.xpose.msra.mxu0 0.0
        %3899 = vmatpush.xpose.msra.mxu0 0.0
        %3900 = vmatpush.xpose.msra.mxu0 0.0
        %3901 = vmatpush.xpose.msra.mxu0 0.0
        %3902 = vmatpush.xpose.msra.mxu0 0.0
        %3903 = vmatpush.xpose.msra.mxu0 0.0
        %3904 = vmatpush.xpose.msra.mxu0 0.0
        %3905 = vmatpush.xpose.msra.mxu0 0.0
        %3906 = vmatpush.xpose.msra.mxu0 0.0
        %3907 = vmatpush.xpose.msra.mxu0 0.0
        %3908 = vmatpush.xpose.msra.mxu0 0.0
        %3909 = vmatpush.xpose.msra.mxu0 0.0
        %v3910 = vand.u32 %v3793, 4294901760
        %v3911 = vsub.f32 %v3793, %v3910
        %v3912 = vand.u32 %v3911, 4294901760
        %3913 = vmatpush.xpose.msra.mxu0 %v3912
        %v3914 = vand.u32 %v3791, 4294901760
        %3915 = vmatmul.f32.gmra.mxu0 %v3914
        %v3916 = vpop.f32.mrf.mxu0
        %v3917 = vadd.f32 %v3893, %v3916
        %3918 = vdwg.mxu0
        %3919 = vmatpush.xpose.msra.mxu0 0.0
        %3920 = vmatpush.xpose.msra.mxu0 0.0
        %3921 = vmatpush.xpose.msra.mxu0 0.0
        %3922 = vmatpush.xpose.msra.mxu0 0.0
        %3923 = vmatpush.xpose.msra.mxu0 0.0
        %3924 = vmatpush.xpose.msra.mxu0 0.0
        %3925 = vmatpush.xpose.msra.mxu0 0.0
        %3926 = vmatpush.xpose.msra.mxu0 0.0
        %3927 = vmatpush.xpose.msra.mxu0 0.0
        %3928 = vmatpush.xpose.msra.mxu0 0.0
        %3929 = vmatpush.xpose.msra.mxu0 0.0
        %3930 = vmatpush.xpose.msra.mxu0 0.0
        %3931 = vmatpush.xpose.msra.mxu0 0.0
        %3932 = vmatpush.xpose.msra.mxu0 0.0
        %3933 = vmatpush.xpose.msra.mxu0 0.0
        %v3934 = vand.u32 %v3793, 4294901760
        %3935 = vmatpush.xpose.msra.mxu0 %v3934
        %v3936 = vand.u32 %v3791, 4294901760
        %3937 = vmatmul.f32.gmra.mxu0 %v3936
        %v3938 = vpop.f32.mrf.mxu0
        %v3939 = vadd.f32 %v3917, %v3938
        %3940 = vdwg.mxu0
        %v3941 = vmul.f32 %v3939, 0.35355338
        %v3942 = vadd.f32 %v3941, %v921
        %v3943 = vsel %vm1161, %v3942, -inf
        %3944 = vmax.xlane.f32.xlu0 %v3943
        %v3945 = vpop.xlane.xlu0 %3944
        %v3946 = vsub.f32 %v3942, %v3945
        %v3947 = vmul.f32 %v3946, 1.442695
        %v3948 = vpow.pop %v3947
        %v3949 = vsel %vm1161, %v3948, 0.0
        %3950 = vadd.xlane.f32.xlu0 %v3949
        %v3951 = vpop.xlane.xlu0 %3950
        %v3952 = vrcp.pop %v3951
        %v3953 = vmul.f32 %v3951, %v3952
        %v3954 = vsub.f32 1.0, %v3953
        %v3955 = vmul.f32 %v3952, %v3954
        %v3956 = vadd.f32 %v3952, %v3955
        %vm3957 = vweird.f32 %v3951
        %vm3958 = vweird.f32 %v3952
        %vm3959 = vmor %vm3957, %vm3958
        %v3960 = vsel %vm3959, %v3952, %v3956
        %v3961 = vand.u32 2147483647, %v3951
        %vm3962 = vcmp.eq.f32.partialorder %v3961, 8.507059e+37
        %v3963 = vand.u32 %v3951, 2147483648
        %v3964 = vor.u32 1.1754944e-38, %v3963
        %v3965 = vsel %vm3962, %v3964, %v3960
        %v3966 = vmul.f32 %v3948, %v3965
        %3967 = vrot.lane.b32.xlu0 %v3123, 80
        %v3968 = vpop.permute.xlu0 %3967
        %v3971 = vsel %vm1161, %v3966, 0
        %3973 = vmatpush.msra.mxu0 0.0
        %3974 = vmatpush.msra.mxu0 0.0
        %3975 = vmatpush.msra.mxu0 0.0
        %3976 = vmatpush.msra.mxu0 0.0
        %3977 = vmatpush.msra.mxu0 0.0
        %3978 = vmatpush.msra.mxu0 0.0
        %3979 = vmatpush.msra.mxu0 0.0
        %3980 = vmatpush.msra.mxu0 0.0
        %3981 = vmatpush.msra.mxu0 0.0
        %3982 = vmatpush.msra.mxu0 0.0
        %3983 = vmatpush.msra.mxu0 0.0
        %3984 = vmatpush.msra.mxu0 0.0
        %3985 = vmatpush.msra.mxu0 0.0
        %3986 = vmatpush.msra.mxu0 0.0
        %3987 = vmatpush.msra.mxu0 0.0
        %v3988 = vand.u32 %v3968, 4294901760
        %3989 = vmatpush.msra.mxu0 %v3988
        %v3990 = vand.u32 %v3971, 4294901760
        %v3991 = vsub.f32 %v3971, %v3990
        %v3992 = vand.u32 %v3991, 4294901760
        %v3993 = vsub.f32 %v3991, %v3992
        %v3994 = vand.u32 %v3993, 4294901760
        %3995 = vmatmul.f32.gmra.mxu0 %v3994
        %v3996 = vpop.f32.mrf.mxu0
        %v3997 = vadd.f32 0.0, %v3996
        %3998 = vdwg.mxu0
        %3999 = vmatpush.msra.mxu0 0.0
        %4000 = vmatpush.msra.mxu0 0.0
        %4001 = vmatpush.msra.mxu0 0.0
        %4002 = vmatpush.msra.mxu0 0.0
        %4003 = vmatpush.msra.mxu0 0.0
        %4004 = vmatpush.msra.mxu0 0.0
        %4005 = vmatpush.msra.mxu0 0.0
        %4006 = vmatpush.msra.mxu0 0.0
        %4007 = vmatpush.msra.mxu0 0.0
        %4008 = vmatpush.msra.mxu0 0.0
        %4009 = vmatpush.msra.mxu0 0.0
        %4010 = vmatpush.msra.mxu0 0.0
        %4011 = vmatpush.msra.mxu0 0.0
        %4012 = vmatpush.msra.mxu0 0.0
        %4013 = vmatpush.msra.mxu0 0.0
        %v4014 = vand.u32 %v3968, 4294901760
        %v4015 = vsub.f32 %v3968, %v4014
        %v4016 = vand.u32 %v4015, 4294901760
        %v4017 = vsub.f32 %v4015, %v4016
        %v4018 = vand.u32 %v4017, 4294901760
        %4019 = vmatpush.msra.mxu0 %v4018
        %v4020 = vand.u32 %v3971, 4294901760
        %4021 = vmatmul.f32.gmra.mxu0 %v4020
        %v4022 = vpop.f32.mrf.mxu0
        %v4023 = vadd.f32 %v3997, %v4022
        %4024 = vdwg.mxu0
        %4025 = vmatpush.msra.mxu0 0.0
        %4026 = vmatpush.msra.mxu0 0.0
        %4027 = vmatpush.msra.mxu0 0.0
        %4028 = vmatpush.msra.mxu0 0.0
        %4029 = vmatpush.msra.mxu0 0.0
        %4030 = vmatpush.msra.mxu0 0.0
        %4031 = vmatpush.msra.mxu0 0.0
        %4032 = vmatpush.msra.mxu0 0.0
        %4033 = vmatpush.msra.mxu0 0.0
        %4034 = vmatpush.msra.mxu0 0.0
        %4035 = vmatpush.msra.mxu0 0.0
        %4036 = vmatpush.msra.mxu0 0.0
        %4037 = vmatpush.msra.mxu0 0.0
        %4038 = vmatpush.msra.mxu0 0.0
        %4039 = vmatpush.msra.mxu0 0.0
        %v4040 = vand.u32 %v3968, 4294901760
        %v4041 = vsub.f32 %v3968, %v4040
        %4042 = vmatpush.msra.mxu0 %v4041
        %v4043 = vand.u32 %v3971, 4294901760
        %v4044 = vsub.f32 %v3971, %v4043
        %4045 = vmatmul.f32.gmra.mxu0 %v4044
        %v4046 = vpop.f32.mrf.mxu0
        %v4047 = vadd.f32 %v4023, %v4046
        %4048 = vdwg.mxu0
        %4049 = vmatpush.msra.mxu0 0.0
        %4050 = vmatpush.msra.mxu0 0.0
        %4051 = vmatpush.msra.mxu0 0.0
        %4052 = vmatpush.msra.mxu0 0.0
        %4053 = vmatpush.msra.mxu0 0.0
        %4054 = vmatpush.msra.mxu0 0.0
        %4055 = vmatpush.msra.mxu0 0.0
        %4056 = vmatpush.msra.mxu0 0.0
        %4057 = vmatpush.msra.mxu0 0.0
        %4058 = vmatpush.msra.mxu0 0.0
        %4059 = vmatpush.msra.mxu0 0.0
        %4060 = vmatpush.msra.mxu0 0.0
        %4061 = vmatpush.msra.mxu0 0.0
        %4062 = vmatpush.msra.mxu0 0.0
        %4063 = vmatpush.msra.mxu0 0.0
        %v4064 = vand.u32 %v3968, 4294901760
        %4065 = vmatpush.msra.mxu0 %v4064
        %v4066 = vand.u32 %v3971, 4294901760
        %v4067 = vsub.f32 %v3971, %v4066
        %v4068 = vand.u32 %v4067, 4294901760
        %4069 = vmatmul.f32.gmra.mxu0 %v4068
        %v4070 = vpop.f32.mrf.mxu0
        %v4071 = vadd.f32 %v4047, %v4070
        %4072 = vdwg.mxu0
        %4073 = vmatpush.msra.mxu0 0.0
        %4074 = vmatpush.msra.mxu0 0.0
        %4075 = vmatpush.msra.mxu0 0.0
        %4076 = vmatpush.msra.mxu0 0.0
        %4077 = vmatpush.msra.mxu0 0.0
        %4078 = vmatpush.msra.mxu0 0.0
        %4079 = vmatpush.msra.mxu0 0.0
        %4080 = vmatpush.msra.mxu0 0.0
        %4081 = vmatpush.msra.mxu0 0.0
        %4082 = vmatpush.msra.mxu0 0.0
        %4083 = vmatpush.msra.mxu0 0.0
        %4084 = vmatpush.msra.mxu0 0.0
        %4085 = vmatpush.msra.mxu0 0.0
        %4086 = vmatpush.msra.mxu0 0.0
        %4087 = vmatpush.msra.mxu0 0.0
        %v4088 = vand.u32 %v3968, 4294901760
        %v4089 = vsub.f32 %v3968, %v4088
        %v4090 = vand.u32 %v4089, 4294901760
        %4091 = vmatpush.msra.mxu0 %v4090
        %v4092 = vand.u32 %v3971, 4294901760
        %4093 = vmatmul.f32.gmra.mxu0 %v4092
        %v4094 = vpop.f32.mrf.mxu0
        %v4095 = vadd.f32 %v4071, %v4094
        %4096 = vdwg.mxu0
        %4097 = vmatpush.msra.mxu0 0.0
        %4098 = vmatpush.msra.mxu0 0.0
        %4099 = vmatpush.msra.mxu0 0.0
        %4100 = vmatpush.msra.mxu0 0.0
        %4101 = vmatpush.msra.mxu0 0.0
        %4102 = vmatpush.msra.mxu0 0.0
        %4103 = vmatpush.msra.mxu0 0.0
        %4104 = vmatpush.msra.mxu0 0.0
        %4105 = vmatpush.msra.mxu0 0.0
        %4106 = vmatpush.msra.mxu0 0.0
        %4107 = vmatpush.msra.mxu0 0.0
        %4108 = vmatpush.msra.mxu0 0.0
        %4109 = vmatpush.msra.mxu0 0.0
        %4110 = vmatpush.msra.mxu0 0.0
        %4111 = vmatpush.msra.mxu0 0.0
        %v4112 = vand.u32 %v3968, 4294901760
        %4113 = vmatpush.msra.mxu0 %v4112
        %v4114 = vand.u32 %v3971, 4294901760
        %4115 = vmatmul.f32.gmra.mxu0 %v4114
        %v4116 = vpop.f32.mrf.mxu0
        %v4117 = vadd.f32 %v4095, %v4116
        %4118 = vdwg.mxu0
        %4119 = vrot.lane.b32.xlu0 %v2927, 104
        %v4120 = vpop.permute.xlu0 %4119
        %4121 = vrot.lane.b32.xlu0 %v3123, 104
        %v4122 = vpop.permute.xlu0 %4121
        %v4123 = vsel %vm1161, %v4120, 0
        %v4125 = vsel %vm1161, %v4122, 0
        %4127 = vmatpush.xpose.msra.mxu0 0.0
        %4128 = vmatpush.xpose.msra.mxu0 0.0
        %4129 = vmatpush.xpose.msra.mxu0 0.0
        %4130 = vmatpush.xpose.msra.mxu0 0.0
        %4131 = vmatpush.xpose.msra.mxu0 0.0
        %4132 = vmatpush.xpose.msra.mxu0 0.0
        %4133 = vmatpush.xpose.msra.mxu0 0.0
        %4134 = vmatpush.xpose.msra.mxu0 0.0
        %4135 = vmatpush.xpose.msra.mxu0 0.0
        %4136 = vmatpush.xpose.msra.mxu0 0.0
        %4137 = vmatpush.xpose.msra.mxu0 0.0
        %4138 = vmatpush.xpose.msra.mxu0 0.0
        %4139 = vmatpush.xpose.msra.mxu0 0.0
        %4140 = vmatpush.xpose.msra.mxu0 0.0
        %4141 = vmatpush.xpose.msra.mxu0 0.0
        %v4142 = vand.u32 %v4125, 4294901760
        %4143 = vmatpush.xpose.msra.mxu0 %v4142
        %v4144 = vand.u32 %v4123, 4294901760
        %v4145 = vsub.f32 %v4123, %v4144
        %v4146 = vand.u32 %v4145, 4294901760
        %v4147 = vsub.f32 %v4145, %v4146
        %v4148 = vand.u32 %v4147, 4294901760
        %4149 = vmatmul.f32.gmra.mxu0 %v4148
        %v4150 = vpop.f32.mrf.mxu0
        %v4151 = vadd.f32 0.0, %v4150
        %4152 = vdwg.mxu0
        %4153 = vmatpush.xpose.msra.mxu0 0.0
        %4154 = vmatpush.xpose.msra.mxu0 0.0
        %4155 = vmatpush.xpose.msra.mxu0 0.0
        %4156 = vmatpush.xpose.msra.mxu0 0.0
        %4157 = vmatpush.xpose.msra.mxu0 0.0
        %4158 = vmatpush.xpose.msra.mxu0 0.0
        %4159 = vmatpush.xpose.msra.mxu0 0.0
        %4160 = vmatpush.xpose.msra.mxu0 0.0
        %4161 = vmatpush.xpose.msra.mxu0 0.0
        %4162 = vmatpush.xpose.msra.mxu0 0.0
        %4163 = vmatpush.xpose.msra.mxu0 0.0
        %4164 = vmatpush.xpose.msra.mxu0 0.0
        %4165 = vmatpush.xpose.msra.mxu0 0.0
        %4166 = vmatpush.xpose.msra.mxu0 0.0
        %4167 = vmatpush.xpose.msra.mxu0 0.0
        %v4168 = vand.u32 %v4125, 4294901760
        %v4169 = vsub.f32 %v4125, %v4168
        %v4170 = vand.u32 %v4169, 4294901760
        %v4171 = vsub.f32 %v4169, %v4170
        %v4172 = vand.u32 %v4171, 4294901760
        %4173 = vmatpush.xpose.msra.mxu0 %v4172
        %v4174 = vand.u32 %v4123, 4294901760
        %4175 = vmatmul.f32.gmra.mxu0 %v4174
        %v4176 = vpop.f32.mrf.mxu0
        %v4177 = vadd.f32 %v4151, %v4176
        %4178 = vdwg.mxu0
        %4179 = vmatpush.xpose.msra.mxu0 0.0
        %4180 = vmatpush.xpose.msra.mxu0 0.0
        %4181 = vmatpush.xpose.msra.mxu0 0.0
        %4182 = vmatpush.xpose.msra.mxu0 0.0
        %4183 = vmatpush.xpose.msra.mxu0 0.0
        %4184 = vmatpush.xpose.msra.mxu0 0.0
        %4185 = vmatpush.xpose.msra.mxu0 0.0
        %4186 = vmatpush.xpose.msra.mxu0 0.0
        %4187 = vmatpush.xpose.msra.mxu0 0.0
        %4188 = vmatpush.xpose.msra.mxu0 0.0
        %4189 = vmatpush.xpose.msra.mxu0 0.0
        %4190 = vmatpush.xpose.msra.mxu0 0.0
        %4191 = vmatpush.xpose.msra.mxu0 0.0
        %4192 = vmatpush.xpose.msra.mxu0 0.0
        %4193 = vmatpush.xpose.msra.mxu0 0.0
        %v4194 = vand.u32 %v4125, 4294901760
        %v4195 = vsub.f32 %v4125, %v4194
        %4196 = vmatpush.xpose.msra.mxu0 %v4195
        %v4197 = vand.u32 %v4123, 4294901760
        %v4198 = vsub.f32 %v4123, %v4197
        %4199 = vmatmul.f32.gmra.mxu0 %v4198
        %v4200 = vpop.f32.mrf.mxu0
        %v4201 = vadd.f32 %v4177, %v4200
        %4202 = vdwg.mxu0
        %4203 = vmatpush.xpose.msra.mxu0 0.0
        %4204 = vmatpush.xpose.msra.mxu0 0.0
        %4205 = vmatpush.xpose.msra.mxu0 0.0
        %4206 = vmatpush.xpose.msra.mxu0 0.0
        %4207 = vmatpush.xpose.msra.mxu0 0.0
        %4208 = vmatpush.xpose.msra.mxu0 0.0
        %4209 = vmatpush.xpose.msra.mxu0 0.0
        %4210 = vmatpush.xpose.msra.mxu0 0.0
        %4211 = vmatpush.xpose.msra.mxu0 0.0
        %4212 = vmatpush.xpose.msra.mxu0 0.0
        %4213 = vmatpush.xpose.msra.mxu0 0.0
        %4214 = vmatpush.xpose.msra.mxu0 0.0
        %4215 = vmatpush.xpose.msra.mxu0 0.0
        %4216 = vmatpush.xpose.msra.mxu0 0.0
        %4217 = vmatpush.xpose.msra.mxu0 0.0
        %v4218 = vand.u32 %v4125, 4294901760
        %4219 = vmatpush.xpose.msra.mxu0 %v4218
        %v4220 = vand.u32 %v4123, 4294901760
        %v4221 = vsub.f32 %v4123, %v4220
        %v4222 = vand.u32 %v4221, 4294901760
        %4223 = vmatmul.f32.gmra.mxu0 %v4222
        %v4224 = vpop.f32.mrf.mxu0
        %v4225 = vadd.f32 %v4201, %v4224
        %4226 = vdwg.mxu0
        %4227 = vmatpush.xpose.msra.mxu0 0.0
        %4228 = vmatpush.xpose.msra.mxu0 0.0
        %4229 = vmatpush.xpose.msra.mxu0 0.0
        %4230 = vmatpush.xpose.msra.mxu0 0.0
        %4231 = vmatpush.xpose.msra.mxu0 0.0
        %4232 = vmatpush.xpose.msra.mxu0 0.0
        %4233 = vmatpush.xpose.msra.mxu0 0.0
        %4234 = vmatpush.xpose.msra.mxu0 0.0
        %4235 = vmatpush.xpose.msra.mxu0 0.0
        %4236 = vmatpush.xpose.msra.mxu0 0.0
        %4237 = vmatpush.xpose.msra.mxu0 0.0
        %4238 = vmatpush.xpose.msra.mxu0 0.0
        %4239 = vmatpush.xpose.msra.mxu0 0.0
        %4240 = vmatpush.xpose.msra.mxu0 0.0
        %4241 = vmatpush.xpose.msra.mxu0 0.0
        %v4242 = vand.u32 %v4125, 4294901760
        %v4243 = vsub.f32 %v4125, %v4242
        %v4244 = vand.u32 %v4243, 4294901760
        %4245 = vmatpush.xpose.msra.mxu0 %v4244
        %v4246 = vand.u32 %v4123, 4294901760
        %4247 = vmatmul.f32.gmra.mxu0 %v4246
        %v4248 = vpop.f32.mrf.mxu0
        %v4249 = vadd.f32 %v4225, %v4248
        %4250 = vdwg.mxu0
        %4251 = vmatpush.xpose.msra.mxu0 0.0
        %4252 = vmatpush.xpose.msra.mxu0 0.0
        %4253 = vmatpush.xpose.msra.mxu0 0.0
        %4254 = vmatpush.xpose.msra.mxu0 0.0
        %4255 = vmatpush.xpose.msra.mxu0 0.0
        %4256 = vmatpush.xpose.msra.mxu0 0.0
        %4257 = vmatpush.xpose.msra.mxu0 0.0
        %4258 = vmatpush.xpose.msra.mxu0 0.0
        %4259 = vmatpush.xpose.msra.mxu0 0.0
        %4260 = vmatpush.xpose.msra.mxu0 0.0
        %4261 = vmatpush.xpose.msra.mxu0 0.0
        %4262 = vmatpush.xpose.msra.mxu0 0.0
        %4263 = vmatpush.xpose.msra.mxu0 0.0
        %4264 = vmatpush.xpose.msra.mxu0 0.0
        %4265 = vmatpush.xpose.msra.mxu0 0.0
        %v4266 = vand.u32 %v4125, 4294901760
        %4267 = vmatpush.xpose.msra.mxu0 %v4266
        %v4268 = vand.u32 %v4123, 4294901760
        %4269 = vmatmul.f32.gmra.mxu0 %v4268
        %v4270 = vpop.f32.mrf.mxu0
        %v4271 = vadd.f32 %v4249, %v4270
        %4272 = vdwg.mxu0
        %v4273 = vmul.f32 %v4271, 0.35355338
        %v4274 = vadd.f32 %v4273, %v921
        %v4275 = vsel %vm1161, %v4274, -inf
        %4276 = vmax.xlane.f32.xlu0 %v4275
        %v4277 = vpop.xlane.xlu0 %4276
        %v4278 = vsub.f32 %v4274, %v4277
        %v4279 = vmul.f32 %v4278, 1.442695
        %v4280 = vpow.pop %v4279
        %v4281 = vsel %vm1161, %v4280, 0.0
        %4282 = vadd.xlane.f32.xlu0 %v4281
        %v4283 = vpop.xlane.xlu0 %4282
        %v4284 = vrcp.pop %v4283
        %v4285 = vmul.f32 %v4283, %v4284
        %v4286 = vsub.f32 1.0, %v4285
        %v4287 = vmul.f32 %v4284, %v4286
        %v4288 = vadd.f32 %v4284, %v4287
        %vm4289 = vweird.f32 %v4283
        %vm4290 = vweird.f32 %v4284
        %vm4291 = vmor %vm4289, %vm4290
        %v4292 = vsel %vm4291, %v4284, %v4288
        %v4293 = vand.u32 2147483647, %v4283
        %vm4294 = vcmp.eq.f32.partialorder %v4293, 8.507059e+37
        %v4295 = vand.u32 %v4283, 2147483648
        %v4296 = vor.u32 1.1754944e-38, %v4295
        %v4297 = vsel %vm4294, %v4296, %v4292
        %v4298 = vmul.f32 %v4280, %v4297
        %4299 = vrot.lane.b32.xlu0 %v3123, 72
        %v4300 = vpop.permute.xlu0 %4299
        %v4303 = vsel %vm1161, %v4298, 0
        %4305 = vmatpush.msra.mxu0 0.0
        %4306 = vmatpush.msra.mxu0 0.0
        %4307 = vmatpush.msra.mxu0 0.0
        %4308 = vmatpush.msra.mxu0 0.0
        %4309 = vmatpush.msra.mxu0 0.0
        %4310 = vmatpush.msra.mxu0 0.0
        %4311 = vmatpush.msra.mxu0 0.0
        %4312 = vmatpush.msra.mxu0 0.0
        %4313 = vmatpush.msra.mxu0 0.0
        %4314 = vmatpush.msra.mxu0 0.0
        %4315 = vmatpush.msra.mxu0 0.0
        %4316 = vmatpush.msra.mxu0 0.0
        %4317 = vmatpush.msra.mxu0 0.0
        %4318 = vmatpush.msra.mxu0 0.0
        %4319 = vmatpush.msra.mxu0 0.0
        %v4320 = vand.u32 %v4300, 4294901760
        %4321 = vmatpush.msra.mxu0 %v4320
        %v4322 = vand.u32 %v4303, 4294901760
        %v4323 = vsub.f32 %v4303, %v4322
        %v4324 = vand.u32 %v4323, 4294901760
        %v4325 = vsub.f32 %v4323, %v4324
        %v4326 = vand.u32 %v4325, 4294901760
        %4327 = vmatmul.f32.gmra.mxu0 %v4326
        %v4328 = vpop.f32.mrf.mxu0
        %v4329 = vadd.f32 0.0, %v4328
        %4330 = vdwg.mxu0
        %4331 = vmatpush.msra.mxu0 0.0
        %4332 = vmatpush.msra.mxu0 0.0
        %4333 = vmatpush.msra.mxu0 0.0
        %4334 = vmatpush.msra.mxu0 0.0
        %4335 = vmatpush.msra.mxu0 0.0
        %4336 = vmatpush.msra.mxu0 0.0
        %4337 = vmatpush.msra.mxu0 0.0
        %4338 = vmatpush.msra.mxu0 0.0
        %4339 = vmatpush.msra.mxu0 0.0
        %4340 = vmatpush.msra.mxu0 0.0
        %4341 = vmatpush.msra.mxu0 0.0
        %4342 = vmatpush.msra.mxu0 0.0
        %4343 = vmatpush.msra.mxu0 0.0
        %4344 = vmatpush.msra.mxu0 0.0
        %4345 = vmatpush.msra.mxu0 0.0
        %v4346 = vand.u32 %v4300, 4294901760
        %v4347 = vsub.f32 %v4300, %v4346
        %v4348 = vand.u32 %v4347, 4294901760
        %v4349 = vsub.f32 %v4347, %v4348
        %v4350 = vand.u32 %v4349, 4294901760
        %4351 = vmatpush.msra.mxu0 %v4350
        %v4352 = vand.u32 %v4303, 4294901760
        %4353 = vmatmul.f32.gmra.mxu0 %v4352
        %v4354 = vpop.f32.mrf.mxu0
        %v4355 = vadd.f32 %v4329, %v4354
        %4356 = vdwg.mxu0
        %4357 = vmatpush.msra.mxu0 0.0
        %4358 = vmatpush.msra.mxu0 0.0
        %4359 = vmatpush.msra.mxu0 0.0
        %4360 = vmatpush.msra.mxu0 0.0
        %4361 = vmatpush.msra.mxu0 0.0
        %4362 = vmatpush.msra.mxu0 0.0
        %4363 = vmatpush.msra.mxu0 0.0
        %4364 = vmatpush.msra.mxu0 0.0
        %4365 = vmatpush.msra.mxu0 0.0
        %4366 = vmatpush.msra.mxu0 0.0
        %4367 = vmatpush.msra.mxu0 0.0
        %4368 = vmatpush.msra.mxu0 0.0
        %4369 = vmatpush.msra.mxu0 0.0
        %4370 = vmatpush.msra.mxu0 0.0
        %4371 = vmatpush.msra.mxu0 0.0
        %v4372 = vand.u32 %v4300, 4294901760
        %v4373 = vsub.f32 %v4300, %v4372
        %4374 = vmatpush.msra.mxu0 %v4373
        %v4375 = vand.u32 %v4303, 4294901760
        %v4376 = vsub.f32 %v4303, %v4375
        %4377 = vmatmul.f32.gmra.mxu0 %v4376
        %v4378 = vpop.f32.mrf.mxu0
        %v4379 = vadd.f32 %v4355, %v4378
        %4380 = vdwg.mxu0
        %4381 = vmatpush.msra.mxu0 0.0
        %4382 = vmatpush.msra.mxu0 0.0
        %4383 = vmatpush.msra.mxu0 0.0
        %4384 = vmatpush.msra.mxu0 0.0
        %4385 = vmatpush.msra.mxu0 0.0
        %4386 = vmatpush.msra.mxu0 0.0
        %4387 = vmatpush.msra.mxu0 0.0
        %4388 = vmatpush.msra.mxu0 0.0
        %4389 = vmatpush.msra.mxu0 0.0
        %4390 = vmatpush.msra.mxu0 0.0
        %4391 = vmatpush.msra.mxu0 0.0
        %4392 = vmatpush.msra.mxu0 0.0
        %4393 = vmatpush.msra.mxu0 0.0
        %4394 = vmatpush.msra.mxu0 0.0
        %4395 = vmatpush.msra.mxu0 0.0
        %v4396 = vand.u32 %v4300, 4294901760
        %4397 = vmatpush.msra.mxu0 %v4396
        %v4398 = vand.u32 %v4303, 4294901760
        %v4399 = vsub.f32 %v4303, %v4398
        %v4400 = vand.u32 %v4399, 4294901760
        %4401 = vmatmul.f32.gmra.mxu0 %v4400
        %v4402 = vpop.f32.mrf.mxu0
        %v4403 = vadd.f32 %v4379, %v4402
        %4404 = vdwg.mxu0
        %4405 = vmatpush.msra.mxu0 0.0
        %4406 = vmatpush.msra.mxu0 0.0
        %4407 = vmatpush.msra.mxu0 0.0
        %4408 = vmatpush.msra.mxu0 0.0
        %4409 = vmatpush.msra.mxu0 0.0
        %4410 = vmatpush.msra.mxu0 0.0
        %4411 = vmatpush.msra.mxu0 0.0
        %4412 = vmatpush.msra.mxu0 0.0
        %4413 = vmatpush.msra.mxu0 0.0
        %4414 = vmatpush.msra.mxu0 0.0
        %4415 = vmatpush.msra.mxu0 0.0
        %4416 = vmatpush.msra.mxu0 0.0
        %4417 = vmatpush.msra.mxu0 0.0
        %4418 = vmatpush.msra.mxu0 0.0
        %4419 = vmatpush.msra.mxu0 0.0
        %v4420 = vand.u32 %v4300, 4294901760
        %v4421 = vsub.f32 %v4300, %v4420
        %v4422 = vand.u32 %v4421, 4294901760
        %4423 = vmatpush.msra.mxu0 %v4422
        %v4424 = vand.u32 %v4303, 4294901760
        %4425 = vmatmul.f32.gmra.mxu0 %v4424
        %v4426 = vpop.f32.mrf.mxu0
        %v4427 = vadd.f32 %v4403, %v4426
        %4428 = vdwg.mxu0
        %4429 = vmatpush.msra.mxu0 0.0
        %4430 = vmatpush.msra.mxu0 0.0
        %4431 = vmatpush.msra.mxu0 0.0
        %4432 = vmatpush.msra.mxu0 0.0
        %4433 = vmatpush.msra.mxu0 0.0
        %4434 = vmatpush.msra.mxu0 0.0
        %4435 = vmatpush.msra.mxu0 0.0
        %4436 = vmatpush.msra.mxu0 0.0
        %4437 = vmatpush.msra.mxu0 0.0
        %4438 = vmatpush.msra.mxu0 0.0
        %4439 = vmatpush.msra.mxu0 0.0
        %4440 = vmatpush.msra.mxu0 0.0
        %4441 = vmatpush.msra.mxu0 0.0
        %4442 = vmatpush.msra.mxu0 0.0
        %4443 = vmatpush.msra.mxu0 0.0
        %v4444 = vand.u32 %v4300, 4294901760
        %4445 = vmatpush.msra.mxu0 %v4444
        %v4446 = vand.u32 %v4303, 4294901760
        %4447 = vmatmul.f32.gmra.mxu0 %v4446
        %v4448 = vpop.f32.mrf.mxu0
        %v4449 = vadd.f32 %v4427, %v4448
        %4450 = vdwg.mxu0
        %4452 = vrot.lane.b32.xlu0 %v3785, 8
        %v4453 = vpop.permute.xlu0 %4452
        %4456 = vrot.lane.b32.xlu0 %v4117, 16
        %v4457 = vpop.permute.xlu0 %4456
        %4460 = vrot.lane.b32.xlu0 %v4449, 24
        %v4461 = vpop.permute.xlu0 %4460
        %v4463 = vsel %vm1161, %v3453, %v4453
        %v4464 = vsel %vm2499, %v4463, %v4457
        %v4465 = vsel %vm2501, %v4464, %v4461
        %v4466 = vld [vmem:[#allocation11] sm:$0xff]
        %v4467 = vld [vmem:[#allocation11 + $0x8] sm:$0xff]
        %v4468 = vld [vmem:[#allocation11 + $0x10] sm:$0xff]
        %v4469 = vld [vmem:[#allocation11 + $0x18] sm:$0xff]
        %v4471 = vsel %vm924, %v4465, 0
        %4473 = vmatpush.msra.mxu0 0.0
        %4474 = vmatpush.msra.mxu0 0.0
        %4475 = vmatpush.msra.mxu0 0.0
        %4476 = vmatpush.msra.mxu0 0.0
        %4477 = vmatpush.msra.mxu0 0.0
        %4478 = vmatpush.msra.mxu0 0.0
        %4479 = vmatpush.msra.mxu0 0.0
        %4480 = vmatpush.msra.mxu0 0.0
        %4481 = vmatpush.msra.mxu0 0.0
        %4482 = vmatpush.msra.mxu0 0.0
        %4483 = vmatpush.msra.mxu0 0.0
        %4484 = vmatpush.msra.mxu0 0.0
        %v4485 = vand.u32 %v4469, 4294901760
        %4486 = vmatpush.msra.mxu0 %v4485
        %v4487 = vand.u32 %v4468, 4294901760
        %4488 = vmatpush.msra.mxu0 %v4487
        %v4489 = vand.u32 %v4467, 4294901760
        %4490 = vmatpush.msra.mxu0 %v4489
        %v4491 = vand.u32 %v4466, 4294901760
        %4492 = vmatpush.msra.mxu0 %v4491
        %v4493 = vand.u32 %v4471, 4294901760
        %v4494 = vsub.f32 %v4471, %v4493
        %v4495 = vand.u32 %v4494, 4294901760
        %v4496 = vsub.f32 %v4494, %v4495
        %v4497 = vand.u32 %v4496, 4294901760
        %4498 = vmatmul.f32.gmra.mxu0 %v4497
        %v4499 = vpop.f32.mrf.mxu0
        %v4500 = vadd.f32 0.0, %v4499
        %4501 = vdwg.mxu0
        %4502 = vmatpush.msra.mxu0 0.0
        %4503 = vmatpush.msra.mxu0 0.0
        %4504 = vmatpush.msra.mxu0 0.0
        %4505 = vmatpush.msra.mxu0 0.0
        %4506 = vmatpush.msra.mxu0 0.0
        %4507 = vmatpush.msra.mxu0 0.0
        %4508 = vmatpush.msra.mxu0 0.0
        %4509 = vmatpush.msra.mxu0 0.0
        %4510 = vmatpush.msra.mxu0 0.0
        %4511 = vmatpush.msra.mxu0 0.0
        %4512 = vmatpush.msra.mxu0 0.0
        %4513 = vmatpush.msra.mxu0 0.0
        %v4514 = vand.u32 %v4469, 4294901760
        %v4515 = vsub.f32 %v4469, %v4514
        %v4516 = vand.u32 %v4515, 4294901760
        %v4517 = vsub.f32 %v4515, %v4516
        %v4518 = vand.u32 %v4517, 4294901760
        %4519 = vmatpush.msra.mxu0 %v4518
        %v4520 = vand.u32 %v4468, 4294901760
        %v4521 = vsub.f32 %v4468, %v4520
        %v4522 = vand.u32 %v4521, 4294901760
        %v4523 = vsub.f32 %v4521, %v4522
        %v4524 = vand.u32 %v4523, 4294901760
        %4525 = vmatpush.msra.mxu0 %v4524
        %v4526 = vand.u32 %v4467, 4294901760
        %v4527 = vsub.f32 %v4467, %v4526
        %v4528 = vand.u32 %v4527, 4294901760
        %v4529 = vsub.f32 %v4527, %v4528
        %v4530 = vand.u32 %v4529, 4294901760
        %4531 = vmatpush.msra.mxu0 %v4530
        %v4532 = vand.u32 %v4466, 4294901760
        %v4533 = vsub.f32 %v4466, %v4532
        %v4534 = vand.u32 %v4533, 4294901760
        %v4535 = vsub.f32 %v4533, %v4534
        %v4536 = vand.u32 %v4535, 4294901760
        %4537 = vmatpush.msra.mxu0 %v4536
        %v4538 = vand.u32 %v4471, 4294901760
        %4539 = vmatmul.f32.gmra.mxu0 %v4538
        %v4540 = vpop.f32.mrf.mxu0
        %v4541 = vadd.f32 %v4500, %v4540
        %4542 = vdwg.mxu0
        %4543 = vmatpush.msra.mxu0 0.0
        %4544 = vmatpush.msra.mxu0 0.0
        %4545 = vmatpush.msra.mxu0 0.0
        %4546 = vmatpush.msra.mxu0 0.0
        %4547 = vmatpush.msra.mxu0 0.0
        %4548 = vmatpush.msra.mxu0 0.0
        %4549 = vmatpush.msra.mxu0 0.0
        %4550 = vmatpush.msra.mxu0 0.0
        %4551 = vmatpush.msra.mxu0 0.0
        %4552 = vmatpush.msra.mxu0 0.0
        %4553 = vmatpush.msra.mxu0 0.0
        %4554 = vmatpush.msra.mxu0 0.0
        %v4555 = vand.u32 %v4469, 4294901760
        %v4556 = vsub.f32 %v4469, %v4555
        %4557 = vmatpush.msra.mxu0 %v4556
        %v4558 = vand.u32 %v4468, 4294901760
        %v4559 = vsub.f32 %v4468, %v4558
        %4560 = vmatpush.msra.mxu0 %v4559
        %v4561 = vand.u32 %v4467, 4294901760
        %v4562 = vsub.f32 %v4467, %v4561
        %4563 = vmatpush.msra.mxu0 %v4562
        %v4564 = vand.u32 %v4466, 4294901760
        %v4565 = vsub.f32 %v4466, %v4564
        %4566 = vmatpush.msra.mxu0 %v4565
        %v4567 = vand.u32 %v4471, 4294901760
        %v4568 = vsub.f32 %v4471, %v4567
        %4569 = vmatmul.f32.gmra.mxu0 %v4568
        %v4570 = vpop.f32.mrf.mxu0
        %v4571 = vadd.f32 %v4541, %v4570
        %4572 = vdwg.mxu0
        %4573 = vmatpush.msra.mxu0 0.0
        %4574 = vmatpush.msra.mxu0 0.0
        %4575 = vmatpush.msra.mxu0 0.0
        %4576 = vmatpush.msra.mxu0 0.0
        %4577 = vmatpush.msra.mxu0 0.0
        %4578 = vmatpush.msra.mxu0 0.0
        %4579 = vmatpush.msra.mxu0 0.0
        %4580 = vmatpush.msra.mxu0 0.0
        %4581 = vmatpush.msra.mxu0 0.0
        %4582 = vmatpush.msra.mxu0 0.0
        %4583 = vmatpush.msra.mxu0 0.0
        %4584 = vmatpush.msra.mxu0 0.0
        %v4585 = vand.u32 %v4469, 4294901760
        %4586 = vmatpush.msra.mxu0 %v4585
        %v4587 = vand.u32 %v4468, 4294901760
        %4588 = vmatpush.msra.mxu0 %v4587
        %v4589 = vand.u32 %v4467, 4294901760
        %4590 = vmatpush.msra.mxu0 %v4589
        %v4591 = vand.u32 %v4466, 4294901760
        %4592 = vmatpush.msra.mxu0 %v4591
        %v4593 = vand.u32 %v4471, 4294901760
        %v4594 = vsub.f32 %v4471, %v4593
        %v4595 = vand.u32 %v4594, 4294901760
        %4596 = vmatmul.f32.gmra.mxu0 %v4595
        %v4597 = vpop.f32.mrf.mxu0
        %v4598 = vadd.f32 %v4571, %v4597
        %4599 = vdwg.mxu0
        %4600 = vmatpush.msra.mxu0 0.0
        %4601 = vmatpush.msra.mxu0 0.0
        %4602 = vmatpush.msra.mxu0 0.0
        %4603 = vmatpush.msra.mxu0 0.0
        %4604 = vmatpush.msra.mxu0 0.0
        %4605 = vmatpush.msra.mxu0 0.0
        %4606 = vmatpush.msra.mxu0 0.0
        %4607 = vmatpush.msra.mxu0 0.0
        %4608 = vmatpush.msra.mxu0 0.0
        %4609 = vmatpush.msra.mxu0 0.0
        %4610 = vmatpush.msra.mxu0 0.0
        %4611 = vmatpush.msra.mxu0 0.0
        %v4612 = vand.u32 %v4469, 4294901760
        %v4613 = vsub.f32 %v4469, %v4612
        %v4614 = vand.u32 %v4613, 4294901760
        %4615 = vmatpush.msra.mxu0 %v4614
        %v4616 = vand.u32 %v4468, 4294901760
        %v4617 = vsub.f32 %v4468, %v4616
        %v4618 = vand.u32 %v4617, 4294901760
        %4619 = vmatpush.msra.mxu0 %v4618
        %v4620 = vand.u32 %v4467, 4294901760
        %v4621 = vsub.f32 %v4467, %v4620
        %v4622 = vand.u32 %v4621, 4294901760
        %4623 = vmatpush.msra.mxu0 %v4622
        %v4624 = vand.u32 %v4466, 4294901760
        %v4625 = vsub.f32 %v4466, %v4624
        %v4626 = vand.u32 %v4625, 4294901760
        %4627 = vmatpush.msra.mxu0 %v4626
        %v4628 = vand.u32 %v4471, 4294901760
        %4629 = vmatmul.f32.gmra.mxu0 %v4628
        %v4630 = vpop.f32.mrf.mxu0
        %v4631 = vadd.f32 %v4598, %v4630
        %4632 = vdwg.mxu0
        %4633 = vmatpush.msra.mxu0 0.0
        %4634 = vmatpush.msra.mxu0 0.0
        %4635 = vmatpush.msra.mxu0 0.0
        %4636 = vmatpush.msra.mxu0 0.0
        %4637 = vmatpush.msra.mxu0 0.0
        %4638 = vmatpush.msra.mxu0 0.0
        %4639 = vmatpush.msra.mxu0 0.0
        %4640 = vmatpush.msra.mxu0 0.0
        %4641 = vmatpush.msra.mxu0 0.0
        %4642 = vmatpush.msra.mxu0 0.0
        %4643 = vmatpush.msra.mxu0 0.0
        %4644 = vmatpush.msra.mxu0 0.0
        %v4645 = vand.u32 %v4469, 4294901760
        %4646 = vmatpush.msra.mxu0 %v4645
        %v4647 = vand.u32 %v4468, 4294901760
        %4648 = vmatpush.msra.mxu0 %v4647
        %v4649 = vand.u32 %v4467, 4294901760
        %4650 = vmatpush.msra.mxu0 %v4649
        %v4651 = vand.u32 %v4466, 4294901760
        %4652 = vmatpush.msra.mxu0 %v4651
        %v4653 = vand.u32 %v4471, 4294901760
        %4654 = vmatmul.f32.gmra.mxu0 %v4653
        %v4655 = vpop.f32.mrf.mxu0
        %v4656 = vadd.f32 %v4631, %v4655
        %4657 = vdwg.mxu0
        %v4658 = vadd.f32 %v2700, %v4656
        %v4659 = vld [vmem:[%s15] sm:$0x1]
        %v4661 = vperm.slane %v4659, 0
        %v4663 = vadd.f32 %v4658, %v4661
        %v4664 = vld [vmem:[%s22] sm:$0x1]
        %v4665 = vld [vmem:[%s23] sm:$0x1]
        %v4666 = vsel %vm924, %v4663, 0.0
        %4667 = vadd.xlane.f32.xlu0 %v4666
        %v4668 = vpop.xlane.xlu0 %4667
        %v4669 = vmul.f32 %v4668, %v934
        %v4670 = vsub.f32 %v4663, %v4669
        %v4671 = vmul.f32 %v4670, %v4670
        %v4672 = vsel %vm924, %v4671, 0.0
        %4673 = vadd.xlane.f32.xlu0 %v4672
        %v4674 = vpop.xlane.xlu0 %4673
        %v4675 = vmul.f32 %v4674, %v934
        %v4677 = vperm.slane %v4664, 0
        %v4679 = vmul.f32 %v4677, %v4670
        %v4680 = vadd.f32 %v4675, 1e-06
        %v4681 = vrsqrt.pop %v4680
        %v4682 = vmul.f32 %v4681, %v4680
        %v4683 = vmul.f32 %v4682, %v4681
        %v4684 = vmul.f32 0.5, %v4683
        %v4685 = vsub.f32 1.5, %v4684
        %v4686 = vmul.f32 %v4681, %v4685
        %vm4687 = vweird.f32 %v4680
        %vm4688 = vweird.f32 %v4681
        %vm4689 = vmor %vm4687, %vm4688
        %v4690 = vsel %vm4689, %v4681, %v4686
        %v4691 = vmul.f32 %v4679, %v4690
        %v4693 = vperm.slane %v4665, 0
        %v4695 = vadd.f32 %v4691, %v4693
        %v4696 = vld [vmem:[#allocation13] sm:$0xff]
        %v4697 = vld [vmem:[#allocation13 + $0x8] sm:$0xff]
        %v4698 = vld [vmem:[#allocation13 + $0x10] sm:$0xff]
        %v4699 = vld [vmem:[#allocation13 + $0x18] sm:$0xff]
        %v4700 = vld [vmem:[%s19] sm:$0x1]
        %v4702 = vperm.slane %v4700, 0
        %v4705 = vsel %vm924, %v4695, 0
        %4707 = vmatpush.msra.mxu0 0.0
        %4708 = vmatpush.msra.mxu0 0.0
        %4709 = vmatpush.msra.mxu0 0.0
        %4710 = vmatpush.msra.mxu0 0.0
        %4711 = vmatpush.msra.mxu0 0.0
        %4712 = vmatpush.msra.mxu0 0.0
        %4713 = vmatpush.msra.mxu0 0.0
        %4714 = vmatpush.msra.mxu0 0.0
        %4715 = vmatpush.msra.mxu0 0.0
        %4716 = vmatpush.msra.mxu0 0.0
        %4717 = vmatpush.msra.mxu0 0.0
        %4718 = vmatpush.msra.mxu0 0.0
        %v4719 = vand.u32 %v4699, 4294901760
        %4720 = vmatpush.msra.mxu0 %v4719
        %v4721 = vand.u32 %v4698, 4294901760
        %4722 = vmatpush.msra.mxu0 %v4721
        %v4723 = vand.u32 %v4697, 4294901760
        %4724 = vmatpush.msra.mxu0 %v4723
        %v4725 = vand.u32 %v4696, 4294901760
        %4726 = vmatpush.msra.mxu0 %v4725
        %v4727 = vand.u32 %v4705, 4294901760
        %v4728 = vsub.f32 %v4705, %v4727
        %v4729 = vand.u32 %v4728, 4294901760
        %v4730 = vsub.f32 %v4728, %v4729
        %v4731 = vand.u32 %v4730, 4294901760
        %4732 = vmatmul.f32.gmra.mxu0 %v4731
        %v4733 = vpop.f32.mrf.mxu0
        %v4734 = vadd.f32 %v4702, %v4733
        %4735 = vdwg.mxu0
        %4736 = vmatpush.msra.mxu0 0.0
        %4737 = vmatpush.msra.mxu0 0.0
        %4738 = vmatpush.msra.mxu0 0.0
        %4739 = vmatpush.msra.mxu0 0.0
        %4740 = vmatpush.msra.mxu0 0.0
        %4741 = vmatpush.msra.mxu0 0.0
        %4742 = vmatpush.msra.mxu0 0.0
        %4743 = vmatpush.msra.mxu0 0.0
        %4744 = vmatpush.msra.mxu0 0.0
        %4745 = vmatpush.msra.mxu0 0.0
        %4746 = vmatpush.msra.mxu0 0.0
        %4747 = vmatpush.msra.mxu0 0.0
        %v4748 = vand.u32 %v4699, 4294901760
        %v4749 = vsub.f32 %v4699, %v4748
        %v4750 = vand.u32 %v4749, 4294901760
        %v4751 = vsub.f32 %v4749, %v4750
        %v4752 = vand.u32 %v4751, 4294901760
        %4753 = vmatpush.msra.mxu0 %v4752
        %v4754 = vand.u32 %v4698, 4294901760
        %v4755 = vsub.f32 %v4698, %v4754
        %v4756 = vand.u32 %v4755, 4294901760
        %v4757 = vsub.f32 %v4755, %v4756
        %v4758 = vand.u32 %v4757, 4294901760
        %4759 = vmatpush.msra.mxu0 %v4758
        %v4760 = vand.u32 %v4697, 4294901760
        %v4761 = vsub.f32 %v4697, %v4760
        %v4762 = vand.u32 %v4761, 4294901760
        %v4763 = vsub.f32 %v4761, %v4762
        %v4764 = vand.u32 %v4763, 4294901760
        %4765 = vmatpush.msra.mxu0 %v4764
        %v4766 = vand.u32 %v4696, 4294901760
        %v4767 = vsub.f32 %v4696, %v4766
        %v4768 = vand.u32 %v4767, 4294901760
        %v4769 = vsub.f32 %v4767, %v4768
        %v4770 = vand.u32 %v4769, 4294901760
        %4771 = vmatpush.msra.mxu0 %v4770
        %v4772 = vand.u32 %v4705, 4294901760
        %4773 = vmatmul.f32.gmra.mxu0 %v4772
        %v4774 = vpop.f32.mrf.mxu0
        %v4775 = vadd.f32 %v4734, %v4774
        %4776 = vdwg.mxu0
        %4777 = vmatpush.msra.mxu0 0.0
        %4778 = vmatpush.msra.mxu0 0.0
        %4779 = vmatpush.msra.mxu0 0.0
        %4780 = vmatpush.msra.mxu0 0.0
        %4781 = vmatpush.msra.mxu0 0.0
        %4782 = vmatpush.msra.mxu0 0.0
        %4783 = vmatpush.msra.mxu0 0.0
        %4784 = vmatpush.msra.mxu0 0.0
        %4785 = vmatpush.msra.mxu0 0.0
        %4786 = vmatpush.msra.mxu0 0.0
        %4787 = vmatpush.msra.mxu0 0.0
        %4788 = vmatpush.msra.mxu0 0.0
        %v4789 = vand.u32 %v4699, 4294901760
        %v4790 = vsub.f32 %v4699, %v4789
        %4791 = vmatpush.msra.mxu0 %v4790
        %v4792 = vand.u32 %v4698, 4294901760
        %v4793 = vsub.f32 %v4698, %v4792
        %4794 = vmatpush.msra.mxu0 %v4793
        %v4795 = vand.u32 %v4697, 4294901760
        %v4796 = vsub.f32 %v4697, %v4795
        %4797 = vmatpush.msra.mxu0 %v4796
        %v4798 = vand.u32 %v4696, 4294901760
        %v4799 = vsub.f32 %v4696, %v4798
        %4800 = vmatpush.msra.mxu0 %v4799
        %v4801 = vand.u32 %v4705, 4294901760
        %v4802 = vsub.f32 %v4705, %v4801
        %4803 = vmatmul.f32.gmra.mxu0 %v4802
        %v4804 = vpop.f32.mrf.mxu0
        %v4805 = vadd.f32 %v4775, %v4804
        %4806 = vdwg.mxu0
        %4807 = vmatpush.msra.mxu0 0.0
        %4808 = vmatpush.msra.mxu0 0.0
        %4809 = vmatpush.msra.mxu0 0.0
        %4810 = vmatpush.msra.mxu0 0.0
        %4811 = vmatpush.msra.mxu0 0.0
        %4812 = vmatpush.msra.mxu0 0.0
        %4813 = vmatpush.msra.mxu0 0.0
        %4814 = vmatpush.msra.mxu0 0.0
        %4815 = vmatpush.msra.mxu0 0.0
        %4816 = vmatpush.msra.mxu0 0.0
        %4817 = vmatpush.msra.mxu0 0.0
        %4818 = vmatpush.msra.mxu0 0.0
        %v4819 = vand.u32 %v4699, 4294901760
        %4820 = vmatpush.msra.mxu0 %v4819
        %v4821 = vand.u32 %v4698, 4294901760
        %4822 = vmatpush.msra.mxu0 %v4821
        %v4823 = vand.u32 %v4697, 4294901760
        %4824 = vmatpush.msra.mxu0 %v4823
        %v4825 = vand.u32 %v4696, 4294901760
        %4826 = vmatpush.msra.mxu0 %v4825
        %v4827 = vand.u32 %v4705, 4294901760
        %v4828 = vsub.f32 %v4705, %v4827
        %v4829 = vand.u32 %v4828, 4294901760
        %4830 = vmatmul.f32.gmra.mxu0 %v4829
        %v4831 = vpop.f32.mrf.mxu0
        %v4832 = vadd.f32 %v4805, %v4831
        %4833 = vdwg.mxu0
        %4834 = vmatpush.msra.mxu0 0.0
        %4835 = vmatpush.msra.mxu0 0.0
        %4836 = vmatpush.msra.mxu0 0.0
        %4837 = vmatpush.msra.mxu0 0.0
        %4838 = vmatpush.msra.mxu0 0.0
        %4839 = vmatpush.msra.mxu0 0.0
        %4840 = vmatpush.msra.mxu0 0.0
        %4841 = vmatpush.msra.mxu0 0.0
        %4842 = vmatpush.msra.mxu0 0.0
        %4843 = vmatpush.msra.mxu0 0.0
        %4844 = vmatpush.msra.mxu0 0.0
        %4845 = vmatpush.msra.mxu0 0.0
        %v4846 = vand.u32 %v4699, 4294901760
        %v4847 = vsub.f32 %v4699, %v4846
        %v4848 = vand.u32 %v4847, 4294901760
        %4849 = vmatpush.msra.mxu0 %v4848
        %v4850 = vand.u32 %v4698, 4294901760
        %v4851 = vsub.f32 %v4698, %v4850
        %v4852 = vand.u32 %v4851, 4294901760
        %4853 = vmatpush.msra.mxu0 %v4852
        %v4854 = vand.u32 %v4697, 4294901760
        %v4855 = vsub.f32 %v4697, %v4854
        %v4856 = vand.u32 %v4855, 4294901760
        %4857 = vmatpush.msra.mxu0 %v4856
        %v4858 = vand.u32 %v4696, 4294901760
        %v4859 = vsub.f32 %v4696, %v4858
        %v4860 = vand.u32 %v4859, 4294901760
        %4861 = vmatpush.msra.mxu0 %v4860
        %v4862 = vand.u32 %v4705, 4294901760
        %4863 = vmatmul.f32.gmra.mxu0 %v4862
        %v4864 = vpop.f32.mrf.mxu0
        %v4865 = vadd.f32 %v4832, %v4864
        %4866 = vdwg.mxu0
        %4867 = vmatpush.msra.mxu0 0.0
        %4868 = vmatpush.msra.mxu0 0.0
        %4869 = vmatpush.msra.mxu0 0.0
        %4870 = vmatpush.msra.mxu0 0.0
        %4871 = vmatpush.msra.mxu0 0.0
        %4872 = vmatpush.msra.mxu0 0.0
        %4873 = vmatpush.msra.mxu0 0.0
        %4874 = vmatpush.msra.mxu0 0.0
        %4875 = vmatpush.msra.mxu0 0.0
        %4876 = vmatpush.msra.mxu0 0.0
        %4877 = vmatpush.msra.mxu0 0.0
        %4878 = vmatpush.msra.mxu0 0.0
        %v4879 = vand.u32 %v4699, 4294901760
        %4880 = vmatpush.msra.mxu0 %v4879
        %v4881 = vand.u32 %v4698, 4294901760
        %4882 = vmatpush.msra.mxu0 %v4881
        %v4883 = vand.u32 %v4697, 4294901760
        %4884 = vmatpush.msra.mxu0 %v4883
        %v4885 = vand.u32 %v4696, 4294901760
        %4886 = vmatpush.msra.mxu0 %v4885
        %v4887 = vand.u32 %v4705, 4294901760
        %4888 = vmatmul.f32.gmra.mxu0 %v4887
        %v4889 = vpop.f32.mrf.mxu0
        %v4890 = vadd.f32 %v4865, %v4889
        %4891 = vdwg.mxu0
        %v4892 = vmax.f32 %v4890, 0.0
        %v4893 = vld [vmem:[%s20] sm:$0xff]
        %v4894 = vld [vmem:[%s20 + $0x8] sm:$0xff]
        %v4895 = vld [vmem:[%s20 + $0x10] sm:$0xff]
        %v4896 = vld [vmem:[%s20 + $0x18] sm:$0xff]
        %v4897 = vld [vmem:[%s20 + $0x20] sm:$0xff]
        %v4898 = vld [vmem:[%s20 + $0x28] sm:$0xff]
        %v4899 = vld [vmem:[%s20 + $0x30] sm:$0xff]
        %v4900 = vld [vmem:[%s20 + $0x38] sm:$0xff]
        %vm4901 = vcmask 523264
        %v4903 = vsel %vm4901, %v4892, 0
        %4905 = vmatpush.msra.mxu0 0.0
        %4906 = vmatpush.msra.mxu0 0.0
        %4907 = vmatpush.msra.mxu0 0.0
        %4908 = vmatpush.msra.mxu0 0.0
        %4909 = vmatpush.msra.mxu0 0.0
        %4910 = vmatpush.msra.mxu0 0.0
        %4911 = vmatpush.msra.mxu0 0.0
        %4912 = vmatpush.msra.mxu0 0.0
        %v4913 = vand.u32 %v4900, 4294901760
        %4914 = vmatpush.msra.mxu0 %v4913
        %v4915 = vand.u32 %v4899, 4294901760
        %4916 = vmatpush.msra.mxu0 %v4915
        %v4917 = vand.u32 %v4898, 4294901760
        %4918 = vmatpush.msra.mxu0 %v4917
        %v4919 = vand.u32 %v4897, 4294901760
        %4920 = vmatpush.msra.mxu0 %v4919
        %v4921 = vand.u32 %v4896, 4294901760
        %4922 = vmatpush.msra.mxu0 %v4921
        %v4923 = vand.u32 %v4895, 4294901760
        %4924 = vmatpush.msra.mxu0 %v4923
        %v4925 = vand.u32 %v4894, 4294901760
        %4926 = vmatpush.msra.mxu0 %v4925
        %v4927 = vand.u32 %v4893, 4294901760
        %4928 = vmatpush.msra.mxu0 %v4927
        %v4929 = vand.u32 %v4903, 4294901760
        %v4930 = vsub.f32 %v4903, %v4929
        %v4931 = vand.u32 %v4930, 4294901760
        %v4932 = vsub.f32 %v4930, %v4931
        %v4933 = vand.u32 %v4932, 4294901760
        %4934 = vmatmul.f32.gmra.mxu0 %v4933
        %v4935 = vpop.f32.mrf.mxu0
        %v4936 = vadd.f32 0.0, %v4935
        %4937 = vdwg.mxu0
        %4938 = vmatpush.msra.mxu0 0.0
        %4939 = vmatpush.msra.mxu0 0.0
        %4940 = vmatpush.msra.mxu0 0.0
        %4941 = vmatpush.msra.mxu0 0.0
        %4942 = vmatpush.msra.mxu0 0.0
        %4943 = vmatpush.msra.mxu0 0.0
        %4944 = vmatpush.msra.mxu0 0.0
        %4945 = vmatpush.msra.mxu0 0.0
        %v4946 = vand.u32 %v4900, 4294901760
        %v4947 = vsub.f32 %v4900, %v4946
        %v4948 = vand.u32 %v4947, 4294901760
        %v4949 = vsub.f32 %v4947, %v4948
        %v4950 = vand.u32 %v4949, 4294901760
        %4951 = vmatpush.msra.mxu0 %v4950
        %v4952 = vand.u32 %v4899, 4294901760
        %v4953 = vsub.f32 %v4899, %v4952
        %v4954 = vand.u32 %v4953, 4294901760
        %v4955 = vsub.f32 %v4953, %v4954
        %v4956 = vand.u32 %v4955, 4294901760
        %4957 = vmatpush.msra.mxu0 %v4956
        %v4958 = vand.u32 %v4898, 4294901760
        %v4959 = vsub.f32 %v4898, %v4958
        %v4960 = vand.u32 %v4959, 4294901760
        %v4961 = vsub.f32 %v4959, %v4960
        %v4962 = vand.u32 %v4961, 4294901760
        %4963 = vmatpush.msra.mxu0 %v4962
        %v4964 = vand.u32 %v4897, 4294901760
        %v4965 = vsub.f32 %v4897, %v4964
        %v4966 = vand.u32 %v4965, 4294901760
        %v4967 = vsub.f32 %v4965, %v4966
        %v4968 = vand.u32 %v4967, 4294901760
        %4969 = vmatpush.msra.mxu0 %v4968
        %v4970 = vand.u32 %v4896, 4294901760
        %v4971 = vsub.f32 %v4896, %v4970
        %v4972 = vand.u32 %v4971, 4294901760
        %v4973 = vsub.f32 %v4971, %v4972
        %v4974 = vand.u32 %v4973, 4294901760
        %4975 = vmatpush.msra.mxu0 %v4974
        %v4976 = vand.u32 %v4895, 4294901760
        %v4977 = vsub.f32 %v4895, %v4976
        %v4978 = vand.u32 %v4977, 4294901760
        %v4979 = vsub.f32 %v4977, %v4978
        %v4980 = vand.u32 %v4979, 4294901760
        %4981 = vmatpush.msra.mxu0 %v4980
        %v4982 = vand.u32 %v4894, 4294901760
        %v4983 = vsub.f32 %v4894, %v4982
        %v4984 = vand.u32 %v4983, 4294901760
        %v4985 = vsub.f32 %v4983, %v4984
        %v4986 = vand.u32 %v4985, 4294901760
        %4987 = vmatpush.msra.mxu0 %v4986
        %v4988 = vand.u32 %v4893, 4294901760
        %v4989 = vsub.f32 %v4893, %v4988
        %v4990 = vand.u32 %v4989, 4294901760
        %v4991 = vsub.f32 %v4989, %v4990
        %v4992 = vand.u32 %v4991, 4294901760
        %4993 = vmatpush.msra.mxu0 %v4992
        %v4994 = vand.u32 %v4903, 4294901760
        %4995 = vmatmul.f32.gmra.mxu0 %v4994
        %v4996 = vpop.f32.mrf.mxu0
        %v4997 = vadd.f32 %v4936, %v4996
        %4998 = vdwg.mxu0
        %4999 = vmatpush.msra.mxu0 0.0
        %5000 = vmatpush.msra.mxu0 0.0
        %5001 = vmatpush.msra.mxu0 0.0
        %5002 = vmatpush.msra.mxu0 0.0
        %5003 = vmatpush.msra.mxu0 0.0
        %5004 = vmatpush.msra.mxu0 0.0
        %5005 = vmatpush.msra.mxu0 0.0
        %5006 = vmatpush.msra.mxu0 0.0
        %v5007 = vand.u32 %v4900, 4294901760
        %v5008 = vsub.f32 %v4900, %v5007
        %5009 = vmatpush.msra.mxu0 %v5008
        %v5010 = vand.u32 %v4899, 4294901760
        %v5011 = vsub.f32 %v4899, %v5010
        %5012 = vmatpush.msra.mxu0 %v5011
        %v5013 = vand.u32 %v4898, 4294901760
        %v5014 = vsub.f32 %v4898, %v5013
        %5015 = vmatpush.msra.mxu0 %v5014
        %v5016 = vand.u32 %v4897, 4294901760
        %v5017 = vsub.f32 %v4897, %v5016
        %5018 = vmatpush.msra.mxu0 %v5017
        %v5019 = vand.u32 %v4896, 4294901760
        %v5020 = vsub.f32 %v4896, %v5019
        %5021 = vmatpush.msra.mxu0 %v5020
        %v5022 = vand.u32 %v4895, 4294901760
        %v5023 = vsub.f32 %v4895, %v5022
        %5024 = vmatpush.msra.mxu0 %v5023
        %v5025 = vand.u32 %v4894, 4294901760
        %v5026 = vsub.f32 %v4894, %v5025
        %5027 = vmatpush.msra.mxu0 %v5026
        %v5028 = vand.u32 %v4893, 4294901760
        %v5029 = vsub.f32 %v4893, %v5028
        %5030 = vmatpush.msra.mxu0 %v5029
        %v5031 = vand.u32 %v4903, 4294901760
        %v5032 = vsub.f32 %v4903, %v5031
        %5033 = vmatmul.f32.gmra.mxu0 %v5032
        %v5034 = vpop.f32.mrf.mxu0
        %v5035 = vadd.f32 %v4997, %v5034
        %5036 = vdwg.mxu0
        %5037 = vmatpush.msra.mxu0 0.0
        %5038 = vmatpush.msra.mxu0 0.0
        %5039 = vmatpush.msra.mxu0 0.0
        %5040 = vmatpush.msra.mxu0 0.0
        %5041 = vmatpush.msra.mxu0 0.0
        %5042 = vmatpush.msra.mxu0 0.0
        %5043 = vmatpush.msra.mxu0 0.0
        %5044 = vmatpush.msra.mxu0 0.0
        %v5045 = vand.u32 %v4900, 4294901760
        %5046 = vmatpush.msra.mxu0 %v5045
        %v5047 = vand.u32 %v4899, 4294901760
        %5048 = vmatpush.msra.mxu0 %v5047
        %v5049 = vand.u32 %v4898, 4294901760
        %5050 = vmatpush.msra.mxu0 %v5049
        %v5051 = vand.u32 %v4897, 4294901760
        %5052 = vmatpush.msra.mxu0 %v5051
        %v5053 = vand.u32 %v4896, 4294901760
        %5054 = vmatpush.msra.mxu0 %v5053
        %v5055 = vand.u32 %v4895, 4294901760
        %5056 = vmatpush.msra.mxu0 %v5055
        %v5057 = vand.u32 %v4894, 4294901760
        %5058 = vmatpush.msra.mxu0 %v5057
        %v5059 = vand.u32 %v4893, 4294901760
        %5060 = vmatpush.msra.mxu0 %v5059
        %v5061 = vand.u32 %v4903, 4294901760
        %v5062 = vsub.f32 %v4903, %v5061
        %v5063 = vand.u32 %v5062, 4294901760
        %5064 = vmatmul.f32.gmra.mxu0 %v5063
        %v5065 = vpop.f32.mrf.mxu0
        %v5066 = vadd.f32 %v5035, %v5065
        %5067 = vdwg.mxu0
        %5068 = vmatpush.msra.mxu0 0.0
        %5069 = vmatpush.msra.mxu0 0.0
        %5070 = vmatpush.msra.mxu0 0.0
        %5071 = vmatpush.msra.mxu0 0.0
        %5072 = vmatpush.msra.mxu0 0.0
        %5073 = vmatpush.msra.mxu0 0.0
        %5074 = vmatpush.msra.mxu0 0.0
        %5075 = vmatpush.msra.mxu0 0.0
        %v5076 = vand.u32 %v4900, 4294901760
        %v5077 = vsub.f32 %v4900, %v5076
        %v5078 = vand.u32 %v5077, 4294901760
        %5079 = vmatpush.msra.mxu0 %v5078
        %v5080 = vand.u32 %v4899, 4294901760
        %v5081 = vsub.f32 %v4899, %v5080
        %v5082 = vand.u32 %v5081, 4294901760
        %5083 = vmatpush.msra.mxu0 %v5082
        %v5084 = vand.u32 %v4898, 4294901760
        %v5085 = vsub.f32 %v4898, %v5084
        %v5086 = vand.u32 %v5085, 4294901760
        %5087 = vmatpush.msra.mxu0 %v5086
        %v5088 = vand.u32 %v4897, 4294901760
        %v5089 = vsub.f32 %v4897, %v5088
        %v5090 = vand.u32 %v5089, 4294901760
        %5091 = vmatpush.msra.mxu0 %v5090
        %v5092 = vand.u32 %v4896, 4294901760
        %v5093 = vsub.f32 %v4896, %v5092
        %v5094 = vand.u32 %v5093, 4294901760
        %5095 = vmatpush.msra.mxu0 %v5094
        %v5096 = vand.u32 %v4895, 4294901760
        %v5097 = vsub.f32 %v4895, %v5096
        %v5098 = vand.u32 %v5097, 4294901760
        %5099 = vmatpush.msra.mxu0 %v5098
        %v5100 = vand.u32 %v4894, 4294901760
        %v5101 = vsub.f32 %v4894, %v5100
        %v5102 = vand.u32 %v5101, 4294901760
        %5103 = vmatpush.msra.mxu0 %v5102
        %v5104 = vand.u32 %v4893, 4294901760
        %v5105 = vsub.f32 %v4893, %v5104
        %v5106 = vand.u32 %v5105, 4294901760
        %5107 = vmatpush.msra.mxu0 %v5106
        %v5108 = vand.u32 %v4903, 4294901760
        %5109 = vmatmul.f32.gmra.mxu0 %v5108
        %v5110 = vpop.f32.mrf.mxu0
        %v5111 = vadd.f32 %v5066, %v5110
        %5112 = vdwg.mxu0
        %5113 = vmatpush.msra.mxu0 0.0
        %5114 = vmatpush.msra.mxu0 0.0
        %5115 = vmatpush.msra.mxu0 0.0
        %5116 = vmatpush.msra.mxu0 0.0
        %5117 = vmatpush.msra.mxu0 0.0
        %5118 = vmatpush.msra.mxu0 0.0
        %5119 = vmatpush.msra.mxu0 0.0
        %5120 = vmatpush.msra.mxu0 0.0
        %v5121 = vand.u32 %v4900, 4294901760
        %5122 = vmatpush.msra.mxu0 %v5121
        %v5123 = vand.u32 %v4899, 4294901760
        %5124 = vmatpush.msra.mxu0 %v5123
        %v5125 = vand.u32 %v4898, 4294901760
        %5126 = vmatpush.msra.mxu0 %v5125
        %v5127 = vand.u32 %v4897, 4294901760
        %5128 = vmatpush.msra.mxu0 %v5127
        %v5129 = vand.u32 %v4896, 4294901760
        %5130 = vmatpush.msra.mxu0 %v5129
        %v5131 = vand.u32 %v4895, 4294901760
        %5132 = vmatpush.msra.mxu0 %v5131
        %v5133 = vand.u32 %v4894, 4294901760
        %5134 = vmatpush.msra.mxu0 %v5133
        %v5135 = vand.u32 %v4893, 4294901760
        %5136 = vmatpush.msra.mxu0 %v5135
        %v5137 = vand.u32 %v4903, 4294901760
        %5138 = vmatmul.f32.gmra.mxu0 %v5137
        %v5139 = vpop.f32.mrf.mxu0
        %v5140 = vadd.f32 %v5111, %v5139
        %5141 = vdwg.mxu0
        %v5142 = vadd.f32 %v4663, %v5140
        %v5143 = vld [vmem:[%s21] sm:$0x1]
        %v5145 = vperm.slane %v5143, 0
        %v5147 = vadd.f32 %v5142, %v5145
        %5148 = vst.msk [vmem:[%s917] sm:$0xff] %vm924, %v5147
        %s5149 = sand.u32 %s580, 1
        %s5150 = scalar_lea.sflag [#allocation4], %s5149
        %s5151 = sand.u32 %s580, 1
        %s5152 = smul.addr %s5151, 8
        %s5153 = scalar_lea.vmem [#allocation14], %s5152
        // Predicated region
        $region145: #{tpu_custom_call.1} parent=115 // pred_check
          %p5154 = pneg %p590
        $region146: #{tpu_custom_call.1} parent=115 // pred_check_branch
          %5156 = sbr.rel (%p5154) target = $region148
        $region147: #{tpu_custom_call.1} parent=115 // pred_region
          %5158 = vsyncadd %s5150, 0
          %s5159 = smul.addr %s48, 8
          %s5160 = scalar_lea.hbm %s24, %s5159
          %s5162 = sshll.u32 %s5153, 4
          %s5163 = int_to_ptr.vmem [resolvable:$true] %s5162
          %s5164 = sshll.u32 %s5160, 4
          %s5165 = int_to_ptr.hbm [resolvable:$true] %s5164
          %5167 = dma.vmem_to_hbm [thread:$0]  %s5163, 128, %s5165, %s5150
        $region148: #{tpu_custom_call.1} parent=115 // pred_fallthru
          _
      $region116: #{tpu_custom_call.1} parent=5 // pred_fallthru
        _
      %p5168 = scmp.le.s32.totalorder 2, %s43
      // Predicated region
      $region149: #{tpu_custom_call.1} parent=5 // pred_check
        %p5169 = pneg %p5168
      $region150: #{tpu_custom_call.1} parent=5 // pred_check_branch
        %5171 = sbr.rel (%p5169) target = $region152
      $region151: #{tpu_custom_call.1} parent=5 // pred_region
        %s5172 = ssub.s32 %s43, 2
        // Predicated region
        $region153: #{tpu_custom_call.1} parent=151 // pred_check
          %p5173 = pneg %p596
        $region154: #{tpu_custom_call.1} parent=151 // pred_check_branch
          %5175 = sbr.rel (%p5173) target = $region156
        $region155: #{tpu_custom_call.1} parent=151 // pred_region
          %s5176 = sand.u32 %s581, 1
          %s5177 = scalar_lea.sflag [#allocation4], %s5176
          %s5178 = sand.u32 %s581, 1
          %s5179 = smul.addr %s5178, 8
          %s5180 = scalar_lea.vmem [#allocation14], %s5179
          %5182 = dma.done %s5177, 128
        $region156: #{tpu_custom_call.1} parent=151 // pred_fallthru
          _
      $region152: #{tpu_custom_call.1} parent=5 // pred_fallthru
        _
    $region6: #{tpu_custom_call.1} parent=1 // loop_footer
      %s47 = sadd.s32 1, %s43
    $region7: #{tpu_custom_call.1} parent=1 // loop_footer_branch
      %42 = sbr.rel target = $region3
    $region8: #{tpu_custom_call.1} parent=1 // loop_exit
      _
    %5183 = vsyncpa [#allocation3], 1
    %s5184 = scalar_lea.sflag [#allocation3], 1
    %5185 = vsyncpa %s5184, 1
    %5186 = vsyncpa [#allocation6], 1
    %s5187 = scalar_lea.sflag [#allocation6], 1
    %5188 = vsyncpa %s5187, 1
    %5189 = vsyncpa [#allocation9], 1
    %s5190 = scalar_lea.sflag [#allocation9], 1
    %5191 = vsyncpa %s5190, 1
    %5192 = vsyncpa [#allocation12], 1
    %5193 = vsyncpa [#allocation4], 1
    %s5194 = scalar_lea.sflag [#allocation4], 1
    %5195 = vsyncpa %s5194, 1

</llo_original>
